<compile_context>
chip_gen: v7x
topology: tpu7x:2x2x1
jax: 0.10.0
libtpu: 0.0.40
codegen_flags: <defaults>
</compile_context>

<pallas_src>
import numpy as np
import jax
import jax.numpy as jnp
from jax.experimental import pallas as pl
from jax.experimental.pallas import tpu as pltpu


# ---------------------------------------------------------------------------
# Fused kernel: conv2d(3->3,k=3,pad=1) + ReLU + MaxPool(4,4) + 2-layer MLP
# One grid step processes TB images (stacked along lanes).
# ---------------------------------------------------------------------------
def _make_kernel(res, P, TB, hid, nout):
    RP = res + 2                     # padded spatial size

    def kernel(wc_ref, bc_ref, xs_ref, st_ref, sb_ref, w1s_ref,
               b1_ref, w2_ref, b2_ref, out_ref, ystk_ref):
        # ---- conv 3x3 (pad=1) + bias + ReLU, all TB images at once ----------
        # xs_ref block: (1, 3, 3*RP, TB*res); xs[0, dj, ci*RP+v, b*res+w]
        #   = padded_image[b, ci, v, w+dj]   (dj-shift pre-applied in wrapper)
        acc = [jnp.zeros((res, TB * res), jnp.float32) for _ in range(3)]
        for ci in range(3):
            for di in range(3):
                for dj in range(3):
                    # shared shifted window, used by all 3 output channels
                    slab = xs_ref[0, dj, ci * RP + di: ci * RP + di + res, :]
                    for co in range(3):
                        w = wc_ref[((co * 3 + ci) * 3 + di) * 3 + dj]
                        acc[co] = acc[co] + w * slab
        for co in range(3):
            y = jnp.maximum(acc[co] + bc_ref[co], 0.0)
            ystk_ref[co * res:(co + 1) * res, :] = y           # (res, TB*res)

        ystk = ystk_ref[...]                                   # (3*res, TB*res)

        # ---- max-pool 4x4 / stride 4 via batched selection matmuls ----------
        # rows:  R[(c,i), b*res+w] = max_di  y[b, c, 4i+di, w]
        r = jnp.dot(st_ref[0], ystk, preferred_element_type=jnp.float32)
        for di in range(1, 4):
            r = jnp.maximum(
                r, jnp.dot(st_ref[di], ystk, preferred_element_type=jnp.float32))
        # cols:  C[(c,i), j*TB+b] = max_dj  R[(c,i), b*res+4j+dj]
        c = jnp.dot(r, sb_ref[0], preferred_element_type=jnp.float32)
        for dj in range(1, 4):
            c = jnp.maximum(
                c, jnp.dot(r, sb_ref[dj], preferred_element_type=jnp.float32))

        # ---- fused MLP, transposed layout (hidden on sublanes, batch on lanes)
        # h[h,b] = sum_{r,j} W1[h, r*P+j] * pooled[b, c(r), i(r), j]
        h = jnp.dot(w1s_ref[0], c[:, 0:TB], preferred_element_type=jnp.float32)
        for j in range(1, P):
            h = h + jnp.dot(w1s_ref[j], c[:, j * TB:(j + 1) * TB],
                            preferred_element_type=jnp.float32)
        h = jnp.maximum(h + b1_ref[...], 0.0)                  # (hid, TB)
        o = jnp.dot(w2_ref[...], h,
                    preferred_element_type=jnp.float32) + b2_ref[...]
        out_ref[0] = jnp.maximum(o, 0.0)                       # (nout, TB)

    return kernel


# ---------------------------------------------------------------------------
# Wrapper: data layout plumbing (all pure-JAX / numpy, outside the kernel)
# ---------------------------------------------------------------------------
def mynet_forward(x, params, *, res, hid, nout):
    wc, bc, w1, b1, w2, b2 = params
    assert res % 4 == 0
    P = res // 4
    RP = res + 2

    xr = x.reshape(-1, 3, res, res).astype(jnp.float32)   # torch .view(-1,3,res,res)
    B = xr.shape[0]
    TB = max(1, 128 // res)            # images per grid step (batch along lanes)
    G = -(-B // TB)
    Bpad = G * TB
    if Bpad != B:
        xr = jnp.pad(xr, ((0, Bpad - B), (0, 0), (0, 0), (0, 0)))

    # Pre-shifted, channel/image-stacked conv input:
    #   xsh[g, dj, ci*RP+v, b*res+w] = xpad[g*TB+b, ci, v, w+dj]
    xpad = jnp.pad(xr, ((0, 0), (0, 0), (1, 1), (1, 1)))   # (Bpad,3,RP,RP)
    shifted = []
    for dj in range(3):
        s = xpad[:, :, :, dj:dj + res]                     # (Bpad,3,RP,res)
        s = s.reshape(G, TB, 3, RP, res)
        s = jnp.transpose(s, (0, 2, 3, 1, 4)).reshape(G, 3 * RP, TB * res)
        shifted.append(s)
    xsh = jnp.stack(shifted, axis=1)                       # (G,3,3*RP,TB*res)

    # 0/1 selection matrices for the pooling matmuls (tiny, built once)
    st_np = np.zeros((4, 3 * P, 3 * res), np.float32)
    for di in range(4):
        for cch in range(3):
            for i in range(P):
                st_np[di, cch * P + i, cch * res + 4 * i + di] = 1.0
    sb_np = np.zeros((4, TB * res, P * TB), np.float32)
    for dj in range(4):
        for b in range(TB):
            for j in range(P):
                sb_np[dj, b * res + 4 * j + dj, j * TB + b] = 1.0
    st = jnp.asarray(st_np)
    sb = jnp.asarray(sb_np)

    # first-layer weights regrouped by pooled column index j: w1s[j] = W1[:, j::P]
    w1s = jnp.stack([w1[:, j::P] for j in range(P)], axis=0)   # (P, hid, 3P)

    kernel = _make_kernel(res, P, TB, hid, nout)
    outT = pl.pallas_call(
        kernel,
        grid=(G,),
        in_specs=[
            pl.BlockSpec(memory_space=pltpu.MemorySpace.SMEM),         # conv w (81,)
            pl.BlockSpec(memory_space=pltpu.MemorySpace.SMEM),         # conv b (3,)
            pl.BlockSpec((1, 3, 3 * RP, TB * res), lambda g: (g, 0, 0, 0)),
            pl.BlockSpec((4, 3 * P, 3 * res), lambda g: (0, 0, 0)),    # row selectors
            pl.BlockSpec((4, TB * res, P * TB), lambda g: (0, 0, 0)),  # col selectors
            pl.BlockSpec((P, hid, 3 * P), lambda g: (0, 0, 0)),        # W1 (regrouped)
            pl.BlockSpec((hid, 1), lambda g: (0, 0)),                  # b1 column
            pl.BlockSpec((nout, hid), lambda g: (0, 0)),               # W2
            pl.BlockSpec((nout, 1), lambda g: (0, 0)),                 # b2 column
        ],
        out_specs=pl.BlockSpec((1, nout, TB), lambda g: (g, 0, 0)),
        out_shape=jax.ShapeDtypeStruct((G, nout, TB), jnp.float32),
        scratch_shapes=[pltpu.VMEM((3 * res, TB * res), jnp.float32)],
        compiler_params=pltpu.CompilerParams(
            dimension_semantics=("parallel",)),
    )(wc.reshape(-1), bc, xsh, st, sb, w1s,
      b1.reshape(hid, 1), w2, b2.reshape(nout, 1))

    out = jnp.transpose(outT, (0, 2, 1)).reshape(Bpad, nout)[:B]
    return out


# ---------------------------------------------------------------------------
# Pure-JAX reference for verification
# ---------------------------------------------------------------------------
def mynet_reference(x, params, *, res):
    wc, bc, w1, b1, w2, b2 = params
    xr = x.reshape(-1, 3, res, res)
    y = jax.lax.conv_general_dilated(
        xr, wc, window_strides=(1, 1), padding=((1, 1), (1, 1)),
        dimension_numbers=("NCHW", "OIHW", "NCHW"))
    y = jnp.maximum(y + bc[None, :, None, None], 0.0)
    p = jax.lax.reduce_window(y, -jnp.inf, jax.lax.max,
                              (1, 1, 4, 4), (1, 1, 4, 4), "VALID")
    f = p.reshape(p.shape[0], -1)
    h = jnp.maximum(f @ w1.T + b1, 0.0)
    o = h @ w2.T + b2
    return jnp.maximum(o, 0.0)


if __name__ == "__main__":
    res, hid, nout, B = 16, 32, 10, 10       # B=10 exercises grid=(2,) + batch padding
    P = res // 4
    F = 3 * P * P

    key = jax.random.PRNGKey(0)
    kx, kw, kb, k1, kb1, k2, kb2 = jax.random.split(key, 7)

    x = jax.random.normal(kx, (B, 3, res, res), jnp.float32)

    # deterministic synthetic parameters (shapes from MyNet.__init__)
    wc = 0.2 * jax.random.normal(kw, (3, 3, 3, 3), jnp.float32)   # conv1.weight (O,I,kh,kw)
    bc = 0.1 * jax.random.normal(kb, (3,), jnp.float32)           # conv1.bias
    w1 = 0.1 * jax.random.normal(k1, (hid, F), jnp.float32)       # flat1.weight
    b1 = 0.1 * jax.random.normal(kb1, (hid,), jnp.float32)        # flat1.bias
    w2 = 0.1 * jax.random.normal(k2, (nout, hid), jnp.float32)    # flat2.weight
    b2 = 0.1 * jax.random.normal(kb2, (nout,), jnp.float32)       # flat2.bias
    params = (wc, bc, w1, b1, w2, b2)

    out = jax.block_until_ready(
        mynet_forward(x, params, res=res, hid=hid, nout=nout))
    ref = jax.block_until_ready(mynet_reference(x, params, res=res))

    assert out.shape == (B, nout)
    np.testing.assert_allclose(np.asarray(out), np.asarray(ref),
                               rtol=1e-4, atol=1e-4)
    print("KERNEL_OK")
</pallas_src>

<mosaic_0001>
module attributes {stable_mosaic.version = 11 : i64} {
  func.func @kernel(%arg0: i32, %arg1: memref<81xf32, #tpu.memory_space<smem>>, %arg2: memref<3xf32, #tpu.memory_space<smem>>, %arg3: memref<1x3x54x128xf32, #tpu.memory_space<vmem>>, %arg4: memref<4x12x48xf32, #tpu.memory_space<vmem>>, %arg5: memref<4x128x32xf32, #tpu.memory_space<vmem>>, %arg6: memref<4x32x12xf32, #tpu.memory_space<vmem>>, %arg7: memref<32x1xf32, #tpu.memory_space<vmem>>, %arg8: memref<10x32xf32, #tpu.memory_space<vmem>>, %arg9: memref<10x1xf32, #tpu.memory_space<vmem>>, %arg10: memref<1x10x8xf32, #tpu.memory_space<vmem>>, %arg11: memref<48x128xf32, #tpu.memory_space<vmem>>) attributes {dimension_semantics = [#tpu.dimension_semantics<parallel>], iteration_bounds = array<i64: 2>, scalar_prefetch = 0 : i64, scratch_operands = 1 : i64, tpu.core_type = #tpu.core_type<tc>, window_params = [{transform_indices = @transform_0, window_bounds = array<i64: 81>}, {transform_indices = @transform_1, window_bounds = array<i64: 3>}, {transform_indices = @transform_2, window_bounds = array<i64: 1, 3, 54, 128>}, {pipeline_mode = #tpu.pipeline_mode<synchronous>, transform_indices = @transform_3, window_bounds = array<i64: 4, 12, 48>}, {pipeline_mode = #tpu.pipeline_mode<synchronous>, transform_indices = @transform_4, window_bounds = array<i64: 4, 128, 32>}, {pipeline_mode = #tpu.pipeline_mode<synchronous>, transform_indices = @transform_5, window_bounds = array<i64: 4, 32, 12>}, {pipeline_mode = #tpu.pipeline_mode<synchronous>, transform_indices = @transform_6, window_bounds = array<i64: 32, 1>}, {pipeline_mode = #tpu.pipeline_mode<synchronous>, transform_indices = @transform_7, window_bounds = array<i64: 10, 32>}, {pipeline_mode = #tpu.pipeline_mode<synchronous>, transform_indices = @transform_8, window_bounds = array<i64: 10, 1>}, {transform_indices = @transform_9, window_bounds = array<i64: 1, 10, 8>}]} {
    %cst = arith.constant 0.000000e+00 : f32
    %0 = vector.broadcast %cst : f32 to vector<16x128xf32>
    %cst_0 = arith.constant 0.000000e+00 : f32
    %1 = vector.broadcast %cst_0 : f32 to vector<16x128xf32>
    %cst_1 = arith.constant 0.000000e+00 : f32
    %2 = vector.broadcast %cst_1 : f32 to vector<16x128xf32>
    %c0 = arith.constant 0 : index
    %c0_2 = arith.constant 0 : index
    %c0_3 = arith.constant 0 : index
    %c0_4 = arith.constant 0 : index
    %3 = vector.load %arg3[%c0, %c0_2, %c0_3, %c0_4] : memref<1x3x54x128xf32, #tpu.memory_space<vmem>>, vector<1x1x16x128xf32>
    %4 = vector.shape_cast %3 : vector<1x1x16x128xf32> to vector<16x128xf32>
    %c0_5 = arith.constant 0 : index
    %5 = memref.load %arg1[%c0_5] : memref<81xf32, #tpu.memory_space<smem>>
    %6 = vector.broadcast %5 : f32 to vector<16x128xf32>
    %7 = arith.mulf %6, %4 : vector<16x128xf32>
    %8 = arith.addf %0, %7 : vector<16x128xf32>
    %c27 = arith.constant 27 : index
    %9 = memref.load %arg1[%c27] : memref<81xf32, #tpu.memory_space<smem>>
    %10 = vector.broadcast %9 : f32 to vector<16x128xf32>
    %11 = arith.mulf %10, %4 : vector<16x128xf32>
    %12 = arith.addf %1, %11 : vector<16x128xf32>
    %c54 = arith.constant 54 : index
    %13 = memref.load %arg1[%c54] : memref<81xf32, #tpu.memory_space<smem>>
    %14 = vector.broadcast %13 : f32 to vector<16x128xf32>
    %15 = arith.mulf %14, %4 : vector<16x128xf32>
    %16 = arith.addf %2, %15 : vector<16x128xf32>
    %c0_6 = arith.constant 0 : index
    %c1 = arith.constant 1 : index
    %c0_7 = arith.constant 0 : index
    %c0_8 = arith.constant 0 : index
    %17 = vector.load %arg3[%c0_6, %c1, %c0_7, %c0_8] : memref<1x3x54x128xf32, #tpu.memory_space<vmem>>, vector<1x1x16x128xf32>
    %18 = vector.shape_cast %17 : vector<1x1x16x128xf32> to vector<16x128xf32>
    %c1_9 = arith.constant 1 : index
    %19 = memref.load %arg1[%c1_9] : memref<81xf32, #tpu.memory_space<smem>>
    %20 = vector.broadcast %19 : f32 to vector<16x128xf32>
    %21 = arith.mulf %20, %18 : vector<16x128xf32>
    %22 = arith.addf %8, %21 : vector<16x128xf32>
    %c28 = arith.constant 28 : index
    %23 = memref.load %arg1[%c28] : memref<81xf32, #tpu.memory_space<smem>>
    %24 = vector.broadcast %23 : f32 to vector<16x128xf32>
    %25 = arith.mulf %24, %18 : vector<16x128xf32>
    %26 = arith.addf %12, %25 : vector<16x128xf32>
    %c55 = arith.constant 55 : index
    %27 = memref.load %arg1[%c55] : memref<81xf32, #tpu.memory_space<smem>>
    %28 = vector.broadcast %27 : f32 to vector<16x128xf32>
    %29 = arith.mulf %28, %18 : vector<16x128xf32>
    %30 = arith.addf %16, %29 : vector<16x128xf32>
    %c0_10 = arith.constant 0 : index
    %c2 = arith.constant 2 : index
    %c0_11 = arith.constant 0 : index
    %c0_12 = arith.constant 0 : index
    %31 = vector.load %arg3[%c0_10, %c2, %c0_11, %c0_12] : memref<1x3x54x128xf32, #tpu.memory_space<vmem>>, vector<1x1x16x128xf32>
    %32 = vector.shape_cast %31 : vector<1x1x16x128xf32> to vector<16x128xf32>
    %c2_13 = arith.constant 2 : index
    %33 = memref.load %arg1[%c2_13] : memref<81xf32, #tpu.memory_space<smem>>
    %34 = vector.broadcast %33 : f32 to vector<16x128xf32>
    %35 = arith.mulf %34, %32 : vector<16x128xf32>
    %36 = arith.addf %22, %35 : vector<16x128xf32>
    %c29 = arith.constant 29 : index
    %37 = memref.load %arg1[%c29] : memref<81xf32, #tpu.memory_space<smem>>
    %38 = vector.broadcast %37 : f32 to vector<16x128xf32>
    %39 = arith.mulf %38, %32 : vector<16x128xf32>
    %40 = arith.addf %26, %39 : vector<16x128xf32>
    %c56 = arith.constant 56 : index
    %41 = memref.load %arg1[%c56] : memref<81xf32, #tpu.memory_space<smem>>
    %42 = vector.broadcast %41 : f32 to vector<16x128xf32>
    %43 = arith.mulf %42, %32 : vector<16x128xf32>
    %44 = arith.addf %30, %43 : vector<16x128xf32>
    %c0_14 = arith.constant 0 : index
    %c0_15 = arith.constant 0 : index
    %c1_16 = arith.constant 1 : index
    %c0_17 = arith.constant 0 : index
    %45 = vector.load %arg3[%c0_14, %c0_15, %c1_16, %c0_17] : memref<1x3x54x128xf32, #tpu.memory_space<vmem>>, vector<1x1x16x128xf32>
    %46 = vector.shape_cast %45 : vector<1x1x16x128xf32> to vector<16x128xf32>
    %c3 = arith.constant 3 : index
    %47 = memref.load %arg1[%c3] : memref<81xf32, #tpu.memory_space<smem>>
    %48 = vector.broadcast %47 : f32 to vector<16x128xf32>
    %49 = arith.mulf %48, %46 : vector<16x128xf32>
    %50 = arith.addf %36, %49 : vector<16x128xf32>
    %c30 = arith.constant 30 : index
    %51 = memref.load %arg1[%c30] : memref<81xf32, #tpu.memory_space<smem>>
    %52 = vector.broadcast %51 : f32 to vector<16x128xf32>
    %53 = arith.mulf %52, %46 : vector<16x128xf32>
    %54 = arith.addf %40, %53 : vector<16x128xf32>
    %c57 = arith.constant 57 : index
    %55 = memref.load %arg1[%c57] : memref<81xf32, #tpu.memory_space<smem>>
    %56 = vector.broadcast %55 : f32 to vector<16x128xf32>
    %57 = arith.mulf %56, %46 : vector<16x128xf32>
    %58 = arith.addf %44, %57 : vector<16x128xf32>
    %c0_18 = arith.constant 0 : index
    %c1_19 = arith.constant 1 : index
    %c1_20 = arith.constant 1 : index
    %c0_21 = arith.constant 0 : index
    %59 = vector.load %arg3[%c0_18, %c1_19, %c1_20, %c0_21] : memref<1x3x54x128xf32, #tpu.memory_space<vmem>>, vector<1x1x16x128xf32>
    %60 = vector.shape_cast %59 : vector<1x1x16x128xf32> to vector<16x128xf32>
    %c4 = arith.constant 4 : index
    %61 = memref.load %arg1[%c4] : memref<81xf32, #tpu.memory_space<smem>>
    %62 = vector.broadcast %61 : f32 to vector<16x128xf32>
    %63 = arith.mulf %62, %60 : vector<16x128xf32>
    %64 = arith.addf %50, %63 : vector<16x128xf32>
    %c31 = arith.constant 31 : index
    %65 = memref.load %arg1[%c31] : memref<81xf32, #tpu.memory_space<smem>>
    %66 = vector.broadcast %65 : f32 to vector<16x128xf32>
    %67 = arith.mulf %66, %60 : vector<16x128xf32>
    %68 = arith.addf %54, %67 : vector<16x128xf32>
    %c58 = arith.constant 58 : index
    %69 = memref.load %arg1[%c58] : memref<81xf32, #tpu.memory_space<smem>>
    %70 = vector.broadcast %69 : f32 to vector<16x128xf32>
    %71 = arith.mulf %70, %60 : vector<16x128xf32>
    %72 = arith.addf %58, %71 : vector<16x128xf32>
    %c0_22 = arith.constant 0 : index
    %c2_23 = arith.constant 2 : index
    %c1_24 = arith.constant 1 : index
    %c0_25 = arith.constant 0 : index
    %73 = vector.load %arg3[%c0_22, %c2_23, %c1_24, %c0_25] : memref<1x3x54x128xf32, #tpu.memory_space<vmem>>, vector<1x1x16x128xf32>
    %74 = vector.shape_cast %73 : vector<1x1x16x128xf32> to vector<16x128xf32>
    %c5 = arith.constant 5 : index
    %75 = memref.load %arg1[%c5] : memref<81xf32, #tpu.memory_space<smem>>
    %76 = vector.broadcast %75 : f32 to vector<16x128xf32>
    %77 = arith.mulf %76, %74 : vector<16x128xf32>
    %78 = arith.addf %64, %77 : vector<16x128xf32>
    %c32 = arith.constant 32 : index
    %79 = memref.load %arg1[%c32] : memref<81xf32, #tpu.memory_space<smem>>
    %80 = vector.broadcast %79 : f32 to vector<16x128xf32>
    %81 = arith.mulf %80, %74 : vector<16x128xf32>
    %82 = arith.addf %68, %81 : vector<16x128xf32>
    %c59 = arith.constant 59 : index
    %83 = memref.load %arg1[%c59] : memref<81xf32, #tpu.memory_space<smem>>
    %84 = vector.broadcast %83 : f32 to vector<16x128xf32>
    %85 = arith.mulf %84, %74 : vector<16x128xf32>
    %86 = arith.addf %72, %85 : vector<16x128xf32>
    %c0_26 = arith.constant 0 : index
    %c0_27 = arith.constant 0 : index
    %c2_28 = arith.constant 2 : index
    %c0_29 = arith.constant 0 : index
    %87 = vector.load %arg3[%c0_26, %c0_27, %c2_28, %c0_29] : memref<1x3x54x128xf32, #tpu.memory_space<vmem>>, vector<1x1x16x128xf32>
    %88 = vector.shape_cast %87 : vector<1x1x16x128xf32> to vector<16x128xf32>
    %c6 = arith.constant 6 : index
    %89 = memref.load %arg1[%c6] : memref<81xf32, #tpu.memory_space<smem>>
    %90 = vector.broadcast %89 : f32 to vector<16x128xf32>
    %91 = arith.mulf %90, %88 : vector<16x128xf32>
    %92 = arith.addf %78, %91 : vector<16x128xf32>
    %c33 = arith.constant 33 : index
    %93 = memref.load %arg1[%c33] : memref<81xf32, #tpu.memory_space<smem>>
    %94 = vector.broadcast %93 : f32 to vector<16x128xf32>
    %95 = arith.mulf %94, %88 : vector<16x128xf32>
    %96 = arith.addf %82, %95 : vector<16x128xf32>
    %c60 = arith.constant 60 : index
    %97 = memref.load %arg1[%c60] : memref<81xf32, #tpu.memory_space<smem>>
    %98 = vector.broadcast %97 : f32 to vector<16x128xf32>
    %99 = arith.mulf %98, %88 : vector<16x128xf32>
    %100 = arith.addf %86, %99 : vector<16x128xf32>
    %c0_30 = arith.constant 0 : index
    %c1_31 = arith.constant 1 : index
    %c2_32 = arith.constant 2 : index
    %c0_33 = arith.constant 0 : index
    %101 = vector.load %arg3[%c0_30, %c1_31, %c2_32, %c0_33] : memref<1x3x54x128xf32, #tpu.memory_space<vmem>>, vector<1x1x16x128xf32>
    %102 = vector.shape_cast %101 : vector<1x1x16x128xf32> to vector<16x128xf32>
    %c7 = arith.constant 7 : index
    %103 = memref.load %arg1[%c7] : memref<81xf32, #tpu.memory_space<smem>>
    %104 = vector.broadcast %103 : f32 to vector<16x128xf32>
    %105 = arith.mulf %104, %102 : vector<16x128xf32>
    %106 = arith.addf %92, %105 : vector<16x128xf32>
    %c34 = arith.constant 34 : index
    %107 = memref.load %arg1[%c34] : memref<81xf32, #tpu.memory_space<smem>>
    %108 = vector.broadcast %107 : f32 to vector<16x128xf32>
    %109 = arith.mulf %108, %102 : vector<16x128xf32>
    %110 = arith.addf %96, %109 : vector<16x128xf32>
    %c61 = arith.constant 61 : index
    %111 = memref.load %arg1[%c61] : memref<81xf32, #tpu.memory_space<smem>>
    %112 = vector.broadcast %111 : f32 to vector<16x128xf32>
    %113 = arith.mulf %112, %102 : vector<16x128xf32>
    %114 = arith.addf %100, %113 : vector<16x128xf32>
    %c0_34 = arith.constant 0 : index
    %c2_35 = arith.constant 2 : index
    %c2_36 = arith.constant 2 : index
    %c0_37 = arith.constant 0 : index
    %115 = vector.load %arg3[%c0_34, %c2_35, %c2_36, %c0_37] : memref<1x3x54x128xf32, #tpu.memory_space<vmem>>, vector<1x1x16x128xf32>
    %116 = vector.shape_cast %115 : vector<1x1x16x128xf32> to vector<16x128xf32>
    %c8 = arith.constant 8 : index
    %117 = memref.load %arg1[%c8] : memref<81xf32, #tpu.memory_space<smem>>
    %118 = vector.broadcast %117 : f32 to vector<16x128xf32>
    %119 = arith.mulf %118, %116 : vector<16x128xf32>
    %120 = arith.addf %106, %119 : vector<16x128xf32>
    %c35 = arith.constant 35 : index
    %121 = memref.load %arg1[%c35] : memref<81xf32, #tpu.memory_space<smem>>
    %122 = vector.broadcast %121 : f32 to vector<16x128xf32>
    %123 = arith.mulf %122, %116 : vector<16x128xf32>
    %124 = arith.addf %110, %123 : vector<16x128xf32>
    %c62 = arith.constant 62 : index
    %125 = memref.load %arg1[%c62] : memref<81xf32, #tpu.memory_space<smem>>
    %126 = vector.broadcast %125 : f32 to vector<16x128xf32>
    %127 = arith.mulf %126, %116 : vector<16x128xf32>
    %128 = arith.addf %114, %127 : vector<16x128xf32>
    %c0_38 = arith.constant 0 : index
    %c0_39 = arith.constant 0 : index
    %c18 = arith.constant 18 : index
    %c0_40 = arith.constant 0 : index
    %129 = vector.load %arg3[%c0_38, %c0_39, %c18, %c0_40] : memref<1x3x54x128xf32, #tpu.memory_space<vmem>>, vector<1x1x16x128xf32>
    %130 = vector.shape_cast %129 : vector<1x1x16x128xf32> to vector<16x128xf32>
    %c9 = arith.constant 9 : index
    %131 = memref.load %arg1[%c9] : memref<81xf32, #tpu.memory_space<smem>>
    %132 = vector.broadcast %131 : f32 to vector<16x128xf32>
    %133 = arith.mulf %132, %130 : vector<16x128xf32>
    %134 = arith.addf %120, %133 : vector<16x128xf32>
    %c36 = arith.constant 36 : index
    %135 = memref.load %arg1[%c36] : memref<81xf32, #tpu.memory_space<smem>>
    %136 = vector.broadcast %135 : f32 to vector<16x128xf32>
    %137 = arith.mulf %136, %130 : vector<16x128xf32>
    %138 = arith.addf %124, %137 : vector<16x128xf32>
    %c63 = arith.constant 63 : index
    %139 = memref.load %arg1[%c63] : memref<81xf32, #tpu.memory_space<smem>>
    %140 = vector.broadcast %139 : f32 to vector<16x128xf32>
    %141 = arith.mulf %140, %130 : vector<16x128xf32>
    %142 = arith.addf %128, %141 : vector<16x128xf32>
    %c0_41 = arith.constant 0 : index
    %c1_42 = arith.constant 1 : index
    %c18_43 = arith.constant 18 : index
    %c0_44 = arith.constant 0 : index
    %143 = vector.load %arg3[%c0_41, %c1_42, %c18_43, %c0_44] : memref<1x3x54x128xf32, #tpu.memory_space<vmem>>, vector<1x1x16x128xf32>
    %144 = vector.shape_cast %143 : vector<1x1x16x128xf32> to vector<16x128xf32>
    %c10 = arith.constant 10 : index
    %145 = memref.load %arg1[%c10] : memref<81xf32, #tpu.memory_space<smem>>
    %146 = vector.broadcast %145 : f32 to vector<16x128xf32>
    %147 = arith.mulf %146, %144 : vector<16x128xf32>
    %148 = arith.addf %134, %147 : vector<16x128xf32>
    %c37 = arith.constant 37 : index
    %149 = memref.load %arg1[%c37] : memref<81xf32, #tpu.memory_space<smem>>
    %150 = vector.broadcast %149 : f32 to vector<16x128xf32>
    %151 = arith.mulf %150, %144 : vector<16x128xf32>
    %152 = arith.addf %138, %151 : vector<16x128xf32>
    %c64 = arith.constant 64 : index
    %153 = memref.load %arg1[%c64] : memref<81xf32, #tpu.memory_space<smem>>
    %154 = vector.broadcast %153 : f32 to vector<16x128xf32>
    %155 = arith.mulf %154, %144 : vector<16x128xf32>
    %156 = arith.addf %142, %155 : vector<16x128xf32>
    %c0_45 = arith.constant 0 : index
    %c2_46 = arith.constant 2 : index
    %c18_47 = arith.constant 18 : index
    %c0_48 = arith.constant 0 : index
    %157 = vector.load %arg3[%c0_45, %c2_46, %c18_47, %c0_48] : memref<1x3x54x128xf32, #tpu.memory_space<vmem>>, vector<1x1x16x128xf32>
    %158 = vector.shape_cast %157 : vector<1x1x16x128xf32> to vector<16x128xf32>
    %c11 = arith.constant 11 : index
    %159 = memref.load %arg1[%c11] : memref<81xf32, #tpu.memory_space<smem>>
    %160 = vector.broadcast %159 : f32 to vector<16x128xf32>
    %161 = arith.mulf %160, %158 : vector<16x128xf32>
    %162 = arith.addf %148, %161 : vector<16x128xf32>
    %c38 = arith.constant 38 : index
    %163 = memref.load %arg1[%c38] : memref<81xf32, #tpu.memory_space<smem>>
    %164 = vector.broadcast %163 : f32 to vector<16x128xf32>
    %165 = arith.mulf %164, %158 : vector<16x128xf32>
    %166 = arith.addf %152, %165 : vector<16x128xf32>
    %c65 = arith.constant 65 : index
    %167 = memref.load %arg1[%c65] : memref<81xf32, #tpu.memory_space<smem>>
    %168 = vector.broadcast %167 : f32 to vector<16x128xf32>
    %169 = arith.mulf %168, %158 : vector<16x128xf32>
    %170 = arith.addf %156, %169 : vector<16x128xf32>
    %c0_49 = arith.constant 0 : index
    %c0_50 = arith.constant 0 : index
    %c19 = arith.constant 19 : index
    %c0_51 = arith.constant 0 : index
    %171 = vector.load %arg3[%c0_49, %c0_50, %c19, %c0_51] : memref<1x3x54x128xf32, #tpu.memory_space<vmem>>, vector<1x1x16x128xf32>
    %172 = vector.shape_cast %171 : vector<1x1x16x128xf32> to vector<16x128xf32>
    %c12 = arith.constant 12 : index
    %173 = memref.load %arg1[%c12] : memref<81xf32, #tpu.memory_space<smem>>
    %174 = vector.broadcast %173 : f32 to vector<16x128xf32>
    %175 = arith.mulf %174, %172 : vector<16x128xf32>
    %176 = arith.addf %162, %175 : vector<16x128xf32>
    %c39 = arith.constant 39 : index
    %177 = memref.load %arg1[%c39] : memref<81xf32, #tpu.memory_space<smem>>
    %178 = vector.broadcast %177 : f32 to vector<16x128xf32>
    %179 = arith.mulf %178, %172 : vector<16x128xf32>
    %180 = arith.addf %166, %179 : vector<16x128xf32>
    %c66 = arith.constant 66 : index
    %181 = memref.load %arg1[%c66] : memref<81xf32, #tpu.memory_space<smem>>
    %182 = vector.broadcast %181 : f32 to vector<16x128xf32>
    %183 = arith.mulf %182, %172 : vector<16x128xf32>
    %184 = arith.addf %170, %183 : vector<16x128xf32>
    %c0_52 = arith.constant 0 : index
    %c1_53 = arith.constant 1 : index
    %c19_54 = arith.constant 19 : index
    %c0_55 = arith.constant 0 : index
    %185 = vector.load %arg3[%c0_52, %c1_53, %c19_54, %c0_55] : memref<1x3x54x128xf32, #tpu.memory_space<vmem>>, vector<1x1x16x128xf32>
    %186 = vector.shape_cast %185 : vector<1x1x16x128xf32> to vector<16x128xf32>
    %c13 = arith.constant 13 : index
    %187 = memref.load %arg1[%c13] : memref<81xf32, #tpu.memory_space<smem>>
    %188 = vector.broadcast %187 : f32 to vector<16x128xf32>
    %189 = arith.mulf %188, %186 : vector<16x128xf32>
    %190 = arith.addf %176, %189 : vector<16x128xf32>
    %c40 = arith.constant 40 : index
    %191 = memref.load %arg1[%c40] : memref<81xf32, #tpu.memory_space<smem>>
    %192 = vector.broadcast %191 : f32 to vector<16x128xf32>
    %193 = arith.mulf %192, %186 : vector<16x128xf32>
    %194 = arith.addf %180, %193 : vector<16x128xf32>
    %c67 = arith.constant 67 : index
    %195 = memref.load %arg1[%c67] : memref<81xf32, #tpu.memory_space<smem>>
    %196 = vector.broadcast %195 : f32 to vector<16x128xf32>
    %197 = arith.mulf %196, %186 : vector<16x128xf32>
    %198 = arith.addf %184, %197 : vector<16x128xf32>
    %c0_56 = arith.constant 0 : index
    %c2_57 = arith.constant 2 : index
    %c19_58 = arith.constant 19 : index
    %c0_59 = arith.constant 0 : index
    %199 = vector.load %arg3[%c0_56, %c2_57, %c19_58, %c0_59] : memref<1x3x54x128xf32, #tpu.memory_space<vmem>>, vector<1x1x16x128xf32>
    %200 = vector.shape_cast %199 : vector<1x1x16x128xf32> to vector<16x128xf32>
    %c14 = arith.constant 14 : index
    %201 = memref.load %arg1[%c14] : memref<81xf32, #tpu.memory_space<smem>>
    %202 = vector.broadcast %201 : f32 to vector<16x128xf32>
    %203 = arith.mulf %202, %200 : vector<16x128xf32>
    %204 = arith.addf %190, %203 : vector<16x128xf32>
    %c41 = arith.constant 41 : index
    %205 = memref.load %arg1[%c41] : memref<81xf32, #tpu.memory_space<smem>>
    %206 = vector.broadcast %205 : f32 to vector<16x128xf32>
    %207 = arith.mulf %206, %200 : vector<16x128xf32>
    %208 = arith.addf %194, %207 : vector<16x128xf32>
    %c68 = arith.constant 68 : index
    %209 = memref.load %arg1[%c68] : memref<81xf32, #tpu.memory_space<smem>>
    %210 = vector.broadcast %209 : f32 to vector<16x128xf32>
    %211 = arith.mulf %210, %200 : vector<16x128xf32>
    %212 = arith.addf %198, %211 : vector<16x128xf32>
    %c0_60 = arith.constant 0 : index
    %c0_61 = arith.constant 0 : index
    %c20 = arith.constant 20 : index
    %c0_62 = arith.constant 0 : index
    %213 = vector.load %arg3[%c0_60, %c0_61, %c20, %c0_62] : memref<1x3x54x128xf32, #tpu.memory_space<vmem>>, vector<1x1x16x128xf32>
    %214 = vector.shape_cast %213 : vector<1x1x16x128xf32> to vector<16x128xf32>
    %c15 = arith.constant 15 : index
    %215 = memref.load %arg1[%c15] : memref<81xf32, #tpu.memory_space<smem>>
    %216 = vector.broadcast %215 : f32 to vector<16x128xf32>
    %217 = arith.mulf %216, %214 : vector<16x128xf32>
    %218 = arith.addf %204, %217 : vector<16x128xf32>
    %c42 = arith.constant 42 : index
    %219 = memref.load %arg1[%c42] : memref<81xf32, #tpu.memory_space<smem>>
    %220 = vector.broadcast %219 : f32 to vector<16x128xf32>
    %221 = arith.mulf %220, %214 : vector<16x128xf32>
    %222 = arith.addf %208, %221 : vector<16x128xf32>
    %c69 = arith.constant 69 : index
    %223 = memref.load %arg1[%c69] : memref<81xf32, #tpu.memory_space<smem>>
    %224 = vector.broadcast %223 : f32 to vector<16x128xf32>
    %225 = arith.mulf %224, %214 : vector<16x128xf32>
    %226 = arith.addf %212, %225 : vector<16x128xf32>
    %c0_63 = arith.constant 0 : index
    %c1_64 = arith.constant 1 : index
    %c20_65 = arith.constant 20 : index
    %c0_66 = arith.constant 0 : index
    %227 = vector.load %arg3[%c0_63, %c1_64, %c20_65, %c0_66] : memref<1x3x54x128xf32, #tpu.memory_space<vmem>>, vector<1x1x16x128xf32>
    %228 = vector.shape_cast %227 : vector<1x1x16x128xf32> to vector<16x128xf32>
    %c16 = arith.constant 16 : index
    %229 = memref.load %arg1[%c16] : memref<81xf32, #tpu.memory_space<smem>>
    %230 = vector.broadcast %229 : f32 to vector<16x128xf32>
    %231 = arith.mulf %230, %228 : vector<16x128xf32>
    %232 = arith.addf %218, %231 : vector<16x128xf32>
    %c43 = arith.constant 43 : index
    %233 = memref.load %arg1[%c43] : memref<81xf32, #tpu.memory_space<smem>>
    %234 = vector.broadcast %233 : f32 to vector<16x128xf32>
    %235 = arith.mulf %234, %228 : vector<16x128xf32>
    %236 = arith.addf %222, %235 : vector<16x128xf32>
    %c70 = arith.constant 70 : index
    %237 = memref.load %arg1[%c70] : memref<81xf32, #tpu.memory_space<smem>>
    %238 = vector.broadcast %237 : f32 to vector<16x128xf32>
    %239 = arith.mulf %238, %228 : vector<16x128xf32>
    %240 = arith.addf %226, %239 : vector<16x128xf32>
    %c0_67 = arith.constant 0 : index
    %c2_68 = arith.constant 2 : index
    %c20_69 = arith.constant 20 : index
    %c0_70 = arith.constant 0 : index
    %241 = vector.load %arg3[%c0_67, %c2_68, %c20_69, %c0_70] : memref<1x3x54x128xf32, #tpu.memory_space<vmem>>, vector<1x1x16x128xf32>
    %242 = vector.shape_cast %241 : vector<1x1x16x128xf32> to vector<16x128xf32>
    %c17 = arith.constant 17 : index
    %243 = memref.load %arg1[%c17] : memref<81xf32, #tpu.memory_space<smem>>
    %244 = vector.broadcast %243 : f32 to vector<16x128xf32>
    %245 = arith.mulf %244, %242 : vector<16x128xf32>
    %246 = arith.addf %232, %245 : vector<16x128xf32>
    %c44 = arith.constant 44 : index
    %247 = memref.load %arg1[%c44] : memref<81xf32, #tpu.memory_space<smem>>
    %248 = vector.broadcast %247 : f32 to vector<16x128xf32>
    %249 = arith.mulf %248, %242 : vector<16x128xf32>
    %250 = arith.addf %236, %249 : vector<16x128xf32>
    %c71 = arith.constant 71 : index
    %251 = memref.load %arg1[%c71] : memref<81xf32, #tpu.memory_space<smem>>
    %252 = vector.broadcast %251 : f32 to vector<16x128xf32>
    %253 = arith.mulf %252, %242 : vector<16x128xf32>
    %254 = arith.addf %240, %253 : vector<16x128xf32>
    %c0_71 = arith.constant 0 : index
    %c0_72 = arith.constant 0 : index
    %c36_73 = arith.constant 36 : index
    %c0_74 = arith.constant 0 : index
    %255 = vector.load %arg3[%c0_71, %c0_72, %c36_73, %c0_74] : memref<1x3x54x128xf32, #tpu.memory_space<vmem>>, vector<1x1x16x128xf32>
    %256 = vector.shape_cast %255 : vector<1x1x16x128xf32> to vector<16x128xf32>
    %c18_75 = arith.constant 18 : index
    %257 = memref.load %arg1[%c18_75] : memref<81xf32, #tpu.memory_space<smem>>
    %258 = vector.broadcast %257 : f32 to vector<16x128xf32>
    %259 = arith.mulf %258, %256 : vector<16x128xf32>
    %260 = arith.addf %246, %259 : vector<16x128xf32>
    %c45 = arith.constant 45 : index
    %261 = memref.load %arg1[%c45] : memref<81xf32, #tpu.memory_space<smem>>
    %262 = vector.broadcast %261 : f32 to vector<16x128xf32>
    %263 = arith.mulf %262, %256 : vector<16x128xf32>
    %264 = arith.addf %250, %263 : vector<16x128xf32>
    %c72 = arith.constant 72 : index
    %265 = memref.load %arg1[%c72] : memref<81xf32, #tpu.memory_space<smem>>
    %266 = vector.broadcast %265 : f32 to vector<16x128xf32>
    %267 = arith.mulf %266, %256 : vector<16x128xf32>
    %268 = arith.addf %254, %267 : vector<16x128xf32>
    %c0_76 = arith.constant 0 : index
    %c1_77 = arith.constant 1 : index
    %c36_78 = arith.constant 36 : index
    %c0_79 = arith.constant 0 : index
    %269 = vector.load %arg3[%c0_76, %c1_77, %c36_78, %c0_79] : memref<1x3x54x128xf32, #tpu.memory_space<vmem>>, vector<1x1x16x128xf32>
    %270 = vector.shape_cast %269 : vector<1x1x16x128xf32> to vector<16x128xf32>
    %c19_80 = arith.constant 19 : index
    %271 = memref.load %arg1[%c19_80] : memref<81xf32, #tpu.memory_space<smem>>
    %272 = vector.broadcast %271 : f32 to vector<16x128xf32>
    %273 = arith.mulf %272, %270 : vector<16x128xf32>
    %274 = arith.addf %260, %273 : vector<16x128xf32>
    %c46 = arith.constant 46 : index
    %275 = memref.load %arg1[%c46] : memref<81xf32, #tpu.memory_space<smem>>
    %276 = vector.broadcast %275 : f32 to vector<16x128xf32>
    %277 = arith.mulf %276, %270 : vector<16x128xf32>
    %278 = arith.addf %264, %277 : vector<16x128xf32>
    %c73 = arith.constant 73 : index
    %279 = memref.load %arg1[%c73] : memref<81xf32, #tpu.memory_space<smem>>
    %280 = vector.broadcast %279 : f32 to vector<16x128xf32>
    %281 = arith.mulf %280, %270 : vector<16x128xf32>
    %282 = arith.addf %268, %281 : vector<16x128xf32>
    %c0_81 = arith.constant 0 : index
    %c2_82 = arith.constant 2 : index
    %c36_83 = arith.constant 36 : index
    %c0_84 = arith.constant 0 : index
    %283 = vector.load %arg3[%c0_81, %c2_82, %c36_83, %c0_84] : memref<1x3x54x128xf32, #tpu.memory_space<vmem>>, vector<1x1x16x128xf32>
    %284 = vector.shape_cast %283 : vector<1x1x16x128xf32> to vector<16x128xf32>
    %c20_85 = arith.constant 20 : index
    %285 = memref.load %arg1[%c20_85] : memref<81xf32, #tpu.memory_space<smem>>
    %286 = vector.broadcast %285 : f32 to vector<16x128xf32>
    %287 = arith.mulf %286, %284 : vector<16x128xf32>
    %288 = arith.addf %274, %287 : vector<16x128xf32>
    %c47 = arith.constant 47 : index
    %289 = memref.load %arg1[%c47] : memref<81xf32, #tpu.memory_space<smem>>
    %290 = vector.broadcast %289 : f32 to vector<16x128xf32>
    %291 = arith.mulf %290, %284 : vector<16x128xf32>
    %292 = arith.addf %278, %291 : vector<16x128xf32>
    %c74 = arith.constant 74 : index
    %293 = memref.load %arg1[%c74] : memref<81xf32, #tpu.memory_space<smem>>
    %294 = vector.broadcast %293 : f32 to vector<16x128xf32>
    %295 = arith.mulf %294, %284 : vector<16x128xf32>
    %296 = arith.addf %282, %295 : vector<16x128xf32>
    %c0_86 = arith.constant 0 : index
    %c0_87 = arith.constant 0 : index
    %c37_88 = arith.constant 37 : index
    %c0_89 = arith.constant 0 : index
    %297 = vector.load %arg3[%c0_86, %c0_87, %c37_88, %c0_89] : memref<1x3x54x128xf32, #tpu.memory_space<vmem>>, vector<1x1x16x128xf32>
    %298 = vector.shape_cast %297 : vector<1x1x16x128xf32> to vector<16x128xf32>
    %c21 = arith.constant 21 : index
    %299 = memref.load %arg1[%c21] : memref<81xf32, #tpu.memory_space<smem>>
    %300 = vector.broadcast %299 : f32 to vector<16x128xf32>
    %301 = arith.mulf %300, %298 : vector<16x128xf32>
    %302 = arith.addf %288, %301 : vector<16x128xf32>
    %c48 = arith.constant 48 : index
    %303 = memref.load %arg1[%c48] : memref<81xf32, #tpu.memory_space<smem>>
    %304 = vector.broadcast %303 : f32 to vector<16x128xf32>
    %305 = arith.mulf %304, %298 : vector<16x128xf32>
    %306 = arith.addf %292, %305 : vector<16x128xf32>
    %c75 = arith.constant 75 : index
    %307 = memref.load %arg1[%c75] : memref<81xf32, #tpu.memory_space<smem>>
    %308 = vector.broadcast %307 : f32 to vector<16x128xf32>
    %309 = arith.mulf %308, %298 : vector<16x128xf32>
    %310 = arith.addf %296, %309 : vector<16x128xf32>
    %c0_90 = arith.constant 0 : index
    %c1_91 = arith.constant 1 : index
    %c37_92 = arith.constant 37 : index
    %c0_93 = arith.constant 0 : index
    %311 = vector.load %arg3[%c0_90, %c1_91, %c37_92, %c0_93] : memref<1x3x54x128xf32, #tpu.memory_space<vmem>>, vector<1x1x16x128xf32>
    %312 = vector.shape_cast %311 : vector<1x1x16x128xf32> to vector<16x128xf32>
    %c22 = arith.constant 22 : index
    %313 = memref.load %arg1[%c22] : memref<81xf32, #tpu.memory_space<smem>>
    %314 = vector.broadcast %313 : f32 to vector<16x128xf32>
    %315 = arith.mulf %314, %312 : vector<16x128xf32>
    %316 = arith.addf %302, %315 : vector<16x128xf32>
    %c49 = arith.constant 49 : index
    %317 = memref.load %arg1[%c49] : memref<81xf32, #tpu.memory_space<smem>>
    %318 = vector.broadcast %317 : f32 to vector<16x128xf32>
    %319 = arith.mulf %318, %312 : vector<16x128xf32>
    %320 = arith.addf %306, %319 : vector<16x128xf32>
    %c76 = arith.constant 76 : index
    %321 = memref.load %arg1[%c76] : memref<81xf32, #tpu.memory_space<smem>>
    %322 = vector.broadcast %321 : f32 to vector<16x128xf32>
    %323 = arith.mulf %322, %312 : vector<16x128xf32>
    %324 = arith.addf %310, %323 : vector<16x128xf32>
    %c0_94 = arith.constant 0 : index
    %c2_95 = arith.constant 2 : index
    %c37_96 = arith.constant 37 : index
    %c0_97 = arith.constant 0 : index
    %325 = vector.load %arg3[%c0_94, %c2_95, %c37_96, %c0_97] : memref<1x3x54x128xf32, #tpu.memory_space<vmem>>, vector<1x1x16x128xf32>
    %326 = vector.shape_cast %325 : vector<1x1x16x128xf32> to vector<16x128xf32>
    %c23 = arith.constant 23 : index
    %327 = memref.load %arg1[%c23] : memref<81xf32, #tpu.memory_space<smem>>
    %328 = vector.broadcast %327 : f32 to vector<16x128xf32>
    %329 = arith.mulf %328, %326 : vector<16x128xf32>
    %330 = arith.addf %316, %329 : vector<16x128xf32>
    %c50 = arith.constant 50 : index
    %331 = memref.load %arg1[%c50] : memref<81xf32, #tpu.memory_space<smem>>
    %332 = vector.broadcast %331 : f32 to vector<16x128xf32>
    %333 = arith.mulf %332, %326 : vector<16x128xf32>
    %334 = arith.addf %320, %333 : vector<16x128xf32>
    %c77 = arith.constant 77 : index
    %335 = memref.load %arg1[%c77] : memref<81xf32, #tpu.memory_space<smem>>
    %336 = vector.broadcast %335 : f32 to vector<16x128xf32>
    %337 = arith.mulf %336, %326 : vector<16x128xf32>
    %338 = arith.addf %324, %337 : vector<16x128xf32>
    %c0_98 = arith.constant 0 : index
    %c0_99 = arith.constant 0 : index
    %c38_100 = arith.constant 38 : index
    %c0_101 = arith.constant 0 : index
    %339 = vector.load %arg3[%c0_98, %c0_99, %c38_100, %c0_101] : memref<1x3x54x128xf32, #tpu.memory_space<vmem>>, vector<1x1x16x128xf32>
    %340 = vector.shape_cast %339 : vector<1x1x16x128xf32> to vector<16x128xf32>
    %c24 = arith.constant 24 : index
    %341 = memref.load %arg1[%c24] : memref<81xf32, #tpu.memory_space<smem>>
    %342 = vector.broadcast %341 : f32 to vector<16x128xf32>
    %343 = arith.mulf %342, %340 : vector<16x128xf32>
    %344 = arith.addf %330, %343 : vector<16x128xf32>
    %c51 = arith.constant 51 : index
    %345 = memref.load %arg1[%c51] : memref<81xf32, #tpu.memory_space<smem>>
    %346 = vector.broadcast %345 : f32 to vector<16x128xf32>
    %347 = arith.mulf %346, %340 : vector<16x128xf32>
    %348 = arith.addf %334, %347 : vector<16x128xf32>
    %c78 = arith.constant 78 : index
    %349 = memref.load %arg1[%c78] : memref<81xf32, #tpu.memory_space<smem>>
    %350 = vector.broadcast %349 : f32 to vector<16x128xf32>
    %351 = arith.mulf %350, %340 : vector<16x128xf32>
    %352 = arith.addf %338, %351 : vector<16x128xf32>
    %c0_102 = arith.constant 0 : index
    %c1_103 = arith.constant 1 : index
    %c38_104 = arith.constant 38 : index
    %c0_105 = arith.constant 0 : index
    %353 = vector.load %arg3[%c0_102, %c1_103, %c38_104, %c0_105] : memref<1x3x54x128xf32, #tpu.memory_space<vmem>>, vector<1x1x16x128xf32>
    %354 = vector.shape_cast %353 : vector<1x1x16x128xf32> to vector<16x128xf32>
    %c25 = arith.constant 25 : index
    %355 = memref.load %arg1[%c25] : memref<81xf32, #tpu.memory_space<smem>>
    %356 = vector.broadcast %355 : f32 to vector<16x128xf32>
    %357 = arith.mulf %356, %354 : vector<16x128xf32>
    %358 = arith.addf %344, %357 : vector<16x128xf32>
    %c52 = arith.constant 52 : index
    %359 = memref.load %arg1[%c52] : memref<81xf32, #tpu.memory_space<smem>>
    %360 = vector.broadcast %359 : f32 to vector<16x128xf32>
    %361 = arith.mulf %360, %354 : vector<16x128xf32>
    %362 = arith.addf %348, %361 : vector<16x128xf32>
    %c79 = arith.constant 79 : index
    %363 = memref.load %arg1[%c79] : memref<81xf32, #tpu.memory_space<smem>>
    %364 = vector.broadcast %363 : f32 to vector<16x128xf32>
    %365 = arith.mulf %364, %354 : vector<16x128xf32>
    %366 = arith.addf %352, %365 : vector<16x128xf32>
    %c0_106 = arith.constant 0 : index
    %c2_107 = arith.constant 2 : index
    %c38_108 = arith.constant 38 : index
    %c0_109 = arith.constant 0 : index
    %367 = vector.load %arg3[%c0_106, %c2_107, %c38_108, %c0_109] : memref<1x3x54x128xf32, #tpu.memory_space<vmem>>, vector<1x1x16x128xf32>
    %368 = vector.shape_cast %367 : vector<1x1x16x128xf32> to vector<16x128xf32>
    %c26 = arith.constant 26 : index
    %369 = memref.load %arg1[%c26] : memref<81xf32, #tpu.memory_space<smem>>
    %370 = vector.broadcast %369 : f32 to vector<16x128xf32>
    %371 = arith.mulf %370, %368 : vector<16x128xf32>
    %372 = arith.addf %358, %371 : vector<16x128xf32>
    %c53 = arith.constant 53 : index
    %373 = memref.load %arg1[%c53] : memref<81xf32, #tpu.memory_space<smem>>
    %374 = vector.broadcast %373 : f32 to vector<16x128xf32>
    %375 = arith.mulf %374, %368 : vector<16x128xf32>
    %376 = arith.addf %362, %375 : vector<16x128xf32>
    %c80 = arith.constant 80 : index
    %377 = memref.load %arg1[%c80] : memref<81xf32, #tpu.memory_space<smem>>
    %378 = vector.broadcast %377 : f32 to vector<16x128xf32>
    %379 = arith.mulf %378, %368 : vector<16x128xf32>
    %380 = arith.addf %366, %379 : vector<16x128xf32>
    %c0_110 = arith.constant 0 : index
    %381 = memref.load %arg2[%c0_110] : memref<3xf32, #tpu.memory_space<smem>>
    %382 = vector.broadcast %381 : f32 to vector<16x128xf32>
    %383 = arith.addf %372, %382 : vector<16x128xf32>
    %cst_111 = arith.constant 0.000000e+00 : f32
    %384 = vector.broadcast %cst_111 : f32 to vector<16x128xf32>
    %385 = arith.maximumf %383, %384 : vector<16x128xf32>
    %c0_112 = arith.constant 0 : index
    %c0_113 = arith.constant 0 : index
    %386 = vector.load %arg11[%c0_112, %c0_113] : memref<48x128xf32, #tpu.memory_space<vmem>>, vector<16x128xf32>
    tpu.vector_store %arg11[%c0_112, %c0_113], %385 {strides = array<i32>} : memref<48x128xf32, #tpu.memory_space<vmem>>, vector<16x128xf32>,
    %c1_114 = arith.constant 1 : index
    %387 = memref.load %arg2[%c1_114] : memref<3xf32, #tpu.memory_space<smem>>
    %388 = vector.broadcast %387 : f32 to vector<16x128xf32>
    %389 = arith.addf %376, %388 : vector<16x128xf32>
    %cst_115 = arith.constant 0.000000e+00 : f32
    %390 = vector.broadcast %cst_115 : f32 to vector<16x128xf32>
    %391 = arith.maximumf %389, %390 : vector<16x128xf32>
    %c16_116 = arith.constant 16 : index
    %c0_117 = arith.constant 0 : index
    %392 = vector.load %arg11[%c16_116, %c0_117] : memref<48x128xf32, #tpu.memory_space<vmem>>, vector<16x128xf32>
    tpu.vector_store %arg11[%c16_116, %c0_117], %391 {strides = array<i32>} : memref<48x128xf32, #tpu.memory_space<vmem>>, vector<16x128xf32>,
    %c2_118 = arith.constant 2 : index
    %393 = memref.load %arg2[%c2_118] : memref<3xf32, #tpu.memory_space<smem>>
    %394 = vector.broadcast %393 : f32 to vector<16x128xf32>
    %395 = arith.addf %380, %394 : vector<16x128xf32>
    %cst_119 = arith.constant 0.000000e+00 : f32
    %396 = vector.broadcast %cst_119 : f32 to vector<16x128xf32>
    %397 = arith.maximumf %395, %396 : vector<16x128xf32>
    %c32_120 = arith.constant 32 : index
    %c0_121 = arith.constant 0 : index
    %398 = vector.load %arg11[%c32_120, %c0_121] : memref<48x128xf32, #tpu.memory_space<vmem>>, vector<16x128xf32>
    tpu.vector_store %arg11[%c32_120, %c0_121], %397 {strides = array<i32>} : memref<48x128xf32, #tpu.memory_space<vmem>>, vector<16x128xf32>,
    %c0_122 = arith.constant 0 : index
    %c0_123 = arith.constant 0 : index
    %399 = vector.load %arg11[%c0_122, %c0_123] : memref<48x128xf32, #tpu.memory_space<vmem>>, vector<48x128xf32>
    %c0_124 = arith.constant 0 : index
    %c0_125 = arith.constant 0 : index
    %c0_126 = arith.constant 0 : index
    %400 = vector.load %arg4[%c0_124, %c0_125, %c0_126] : memref<4x12x48xf32, #tpu.memory_space<vmem>>, vector<1x12x48xf32>
    %401 = vector.shape_cast %400 : vector<1x12x48xf32> to vector<12x48xf32>
    %cst_127 = arith.constant dense<0.000000e+00> : vector<12x128xf32>
    %402 = tpu.matmul %401, %399, %cst_127 {dimension_numbers = #tpu.dot_dimension_numbers<[1], [0], [0], [1], [0, 0, 1, 1], [], []>} : vector<12x48xf32>, vector<48x128xf32>, vector<12x128xf32> -> vector<12x128xf32>
    %c1_128 = arith.constant 1 : index
    %c0_129 = arith.constant 0 : index
    %c0_130 = arith.constant 0 : index
    %403 = vector.load %arg4[%c1_128, %c0_129, %c0_130] : memref<4x12x48xf32, #tpu.memory_space<vmem>>, vector<1x12x48xf32>
    %404 = vector.shape_cast %403 : vector<1x12x48xf32> to vector<12x48xf32>
    %cst_131 = arith.constant dense<0.000000e+00> : vector<12x128xf32>
    %405 = tpu.matmul %404, %399, %cst_131 {dimension_numbers = #tpu.dot_dimension_numbers<[1], [0], [0], [1], [0, 0, 1, 1], [], []>} : vector<12x48xf32>, vector<48x128xf32>, vector<12x128xf32> -> vector<12x128xf32>
    %406 = arith.maximumf %402, %405 : vector<12x128xf32>
    %c2_132 = arith.constant 2 : index
    %c0_133 = arith.constant 0 : index
    %c0_134 = arith.constant 0 : index
    %407 = vector.load %arg4[%c2_132, %c0_133, %c0_134] : memref<4x12x48xf32, #tpu.memory_space<vmem>>, vector<1x12x48xf32>
    %408 = vector.shape_cast %407 : vector<1x12x48xf32> to vector<12x48xf32>
    %cst_135 = arith.constant dense<0.000000e+00> : vector<12x128xf32>
    %409 = tpu.matmul %408, %399, %cst_135 {dimension_numbers = #tpu.dot_dimension_numbers<[1], [0], [0], [1], [0, 0, 1, 1], [], []>} : vector<12x48xf32>, vector<48x128xf32>, vector<12x128xf32> -> vector<12x128xf32>
    %410 = arith.maximumf %406, %409 : vector<12x128xf32>
    %c3_136 = arith.constant 3 : index
    %c0_137 = arith.constant 0 : index
    %c0_138 = arith.constant 0 : index
    %411 = vector.load %arg4[%c3_136, %c0_137, %c0_138] : memref<4x12x48xf32, #tpu.memory_space<vmem>>, vector<1x12x48xf32>
    %412 = vector.shape_cast %411 : vector<1x12x48xf32> to vector<12x48xf32>
    %cst_139 = arith.constant dense<0.000000e+00> : vector<12x128xf32>
    %413 = tpu.matmul %412, %399, %cst_139 {dimension_numbers = #tpu.dot_dimension_numbers<[1], [0], [0], [1], [0, 0, 1, 1], [], []>} : vector<12x48xf32>, vector<48x128xf32>, vector<12x128xf32> -> vector<12x128xf32>
    %414 = arith.maximumf %410, %413 : vector<12x128xf32>
    %c0_140 = arith.constant 0 : index
    %c0_141 = arith.constant 0 : index
    %c0_142 = arith.constant 0 : index
    %415 = vector.load %arg5[%c0_140, %c0_141, %c0_142] : memref<4x128x32xf32, #tpu.memory_space<vmem>>, vector<1x128x32xf32>
    %416 = vector.shape_cast %415 : vector<1x128x32xf32> to vector<128x32xf32>
    %cst_143 = arith.constant dense<0.000000e+00> : vector<12x32xf32>
    %417 = tpu.matmul %414, %416, %cst_143 {dimension_numbers = #tpu.dot_dimension_numbers<[1], [0], [0], [1], [0, 0, 1, 1], [], []>} : vector<12x128xf32>, vector<128x32xf32>, vector<12x32xf32> -> vector<12x32xf32>
    %c1_144 = arith.constant 1 : index
    %c0_145 = arith.constant 0 : index
    %c0_146 = arith.constant 0 : index
    %418 = vector.load %arg5[%c1_144, %c0_145, %c0_146] : memref<4x128x32xf32, #tpu.memory_space<vmem>>, vector<1x128x32xf32>
    %419 = vector.shape_cast %418 : vector<1x128x32xf32> to vector<128x32xf32>
    %cst_147 = arith.constant dense<0.000000e+00> : vector<12x32xf32>
    %420 = tpu.matmul %414, %419, %cst_147 {dimension_numbers = #tpu.dot_dimension_numbers<[1], [0], [0], [1], [0, 0, 1, 1], [], []>} : vector<12x128xf32>, vector<128x32xf32>, vector<12x32xf32> -> vector<12x32xf32>
    %421 = arith.maximumf %417, %420 : vector<12x32xf32>
    %c2_148 = arith.constant 2 : index
    %c0_149 = arith.constant 0 : index
    %c0_150 = arith.constant 0 : index
    %422 = vector.load %arg5[%c2_148, %c0_149, %c0_150] : memref<4x128x32xf32, #tpu.memory_space<vmem>>, vector<1x128x32xf32>
    %423 = vector.shape_cast %422 : vector<1x128x32xf32> to vector<128x32xf32>
    %cst_151 = arith.constant dense<0.000000e+00> : vector<12x32xf32>
    %424 = tpu.matmul %414, %423, %cst_151 {dimension_numbers = #tpu.dot_dimension_numbers<[1], [0], [0], [1], [0, 0, 1, 1], [], []>} : vector<12x128xf32>, vector<128x32xf32>, vector<12x32xf32> -> vector<12x32xf32>
    %425 = arith.maximumf %421, %424 : vector<12x32xf32>
    %c3_152 = arith.constant 3 : index
    %c0_153 = arith.constant 0 : index
    %c0_154 = arith.constant 0 : index
    %426 = vector.load %arg5[%c3_152, %c0_153, %c0_154] : memref<4x128x32xf32, #tpu.memory_space<vmem>>, vector<1x128x32xf32>
    %427 = vector.shape_cast %426 : vector<1x128x32xf32> to vector<128x32xf32>
    %cst_155 = arith.constant dense<0.000000e+00> : vector<12x32xf32>
    %428 = tpu.matmul %414, %427, %cst_155 {dimension_numbers = #tpu.dot_dimension_numbers<[1], [0], [0], [1], [0, 0, 1, 1], [], []>} : vector<12x128xf32>, vector<128x32xf32>, vector<12x32xf32> -> vector<12x32xf32>
    %429 = arith.maximumf %425, %428 : vector<12x32xf32>
    %c0_156 = arith.constant 0 : index
    %c0_157 = arith.constant 0 : index
    %c0_158 = arith.constant 0 : index
    %430 = vector.load %arg6[%c0_156, %c0_157, %c0_158] : memref<4x32x12xf32, #tpu.memory_space<vmem>>, vector<1x32x12xf32>
    %431 = vector.shape_cast %430 : vector<1x32x12xf32> to vector<32x12xf32>
    %432 = vector.extract_strided_slice %429 {offsets = [0, 0], sizes = [12, 8], strides = [1, 1]} : vector<12x32xf32> to vector<12x8xf32>
    %cst_159 = arith.constant dense<0.000000e+00> : vector<32x8xf32>
    %433 = tpu.matmul %431, %432, %cst_159 {dimension_numbers = #tpu.dot_dimension_numbers<[1], [0], [0], [1], [0, 0, 1, 1], [], []>} : vector<32x12xf32>, vector<12x8xf32>, vector<32x8xf32> -> vector<32x8xf32>
    %c1_160 = arith.constant 1 : index
    %c0_161 = arith.constant 0 : index
    %c0_162 = arith.constant 0 : index
    %434 = vector.load %arg6[%c1_160, %c0_161, %c0_162] : memref<4x32x12xf32, #tpu.memory_space<vmem>>, vector<1x32x12xf32>
    %435 = vector.shape_cast %434 : vector<1x32x12xf32> to vector<32x12xf32>
    %436 = vector.extract_strided_slice %429 {offsets = [0, 8], sizes = [12, 8], strides = [1, 1]} : vector<12x32xf32> to vector<12x8xf32>
    %cst_163 = arith.constant dense<0.000000e+00> : vector<32x8xf32>
    %437 = tpu.matmul %435, %436, %cst_163 {dimension_numbers = #tpu.dot_dimension_numbers<[1], [0], [0], [1], [0, 0, 1, 1], [], []>} : vector<32x12xf32>, vector<12x8xf32>, vector<32x8xf32> -> vector<32x8xf32>
    %438 = arith.addf %433, %437 : vector<32x8xf32>
    %c2_164 = arith.constant 2 : index
    %c0_165 = arith.constant 0 : index
    %c0_166 = arith.constant 0 : index
    %439 = vector.load %arg6[%c2_164, %c0_165, %c0_166] : memref<4x32x12xf32, #tpu.memory_space<vmem>>, vector<1x32x12xf32>
    %440 = vector.shape_cast %439 : vector<1x32x12xf32> to vector<32x12xf32>
    %441 = vector.extract_strided_slice %429 {offsets = [0, 16], sizes = [12, 8], strides = [1, 1]} : vector<12x32xf32> to vector<12x8xf32>
    %cst_167 = arith.constant dense<0.000000e+00> : vector<32x8xf32>
    %442 = tpu.matmul %440, %441, %cst_167 {dimension_numbers = #tpu.dot_dimension_numbers<[1], [0], [0], [1], [0, 0, 1, 1], [], []>} : vector<32x12xf32>, vector<12x8xf32>, vector<32x8xf32> -> vector<32x8xf32>
    %443 = arith.addf %438, %442 : vector<32x8xf32>
    %c3_168 = arith.constant 3 : index
    %c0_169 = arith.constant 0 : index
    %c0_170 = arith.constant 0 : index
    %444 = vector.load %arg6[%c3_168, %c0_169, %c0_170] : memref<4x32x12xf32, #tpu.memory_space<vmem>>, vector<1x32x12xf32>
    %445 = vector.shape_cast %444 : vector<1x32x12xf32> to vector<32x12xf32>
    %446 = vector.extract_strided_slice %429 {offsets = [0, 24], sizes = [12, 8], strides = [1, 1]} : vector<12x32xf32> to vector<12x8xf32>
    %cst_171 = arith.constant dense<0.000000e+00> : vector<32x8xf32>
    %447 = tpu.matmul %445, %446, %cst_171 {dimension_numbers = #tpu.dot_dimension_numbers<[1], [0], [0], [1], [0, 0, 1, 1], [], []>} : vector<32x12xf32>, vector<12x8xf32>, vector<32x8xf32> -> vector<32x8xf32>
    %448 = arith.addf %443, %447 : vector<32x8xf32>
    %c0_172 = arith.constant 0 : index
    %c0_173 = arith.constant 0 : index
    %449 = vector.load %arg7[%c0_172, %c0_173] : memref<32x1xf32, #tpu.memory_space<vmem>>, vector<32x1xf32>
    %450 = vector.broadcast %449 : vector<32x1xf32> to vector<32x8xf32>
    %451 = arith.addf %448, %450 : vector<32x8xf32>
    %cst_174 = arith.constant 0.000000e+00 : f32
    %452 = vector.broadcast %cst_174 : f32 to vector<32x8xf32>
    %453 = arith.maximumf %451, %452 : vector<32x8xf32>
    %c0_175 = arith.constant 0 : index
    %c0_176 = arith.constant 0 : index
    %454 = vector.load %arg8[%c0_175, %c0_176] : memref<10x32xf32, #tpu.memory_space<vmem>>, vector<10x32xf32>
    %cst_177 = arith.constant dense<0.000000e+00> : vector<10x8xf32>
    %455 = tpu.matmul %454, %453, %cst_177 {dimension_numbers = #tpu.dot_dimension_numbers<[1], [0], [0], [1], [0, 0, 1, 1], [], []>} : vector<10x32xf32>, vector<32x8xf32>, vector<10x8xf32> -> vector<10x8xf32>
    %c0_178 = arith.constant 0 : index
    %c0_179 = arith.constant 0 : index
    %456 = vector.load %arg9[%c0_178, %c0_179] : memref<10x1xf32, #tpu.memory_space<vmem>>, vector<10x1xf32>
    %457 = vector.broadcast %456 : vector<10x1xf32> to vector<10x8xf32>
    %458 = arith.addf %455, %457 : vector<10x8xf32>
    %cst_180 = arith.constant 0.000000e+00 : f32
    %459 = vector.broadcast %cst_180 : f32 to vector<10x8xf32>
    %460 = arith.maximumf %458, %459 : vector<10x8xf32>
    %c0_181 = arith.constant 0 : index
    %c0_182 = arith.constant 0 : index
    %c0_183 = arith.constant 0 : index
    %461 = vector.load %arg10[%c0_181, %c0_182, %c0_183] : memref<1x10x8xf32, #tpu.memory_space<vmem>>, vector<1x10x8xf32>
    %462 = vector.shape_cast %461 : vector<1x10x8xf32> to vector<10x8xf32>
    %463 = vector.shape_cast %460 : vector<10x8xf32> to vector<1x10x8xf32>
    tpu.vector_store %arg10[%c0_181, %c0_182, %c0_183], %463 {strides = array<i32>} : memref<1x10x8xf32, #tpu.memory_space<vmem>>, vector<1x10x8xf32>,
    return
  }
  func.func @transform_0(%arg0: i32) -> i32 {
    %c0_i32 = arith.constant 0 : i32
    %c0_i32_0 = arith.constant 0 : i32
    return %c0_i32 : i32
  }
  func.func @transform_1(%arg0: i32) -> i32 {
    %c0_i32 = arith.constant 0 : i32
    %c0_i32_0 = arith.constant 0 : i32
    return %c0_i32 : i32
  }
  func.func @transform_2(%arg0: i32) -> (i32, i32, i32, i32) {
    %c0_i32 = arith.constant 0 : i32
    %c0_i32_0 = arith.constant 0 : i32
    %c0_i32_1 = arith.constant 0 : i32
    %c0_i32_2 = arith.constant 0 : i32
    return %arg0, %c0_i32, %c0_i32_0, %c0_i32_1 : i32, i32, i32, i32
  }
  func.func @transform_3(%arg0: i32) -> (i32, i32, i32) {
    %c0_i32 = arith.constant 0 : i32
    %c0_i32_0 = arith.constant 0 : i32
    %c0_i32_1 = arith.constant 0 : i32
    %c0_i32_2 = arith.constant 0 : i32
    return %c0_i32, %c0_i32_0, %c0_i32_1 : i32, i32, i32
  }
  func.func @transform_4(%arg0: i32) -> (i32, i32, i32) {
    %c0_i32 = arith.constant 0 : i32
    %c0_i32_0 = arith.constant 0 : i32
    %c0_i32_1 = arith.constant 0 : i32
    %c0_i32_2 = arith.constant 0 : i32
    return %c0_i32, %c0_i32_0, %c0_i32_1 : i32, i32, i32
  }
  func.func @transform_5(%arg0: i32) -> (i32, i32, i32) {
    %c0_i32 = arith.constant 0 : i32
    %c0_i32_0 = arith.constant 0 : i32
    %c0_i32_1 = arith.constant 0 : i32
    %c0_i32_2 = arith.constant 0 : i32
    return %c0_i32, %c0_i32_0, %c0_i32_1 : i32, i32, i32
  }
  func.func @transform_6(%arg0: i32) -> (i32, i32) {
    %c0_i32 = arith.constant 0 : i32
    %c0_i32_0 = arith.constant 0 : i32
    %c0_i32_1 = arith.constant 0 : i32
    return %c0_i32, %c0_i32_0 : i32, i32
  }
  func.func @transform_7(%arg0: i32) -> (i32, i32) {
    %c0_i32 = arith.constant 0 : i32
    %c0_i32_0 = arith.constant 0 : i32
    %c0_i32_1 = arith.constant 0 : i32
    return %c0_i32, %c0_i32_0 : i32, i32
  }
  func.func @transform_8(%arg0: i32) -> (i32, i32) {
    %c0_i32 = arith.constant 0 : i32
    %c0_i32_0 = arith.constant 0 : i32
    %c0_i32_1 = arith.constant 0 : i32
    return %c0_i32, %c0_i32_0 : i32, i32
  }
  func.func @transform_9(%arg0: i32) -> (i32, i32, i32) {
    %c0_i32 = arith.constant 0 : i32
    %c0_i32_0 = arith.constant 0 : i32
    %c0_i32_1 = arith.constant 0 : i32
    return %arg0, %c0_i32, %c0_i32_0 : i32, i32, i32
  }
}

</mosaic_0001>

<llo_original>
// kernel: tpu_custom_call.1
$region0: #{tpu_custom_call.1}
  #allocation0 [shape = 'u32[]', space=smem, size = 0x4, offset = 0x4, fixed_abs, tag = 'smem constant byte address 0x4 - core index']
  #allocation1 [shape = 'u32[144,128]{1,0:T(1,128)}', space=vmem, size = 0x12000, scoped, tag = 'internal scratch']
  #allocation2 [shape = 'f32[48,128]{1,0:T(8,128)}', space=vmem, size = 0x6000, scoped, tag = 'scratch operand']
  %s0 = inlined_call_operand.vmem [shape: f32[81], index: 0, kind: input, shape index: {}]
  %s1 = inlined_call_operand.vmem [shape: f32[3], index: 1, kind: input, shape index: {}]
  %s2 = inlined_call_operand.vmem [shape: f32[2,3,54,128], index: 2, kind: input, shape index: {}]
  %s3 = inlined_call_operand.vmem [shape: f32[4,12,48], index: 3, kind: input, shape index: {}]
  %s4 = inlined_call_operand.vmem [shape: f32[4,128,32], index: 4, kind: input, shape index: {}]
  %s5 = inlined_call_operand.vmem [shape: f32[4,32,12], index: 5, kind: input, shape index: {}]
  %s6 = inlined_call_operand.vmem [shape: f32[32,1], index: 6, kind: input, shape index: {}]
  %s7 = inlined_call_operand.vmem [shape: f32[10,32], index: 7, kind: input, shape index: {}]
  %s8 = inlined_call_operand.vmem [shape: f32[10,1], index: 8, kind: input, shape index: {}]
  %s9 = inlined_call_operand.vmem [shape: f32[2,10,8], index: 9, kind: output, shape index: {}]
  %s10 = sld [smem:[#allocation0]]
  $region77: #{tpu_custom_call.1} parent=0
    _
  %s12 = ssub.s32 1, %s10
  %s13 = scalar_select 0, %s12, %s10
  $region1: #{tpu_custom_call.1} parent=0
    #allocation3 [shape = 'u8[512]{0}', space=smem, size = 0x200, scoped, tag = 'input window, operand 0, single buffered']
    #allocation4 [shape = 's32[2]{0}', space=sflag, size = 0x8, scoped, tag = 'scoped memory for tpu_custom_call.1']
    #allocation5 [shape = 'u8[512]{0}', space=smem, size = 0x200, scoped, tag = 'input window, operand 1, single buffered']
    #allocation6 [shape = 's32[1]{0}', space=sflag, size = 0x4, scoped, tag = 'scoped memory for tpu_custom_call.1']
    %14 = vsyncpa [#allocation4], 0
    %15 = vsyncpa [#allocation6], 0
    loop: start=0, step=1, limit=4
    $region2: #{tpu_custom_call.1} parent=1 // loop_pre_header
      _
    $region3: #{tpu_custom_call.1} parent=1 // loop_header
      %s17 = sphi 0, %s21
      %p18 = scmp.ge.s32.totalorder %s17, 4
      %s25 = sphi 0, %s25
      %s27 = sphi 0, %s25
      %s28 = sphi 0, %s27
      %s42 = sphi 0, %s28
      %s46 = sphi 0, %s46
      %s48 = sphi 0, %s46
      %s49 = sphi 0, %s48
      %s63 = sphi 0, %s49
      %s69 = sphi 0, %s71
      %s72 = sphi 0, %s69
      %s73 = sphi 0, %s72
      %s89 = sphi 0, %s73
      %s93 = sphi 0, %s93
      %s95 = sphi 0, %s93
      %s96 = sphi 0, %s95
      %s110 = sphi 0, %s96
      %s114 = sphi 0, %s114
      %s116 = sphi 0, %s114
      %s117 = sphi 0, %s116
      %s131 = sphi 0, %s117
      %s135 = sphi 0, %s135
      %s137 = sphi 0, %s135
      %s138 = sphi 0, %s137
      %s152 = sphi 0, %s138
      %s156 = sphi 0, %s156
      %s158 = sphi 0, %s156
      %s159 = sphi 0, %s158
      %s173 = sphi 0, %s159
      %s177 = sphi 0, %s177
      %s179 = sphi 0, %s177
      %s180 = sphi 0, %s179
      %s194 = sphi 0, %s180
      %s198 = sphi 0, %s198
      %s200 = sphi 0, %s198
      %s201 = sphi 0, %s200
      %s215 = sphi 0, %s201
      %s221 = sphi 0, %s223
      %s224 = sphi 0, %s221
      %s225 = sphi 0, %s224
      %s241 = sphi 0, %s225
    $region4: #{tpu_custom_call.1} parent=1 // loop_header_branch
      %20 = sbr.rel (%p18) target = $region8
    $region5: #{tpu_custom_call.1} parent=1 // loop_body
      %s22 = ssub.s32 %s17, 1
      %s23 = ssub.s32 %s17, 2
      %s24 = sadd.s32 %s17, 1
      %s26 = sadd.s32 %s25, 1
      %p29 = scmp.eq.s32.totalorder %s17, 1
      %p30 = scmp.ne.s32.totalorder %s25, %s27
      %p31 = scmp.eq.s32.totalorder %s17, 0
      %p32 = por %p30, %p31
      %p33 = scmp.ne.s32.totalorder %s25, %s27
      %p34 = scmp.eq.s32.totalorder %s22, 1
      %p35 = por %p33, %p34
      %p36 = scmp.ne.s32.totalorder %s27, %s28
      %p37 = scmp.eq.s32.totalorder %s22, 0
      %p38 = por %p36, %p37
      %p39 = scmp.ne.s32.totalorder %s27, %s28
      %p40 = scmp.eq.s32.totalorder %s23, 1
      %p41 = por %p39, %p40
      %p43 = scmp.ne.s32.totalorder %s28, %s42
      %p44 = scmp.eq.s32.totalorder %s23, 0
      %p45 = por %p43, %p44
      %s47 = sadd.s32 %s46, 1
      %p50 = scmp.eq.s32.totalorder %s17, 1
      %p51 = scmp.ne.s32.totalorder %s46, %s48
      %p52 = scmp.eq.s32.totalorder %s17, 0
      %p53 = por %p51, %p52
      %p54 = scmp.ne.s32.totalorder %s46, %s48
      %p55 = scmp.eq.s32.totalorder %s22, 1
      %p56 = por %p54, %p55
      %p57 = scmp.ne.s32.totalorder %s48, %s49
      %p58 = scmp.eq.s32.totalorder %s22, 0
      %p59 = por %p57, %p58
      %p60 = scmp.ne.s32.totalorder %s48, %s49
      %p61 = scmp.eq.s32.totalorder %s23, 1
      %p62 = por %p60, %p61
      %p64 = scmp.ne.s32.totalorder %s49, %s63
      %p65 = scmp.eq.s32.totalorder %s23, 0
      %p66 = por %p64, %p65
      %s67 = ssub.s32 %s17, %s24
      %p68 = scmp.eq.s32.totalorder %s67, 0
      %s70 = sadd.s32 %s69, 1
      %s71 = scalar_select %p68, %s69, %s70
      %p74 = pneg %p68
      %p75 = scmp.eq.s32.totalorder %s17, 1
      %p76 = por %p74, %p75
      %p77 = scmp.ne.s32.totalorder %s69, %s72
      %p78 = scmp.eq.s32.totalorder %s17, 0
      %p79 = por %p77, %p78
      %p80 = scmp.ne.s32.totalorder %s69, %s72
      %p81 = scmp.eq.s32.totalorder %s22, 1
      %p82 = por %p80, %p81
      %p83 = scmp.ne.s32.totalorder %s72, %s73
      %p84 = scmp.eq.s32.totalorder %s22, 0
      %p85 = por %p83, %p84
      %p86 = scmp.ne.s32.totalorder %s72, %s73
      %p87 = scmp.eq.s32.totalorder %s23, 1
      %p88 = por %p86, %p87
      %p90 = scmp.ne.s32.totalorder %s73, %s89
      %p91 = scmp.eq.s32.totalorder %s23, 0
      %p92 = por %p90, %p91
      %s94 = sadd.s32 %s93, 1
      %p97 = scmp.eq.s32.totalorder %s17, 1
      %p98 = scmp.ne.s32.totalorder %s93, %s95
      %p99 = scmp.eq.s32.totalorder %s17, 0
      %p100 = por %p98, %p99
      %p101 = scmp.ne.s32.totalorder %s93, %s95
      %p102 = scmp.eq.s32.totalorder %s22, 1
      %p103 = por %p101, %p102
      %p104 = scmp.ne.s32.totalorder %s95, %s96
      %p105 = scmp.eq.s32.totalorder %s22, 0
      %p106 = por %p104, %p105
      %p107 = scmp.ne.s32.totalorder %s95, %s96
      %p108 = scmp.eq.s32.totalorder %s23, 1
      %p109 = por %p107, %p108
      %p111 = scmp.ne.s32.totalorder %s96, %s110
      %p112 = scmp.eq.s32.totalorder %s23, 0
      %p113 = por %p111, %p112
      %s115 = sadd.s32 %s114, 1
      %p118 = scmp.eq.s32.totalorder %s17, 1
      %p119 = scmp.ne.s32.totalorder %s114, %s116
      %p120 = scmp.eq.s32.totalorder %s17, 0
      %p121 = por %p119, %p120
      %p122 = scmp.ne.s32.totalorder %s114, %s116
      %p123 = scmp.eq.s32.totalorder %s22, 1
      %p124 = por %p122, %p123
      %p125 = scmp.ne.s32.totalorder %s116, %s117
      %p126 = scmp.eq.s32.totalorder %s22, 0
      %p127 = por %p125, %p126
      %p128 = scmp.ne.s32.totalorder %s116, %s117
      %p129 = scmp.eq.s32.totalorder %s23, 1
      %p130 = por %p128, %p129
      %p132 = scmp.ne.s32.totalorder %s117, %s131
      %p133 = scmp.eq.s32.totalorder %s23, 0
      %p134 = por %p132, %p133
      %s136 = sadd.s32 %s135, 1
      %p139 = scmp.eq.s32.totalorder %s17, 1
      %p140 = scmp.ne.s32.totalorder %s135, %s137
      %p141 = scmp.eq.s32.totalorder %s17, 0
      %p142 = por %p140, %p141
      %p143 = scmp.ne.s32.totalorder %s135, %s137
      %p144 = scmp.eq.s32.totalorder %s22, 1
      %p145 = por %p143, %p144
      %p146 = scmp.ne.s32.totalorder %s137, %s138
      %p147 = scmp.eq.s32.totalorder %s22, 0
      %p148 = por %p146, %p147
      %p149 = scmp.ne.s32.totalorder %s137, %s138
      %p150 = scmp.eq.s32.totalorder %s23, 1
      %p151 = por %p149, %p150
      %p153 = scmp.ne.s32.totalorder %s138, %s152
      %p154 = scmp.eq.s32.totalorder %s23, 0
      %p155 = por %p153, %p154
      %s157 = sadd.s32 %s156, 1
      %p160 = scmp.eq.s32.totalorder %s17, 1
      %p161 = scmp.ne.s32.totalorder %s156, %s158
      %p162 = scmp.eq.s32.totalorder %s17, 0
      %p163 = por %p161, %p162
      %p164 = scmp.ne.s32.totalorder %s156, %s158
      %p165 = scmp.eq.s32.totalorder %s22, 1
      %p166 = por %p164, %p165
      %p167 = scmp.ne.s32.totalorder %s158, %s159
      %p168 = scmp.eq.s32.totalorder %s22, 0
      %p169 = por %p167, %p168
      %p170 = scmp.ne.s32.totalorder %s158, %s159
      %p171 = scmp.eq.s32.totalorder %s23, 1
      %p172 = por %p170, %p171
      %p174 = scmp.ne.s32.totalorder %s159, %s173
      %p175 = scmp.eq.s32.totalorder %s23, 0
      %p176 = por %p174, %p175
      %s178 = sadd.s32 %s177, 1
      %p181 = scmp.eq.s32.totalorder %s17, 1
      %p182 = scmp.ne.s32.totalorder %s177, %s179
      %p183 = scmp.eq.s32.totalorder %s17, 0
      %p184 = por %p182, %p183
      %p185 = scmp.ne.s32.totalorder %s177, %s179
      %p186 = scmp.eq.s32.totalorder %s22, 1
      %p187 = por %p185, %p186
      %p188 = scmp.ne.s32.totalorder %s179, %s180
      %p189 = scmp.eq.s32.totalorder %s22, 0
      %p190 = por %p188, %p189
      %p191 = scmp.ne.s32.totalorder %s179, %s180
      %p192 = scmp.eq.s32.totalorder %s23, 1
      %p193 = por %p191, %p192
      %p195 = scmp.ne.s32.totalorder %s180, %s194
      %p196 = scmp.eq.s32.totalorder %s23, 0
      %p197 = por %p195, %p196
      %s199 = sadd.s32 %s198, 1
      %p202 = scmp.eq.s32.totalorder %s17, 1
      %p203 = scmp.ne.s32.totalorder %s198, %s200
      %p204 = scmp.eq.s32.totalorder %s17, 0
      %p205 = por %p203, %p204
      %p206 = scmp.ne.s32.totalorder %s198, %s200
      %p207 = scmp.eq.s32.totalorder %s22, 1
      %p208 = por %p206, %p207
      %p209 = scmp.ne.s32.totalorder %s200, %s201
      %p210 = scmp.eq.s32.totalorder %s22, 0
      %p211 = por %p209, %p210
      %p212 = scmp.ne.s32.totalorder %s200, %s201
      %p213 = scmp.eq.s32.totalorder %s23, 1
      %p214 = por %p212, %p213
      %p216 = scmp.ne.s32.totalorder %s201, %s215
      %p217 = scmp.eq.s32.totalorder %s23, 0
      %p218 = por %p216, %p217
      %s219 = ssub.s32 %s17, %s24
      %p220 = scmp.eq.s32.totalorder %s219, 0
      %s222 = sadd.s32 %s221, 1
      %s223 = scalar_select %p220, %s221, %s222
      %p226 = pneg %p220
      %p227 = scmp.eq.s32.totalorder %s17, 1
      %p228 = por %p226, %p227
      %p229 = scmp.ne.s32.totalorder %s221, %s224
      %p230 = scmp.eq.s32.totalorder %s17, 0
      %p231 = por %p229, %p230
      %p232 = scmp.ne.s32.totalorder %s221, %s224
      %p233 = scmp.eq.s32.totalorder %s22, 1
      %p234 = por %p232, %p233
      %p235 = scmp.ne.s32.totalorder %s224, %s225
      %p236 = scmp.eq.s32.totalorder %s22, 0
      %p237 = por %p235, %p236
      %p238 = scmp.ne.s32.totalorder %s224, %s225
      %p239 = scmp.eq.s32.totalorder %s23, 1
      %p240 = por %p238, %p239
      %p242 = scmp.ne.s32.totalorder %s225, %s241
      %p243 = scmp.eq.s32.totalorder %s23, 0
      %p244 = por %p242, %p243
      %p245 = scmp.le.s32.totalorder 1, %s17
      %p246 = scmp.lt.s32.totalorder %s17, 3
      %p247 = pnand %p245, %p246
      %p248 = pneg %p247
      // Predicated region
      $region9: #{tpu_custom_call.1} parent=5 // pred_check
        _
      $region10: #{tpu_custom_call.1} parent=5 // pred_check_branch
        %250 = sbr.rel (%p247) target = $region12
      $region11: #{tpu_custom_call.1} parent=5 // pred_region
        %s251 = ssub.s32 %s17, 1
        // Predicated region
        $region13: #{tpu_custom_call.1} parent=11 // pred_check
          %p252 = pneg %p38
        $region14: #{tpu_custom_call.1} parent=11 // pred_check_branch
          %254 = sbr.rel (%p252) target = $region16
        $region15: #{tpu_custom_call.1} parent=11 // pred_region
          %s256 = ssub.s32 16, 16
          %257 = vsyncadd [#allocation4], %s256
          %s259 = sshll.u32 %s0, 4
          %s260 = int_to_ptr.vmem [resolvable:$true] %s259
          %262 = dma.vmem_to_smem %s260, 16, [#allocation3], [#allocation4]
        $region16: #{tpu_custom_call.1} parent=11 // pred_fallthru
          _
        // Predicated region
        $region17: #{tpu_custom_call.1} parent=11 // pred_check
          %p263 = pneg %p59
        $region18: #{tpu_custom_call.1} parent=11 // pred_check_branch
          %265 = sbr.rel (%p263) target = $region20
        $region19: #{tpu_custom_call.1} parent=11 // pred_region
          %s267 = ssub.s32 16, 16
          %268 = vsyncadd [#allocation6], %s267
          %s270 = sshll.u32 %s1, 4
          %s271 = int_to_ptr.vmem [resolvable:$true] %s270
          %273 = dma.vmem_to_smem %s271, 16, [#allocation5], [#allocation6]
        $region20: #{tpu_custom_call.1} parent=11 // pred_fallthru
          _
        // Predicated region
        $region21: #{tpu_custom_call.1} parent=11 // pred_check
          %p274 = pneg %p106
        $region22: #{tpu_custom_call.1} parent=11 // pred_check_branch
          %276 = sbr.rel (%p274) target = $region24
        $region23: #{tpu_custom_call.1} parent=11 // pred_region
          _
        $region24: #{tpu_custom_call.1} parent=11 // pred_fallthru
          _
        // Predicated region
        $region25: #{tpu_custom_call.1} parent=11 // pred_check
          %p277 = pneg %p127
        $region26: #{tpu_custom_call.1} parent=11 // pred_check_branch
          %279 = sbr.rel (%p277) target = $region28
        $region27: #{tpu_custom_call.1} parent=11 // pred_region
          _
        $region28: #{tpu_custom_call.1} parent=11 // pred_fallthru
          _
        // Predicated region
        $region29: #{tpu_custom_call.1} parent=11 // pred_check
          %p280 = pneg %p148
        $region30: #{tpu_custom_call.1} parent=11 // pred_check_branch
          %282 = sbr.rel (%p280) target = $region32
        $region31: #{tpu_custom_call.1} parent=11 // pred_region
          _
        $region32: #{tpu_custom_call.1} parent=11 // pred_fallthru
          _
        // Predicated region
        $region33: #{tpu_custom_call.1} parent=11 // pred_check
          %p283 = pneg %p169
        $region34: #{tpu_custom_call.1} parent=11 // pred_check_branch
          %285 = sbr.rel (%p283) target = $region36
        $region35: #{tpu_custom_call.1} parent=11 // pred_region
          _
        $region36: #{tpu_custom_call.1} parent=11 // pred_fallthru
          _
        // Predicated region
        $region37: #{tpu_custom_call.1} parent=11 // pred_check
          %p286 = pneg %p190
        $region38: #{tpu_custom_call.1} parent=11 // pred_check_branch
          %288 = sbr.rel (%p286) target = $region40
        $region39: #{tpu_custom_call.1} parent=11 // pred_region
          _
        $region40: #{tpu_custom_call.1} parent=11 // pred_fallthru
          _
        // Predicated region
        $region41: #{tpu_custom_call.1} parent=11 // pred_check
          %p289 = pneg %p211
        $region42: #{tpu_custom_call.1} parent=11 // pred_check_branch
          %291 = sbr.rel (%p289) target = $region44
        $region43: #{tpu_custom_call.1} parent=11 // pred_region
          _
        $region44: #{tpu_custom_call.1} parent=11 // pred_fallthru
          _
      $region12: #{tpu_custom_call.1} parent=5 // pred_fallthru
        _
      %p292 = scmp.lt.s32.totalorder %s17, 2
      // Predicated region
      $region45: #{tpu_custom_call.1} parent=5 // pred_check
        %p293 = pneg %p292
      $region46: #{tpu_custom_call.1} parent=5 // pred_check_branch
        %295 = sbr.rel (%p293) target = $region48
      $region47: #{tpu_custom_call.1} parent=5 // pred_region
        // Predicated region
        $region49: #{tpu_custom_call.1} parent=47 // pred_check
          %p296 = pneg %p79
        $region50: #{tpu_custom_call.1} parent=47 // pred_check_branch
          %298 = sbr.rel (%p296) target = $region52
        $region51: #{tpu_custom_call.1} parent=47 // pred_region
          %p299 = scmp.lt.s32.totalorder %s17, 1
          %s300 = scalar_select %p299, %s17, 1
          %s301 = smul.addr %s300, 21
          %s302 = smul.addr %s301, 8
          %s303 = scalar_lea.vmem %s2, %s302
        $region52: #{tpu_custom_call.1} parent=47 // pred_fallthru
          _
      $region48: #{tpu_custom_call.1} parent=5 // pred_fallthru
        _
      %p304 = scmp.le.s32.totalorder 1, %s17
      %p305 = scmp.lt.s32.totalorder %s17, 3
      %p306 = pnand %p304, %p305
      %p307 = pneg %p306
      // Predicated region
      $region53: #{tpu_custom_call.1} parent=5 // pred_check
        _
      $region54: #{tpu_custom_call.1} parent=5 // pred_check_branch
        %309 = sbr.rel (%p306) target = $region56
      $region55: #{tpu_custom_call.1} parent=5 // pred_region
        %s310 = ssub.s32 %s17, 1
        // Predicated region
        $region57: #{tpu_custom_call.1} parent=55 // pred_check
          %p311 = pneg %p38
        $region58: #{tpu_custom_call.1} parent=55 // pred_check_branch
          %313 = sbr.rel (%p311) target = $region60
        $region59: #{tpu_custom_call.1} parent=55 // pred_region
          %314 = dma.done [#allocation4], 16
        $region60: #{tpu_custom_call.1} parent=55 // pred_fallthru
          _
        // Predicated region
        $region61: #{tpu_custom_call.1} parent=55 // pred_check
          %p315 = pneg %p59
        $region62: #{tpu_custom_call.1} parent=55 // pred_check_branch
          %317 = sbr.rel (%p315) target = $region64
        $region63: #{tpu_custom_call.1} parent=55 // pred_region
          %318 = dma.done [#allocation6], 16
        $region64: #{tpu_custom_call.1} parent=55 // pred_fallthru
          _
        %319 = sfence
        %p320 = pneg %p38
        %p321 = pneg %p35
        %p322 = pneg %p59
        %p323 = pneg %p56
        %p324 = scmp.lt.s32.totalorder %s22, 1
        %s325 = scalar_select %p324, %s22, 1
        %s326 = smul.addr %s325, 21
        %s327 = smul.addr %s326, 8
        %s328 = scalar_lea.vmem %s2, %s327
        %p329 = pneg %p85
        %p330 = pneg %p82
        %p331 = pneg %p106
        %p332 = pneg %p103
        %p333 = pneg %p127
        %p334 = pneg %p124
        %p335 = pneg %p148
        %p336 = pneg %p145
        %p337 = pneg %p169
        %p338 = pneg %p166
        %p339 = pneg %p190
        %p340 = pneg %p187
        %p341 = pneg %p211
        %p342 = pneg %p208
        %p343 = pneg %p237
        %p344 = pneg %p234
        %p345 = scmp.lt.s32.totalorder %s22, 1
        %s346 = scalar_select %p345, %s22, 1
        %s347 = smul.addr %s346, 2
        %s348 = smul.addr %s347, 8
        %s349 = scalar_lea.vmem %s9, %s348
        %p350 = scmp.lt.s32.totalorder %s22, 1
        %s351 = scalar_select %p350, %s22, 1
        %s352 = smul.addr %s351, 21
        %s353 = smul.addr %s352, 8
        %s354 = scalar_lea.vmem %s2, %s353
        %p355 = scmp.lt.s32.totalorder %s22, 1
        %s356 = scalar_select %p355, %s22, 1
        %s357 = smul.addr %s356, 2
        %s358 = smul.addr %s357, 8
        %s359 = scalar_lea.vmem %s9, %s358
        %v360 = vld [vmem:[%s354] sm:$0xff]
        %v361 = vld [vmem:[%s354 + $0x8] sm:$0xff]
        %s362 = sld [smem:[#allocation3]]
        %v363 = vstv %s362
        %v364 = vmul.f32 %v363, %v360
        %v365 = vmul.f32 %v363, %v361
        %v366 = vadd.f32 %v364, 0.0
        %v367 = vadd.f32 %v365, 0.0
        %s368 = sld [smem:[#allocation3 + $0x1b]]
        %v369 = vstv %s368
        %v370 = vmul.f32 %v369, %v360
        %v371 = vmul.f32 %v369, %v361
        %v372 = vadd.f32 %v370, 0.0
        %v373 = vadd.f32 %v371, 0.0
        %s374 = sld [smem:[#allocation3 + $0x36]]
        %v375 = vstv %s374
        %v376 = vmul.f32 %v375, %v360
        %v377 = vmul.f32 %v375, %v361
        %v378 = vadd.f32 %v376, 0.0
        %v379 = vadd.f32 %v377, 0.0
        %s380 = scalar_lea.vmem %s354, 56
        %v381 = vld [vmem:[%s380] sm:$0xff]
        %v382 = vld [vmem:[%s380 + $0x8] sm:$0xff]
        %s383 = sld [smem:[#allocation3 + $0x1]]
        %v384 = vstv %s383
        %v385 = vmul.f32 %v384, %v381
        %v386 = vmul.f32 %v384, %v382
        %v387 = vadd.f32 %v366, %v385
        %v388 = vadd.f32 %v367, %v386
        %s389 = sld [smem:[#allocation3 + $0x1c]]
        %v390 = vstv %s389
        %v391 = vmul.f32 %v390, %v381
        %v392 = vmul.f32 %v390, %v382
        %v393 = vadd.f32 %v372, %v391
        %v394 = vadd.f32 %v373, %v392
        %s395 = sld [smem:[#allocation3 + $0x37]]
        %v396 = vstv %s395
        %v397 = vmul.f32 %v396, %v381
        %v398 = vmul.f32 %v396, %v382
        %v399 = vadd.f32 %v378, %v397
        %v400 = vadd.f32 %v379, %v398
        %s401 = scalar_lea.vmem %s354, 112
        %v402 = vld [vmem:[%s401] sm:$0xff]
        %v403 = vld [vmem:[%s401 + $0x8] sm:$0xff]
        %s404 = sld [smem:[#allocation3 + $0x2]]
        %v405 = vstv %s404
        %v406 = vmul.f32 %v405, %v402
        %v407 = vmul.f32 %v405, %v403
        %v408 = vadd.f32 %v387, %v406
        %v409 = vadd.f32 %v388, %v407
        %s410 = sld [smem:[#allocation3 + $0x1d]]
        %v411 = vstv %s410
        %v412 = vmul.f32 %v411, %v402
        %v413 = vmul.f32 %v411, %v403
        %v414 = vadd.f32 %v393, %v412
        %v415 = vadd.f32 %v394, %v413
        %s416 = sld [smem:[#allocation3 + $0x38]]
        %v417 = vstv %s416
        %v418 = vmul.f32 %v417, %v402
        %v419 = vmul.f32 %v417, %v403
        %v420 = vadd.f32 %v399, %v418
        %v421 = vadd.f32 %v400, %v419
        %v422 = vld [vmem:[%s354 + $0x1] sm:$0xff]
        %v423 = vld [vmem:[%s354 + $0x9] sm:$0xff]
        %s424 = sld [smem:[#allocation3 + $0x3]]
        %v425 = vstv %s424
        %v426 = vmul.f32 %v425, %v422
        %v427 = vmul.f32 %v425, %v423
        %v428 = vadd.f32 %v408, %v426
        %v429 = vadd.f32 %v409, %v427
        %s430 = sld [smem:[#allocation3 + $0x1e]]
        %v431 = vstv %s430
        %v432 = vmul.f32 %v431, %v422
        %v433 = vmul.f32 %v431, %v423
        %v434 = vadd.f32 %v414, %v432
        %v435 = vadd.f32 %v415, %v433
        %s436 = sld [smem:[#allocation3 + $0x39]]
        %v437 = vstv %s436
        %v438 = vmul.f32 %v437, %v422
        %v439 = vmul.f32 %v437, %v423
        %v440 = vadd.f32 %v420, %v438
        %v441 = vadd.f32 %v421, %v439
        %v442 = vld [vmem:[%s380 + $0x1] sm:$0xff]
        %v443 = vld [vmem:[%s380 + $0x9] sm:$0xff]
        %s444 = sld [smem:[#allocation3 + $0x4]]
        %v445 = vstv %s444
        %v446 = vmul.f32 %v445, %v442
        %v447 = vmul.f32 %v445, %v443
        %v448 = vadd.f32 %v428, %v446
        %v449 = vadd.f32 %v429, %v447
        %s450 = sld [smem:[#allocation3 + $0x1f]]
        %v451 = vstv %s450
        %v452 = vmul.f32 %v451, %v442
        %v453 = vmul.f32 %v451, %v443
        %v454 = vadd.f32 %v434, %v452
        %v455 = vadd.f32 %v435, %v453
        %s456 = sld [smem:[#allocation3 + $0x3a]]
        %v457 = vstv %s456
        %v458 = vmul.f32 %v457, %v442
        %v459 = vmul.f32 %v457, %v443
        %v460 = vadd.f32 %v440, %v458
        %v461 = vadd.f32 %v441, %v459
        %v462 = vld [vmem:[%s401 + $0x1] sm:$0xff]
        %v463 = vld [vmem:[%s401 + $0x9] sm:$0xff]
        %s464 = sld [smem:[#allocation3 + $0x5]]
        %v465 = vstv %s464
        %v466 = vmul.f32 %v465, %v462
        %v467 = vmul.f32 %v465, %v463
        %v468 = vadd.f32 %v448, %v466
        %v469 = vadd.f32 %v449, %v467
        %s470 = sld [smem:[#allocation3 + $0x20]]
        %v471 = vstv %s470
        %v472 = vmul.f32 %v471, %v462
        %v473 = vmul.f32 %v471, %v463
        %v474 = vadd.f32 %v454, %v472
        %v475 = vadd.f32 %v455, %v473
        %s476 = sld [smem:[#allocation3 + $0x3b]]
        %v477 = vstv %s476
        %v478 = vmul.f32 %v477, %v462
        %v479 = vmul.f32 %v477, %v463
        %v480 = vadd.f32 %v460, %v478
        %v481 = vadd.f32 %v461, %v479
        %v482 = vld [vmem:[%s354 + $0x2] sm:$0xff]
        %v483 = vld [vmem:[%s354 + $0xa] sm:$0xff]
        %s484 = sld [smem:[#allocation3 + $0x6]]
        %v485 = vstv %s484
        %v486 = vmul.f32 %v485, %v482
        %v487 = vmul.f32 %v485, %v483
        %v488 = vadd.f32 %v468, %v486
        %v489 = vadd.f32 %v469, %v487
        %s490 = sld [smem:[#allocation3 + $0x21]]
        %v491 = vstv %s490
        %v492 = vmul.f32 %v491, %v482
        %v493 = vmul.f32 %v491, %v483
        %v494 = vadd.f32 %v474, %v492
        %v495 = vadd.f32 %v475, %v493
        %s496 = sld [smem:[#allocation3 + $0x3c]]
        %v497 = vstv %s496
        %v498 = vmul.f32 %v497, %v482
        %v499 = vmul.f32 %v497, %v483
        %v500 = vadd.f32 %v480, %v498
        %v501 = vadd.f32 %v481, %v499
        %v502 = vld [vmem:[%s380 + $0x2] sm:$0xff]
        %v503 = vld [vmem:[%s380 + $0xa] sm:$0xff]
        %s504 = sld [smem:[#allocation3 + $0x7]]
        %v505 = vstv %s504
        %v506 = vmul.f32 %v505, %v502
        %v507 = vmul.f32 %v505, %v503
        %v508 = vadd.f32 %v488, %v506
        %v509 = vadd.f32 %v489, %v507
        %s510 = sld [smem:[#allocation3 + $0x22]]
        %v511 = vstv %s510
        %v512 = vmul.f32 %v511, %v502
        %v513 = vmul.f32 %v511, %v503
        %v514 = vadd.f32 %v494, %v512
        %v515 = vadd.f32 %v495, %v513
        %s516 = sld [smem:[#allocation3 + $0x3d]]
        %v517 = vstv %s516
        %v518 = vmul.f32 %v517, %v502
        %v519 = vmul.f32 %v517, %v503
        %v520 = vadd.f32 %v500, %v518
        %v521 = vadd.f32 %v501, %v519
        %v522 = vld [vmem:[%s401 + $0x2] sm:$0xff]
        %v523 = vld [vmem:[%s401 + $0xa] sm:$0xff]
        %s524 = sld [smem:[#allocation3 + $0x8]]
        %v525 = vstv %s524
        %v526 = vmul.f32 %v525, %v522
        %v527 = vmul.f32 %v525, %v523
        %v528 = vadd.f32 %v508, %v526
        %v529 = vadd.f32 %v509, %v527
        %s530 = sld [smem:[#allocation3 + $0x23]]
        %v531 = vstv %s530
        %v532 = vmul.f32 %v531, %v522
        %v533 = vmul.f32 %v531, %v523
        %v534 = vadd.f32 %v514, %v532
        %v535 = vadd.f32 %v515, %v533
        %s536 = sld [smem:[#allocation3 + $0x3e]]
        %v537 = vstv %s536
        %v538 = vmul.f32 %v537, %v522
        %v539 = vmul.f32 %v537, %v523
        %v540 = vadd.f32 %v520, %v538
        %v541 = vadd.f32 %v521, %v539
        %v542 = vld [vmem:[%s354 + $0x12] sm:$0xff]
        %v543 = vld [vmem:[%s354 + $0x1a] sm:$0xff]
        %s544 = sld [smem:[#allocation3 + $0x9]]
        %v545 = vstv %s544
        %v546 = vmul.f32 %v545, %v542
        %v547 = vmul.f32 %v545, %v543
        %v548 = vadd.f32 %v528, %v546
        %v549 = vadd.f32 %v529, %v547
        %s550 = sld [smem:[#allocation3 + $0x24]]
        %v551 = vstv %s550
        %v552 = vmul.f32 %v551, %v542
        %v553 = vmul.f32 %v551, %v543
        %v554 = vadd.f32 %v534, %v552
        %v555 = vadd.f32 %v535, %v553
        %s556 = sld [smem:[#allocation3 + $0x3f]]
        %v557 = vstv %s556
        %v558 = vmul.f32 %v557, %v542
        %v559 = vmul.f32 %v557, %v543
        %v560 = vadd.f32 %v540, %v558
        %v561 = vadd.f32 %v541, %v559
        %v562 = vld [vmem:[%s380 + $0x12] sm:$0xff]
        %v563 = vld [vmem:[%s380 + $0x1a] sm:$0xff]
        %s564 = sld [smem:[#allocation3 + $0xa]]
        %v565 = vstv %s564
        %v566 = vmul.f32 %v565, %v562
        %v567 = vmul.f32 %v565, %v563
        %v568 = vadd.f32 %v548, %v566
        %v569 = vadd.f32 %v549, %v567
        %s570 = sld [smem:[#allocation3 + $0x25]]
        %v571 = vstv %s570
        %v572 = vmul.f32 %v571, %v562
        %v573 = vmul.f32 %v571, %v563
        %v574 = vadd.f32 %v554, %v572
        %v575 = vadd.f32 %v555, %v573
        %s576 = sld [smem:[#allocation3 + $0x40]]
        %v577 = vstv %s576
        %v578 = vmul.f32 %v577, %v562
        %v579 = vmul.f32 %v577, %v563
        %v580 = vadd.f32 %v560, %v578
        %v581 = vadd.f32 %v561, %v579
        %v582 = vld [vmem:[%s401 + $0x12] sm:$0xff]
        %v583 = vld [vmem:[%s401 + $0x1a] sm:$0xff]
        %s584 = sld [smem:[#allocation3 + $0xb]]
        %v585 = vstv %s584
        %v586 = vmul.f32 %v585, %v582
        %v587 = vmul.f32 %v585, %v583
        %v588 = vadd.f32 %v568, %v586
        %v589 = vadd.f32 %v569, %v587
        %s590 = sld [smem:[#allocation3 + $0x26]]
        %v591 = vstv %s590
        %v592 = vmul.f32 %v591, %v582
        %v593 = vmul.f32 %v591, %v583
        %v594 = vadd.f32 %v574, %v592
        %v595 = vadd.f32 %v575, %v593
        %s596 = sld [smem:[#allocation3 + $0x41]]
        %v597 = vstv %s596
        %v598 = vmul.f32 %v597, %v582
        %v599 = vmul.f32 %v597, %v583
        %v600 = vadd.f32 %v580, %v598
        %v601 = vadd.f32 %v581, %v599
        %v602 = vld [vmem:[%s354 + $0x13] sm:$0xff]
        %v603 = vld [vmem:[%s354 + $0x1b] sm:$0xff]
        %s604 = sld [smem:[#allocation3 + $0xc]]
        %v605 = vstv %s604
        %v606 = vmul.f32 %v605, %v602
        %v607 = vmul.f32 %v605, %v603
        %v608 = vadd.f32 %v588, %v606
        %v609 = vadd.f32 %v589, %v607
        %s610 = sld [smem:[#allocation3 + $0x27]]
        %v611 = vstv %s610
        %v612 = vmul.f32 %v611, %v602
        %v613 = vmul.f32 %v611, %v603
        %v614 = vadd.f32 %v594, %v612
        %v615 = vadd.f32 %v595, %v613
        %s616 = sld [smem:[#allocation3 + $0x42]]
        %v617 = vstv %s616
        %v618 = vmul.f32 %v617, %v602
        %v619 = vmul.f32 %v617, %v603
        %v620 = vadd.f32 %v600, %v618
        %v621 = vadd.f32 %v601, %v619
        %v622 = vld [vmem:[%s380 + $0x13] sm:$0xff]
        %v623 = vld [vmem:[%s380 + $0x1b] sm:$0xff]
        %s624 = sld [smem:[#allocation3 + $0xd]]
        %v625 = vstv %s624
        %v626 = vmul.f32 %v625, %v622
        %v627 = vmul.f32 %v625, %v623
        %v628 = vadd.f32 %v608, %v626
        %v629 = vadd.f32 %v609, %v627
        %s630 = sld [smem:[#allocation3 + $0x28]]
        %v631 = vstv %s630
        %v632 = vmul.f32 %v631, %v622
        %v633 = vmul.f32 %v631, %v623
        %v634 = vadd.f32 %v614, %v632
        %v635 = vadd.f32 %v615, %v633
        %s636 = sld [smem:[#allocation3 + $0x43]]
        %v637 = vstv %s636
        %v638 = vmul.f32 %v637, %v622
        %v639 = vmul.f32 %v637, %v623
        %v640 = vadd.f32 %v620, %v638
        %v641 = vadd.f32 %v621, %v639
        %v642 = vld [vmem:[%s401 + $0x13] sm:$0xff]
        %v643 = vld [vmem:[%s401 + $0x1b] sm:$0xff]
        %s644 = sld [smem:[#allocation3 + $0xe]]
        %v645 = vstv %s644
        %v646 = vmul.f32 %v645, %v642
        %v647 = vmul.f32 %v645, %v643
        %v648 = vadd.f32 %v628, %v646
        %v649 = vadd.f32 %v629, %v647
        %s650 = sld [smem:[#allocation3 + $0x29]]
        %v651 = vstv %s650
        %v652 = vmul.f32 %v651, %v642
        %v653 = vmul.f32 %v651, %v643
        %v654 = vadd.f32 %v634, %v652
        %v655 = vadd.f32 %v635, %v653
        %s656 = sld [smem:[#allocation3 + $0x44]]
        %v657 = vstv %s656
        %v658 = vmul.f32 %v657, %v642
        %v659 = vmul.f32 %v657, %v643
        %v660 = vadd.f32 %v640, %v658
        %v661 = vadd.f32 %v641, %v659
        %v662 = vld [vmem:[%s354 + $0x14] sm:$0xff]
        %v663 = vld [vmem:[%s354 + $0x1c] sm:$0xff]
        %s664 = sld [smem:[#allocation3 + $0xf]]
        %v665 = vstv %s664
        %v666 = vmul.f32 %v665, %v662
        %v667 = vmul.f32 %v665, %v663
        %v668 = vadd.f32 %v648, %v666
        %v669 = vadd.f32 %v649, %v667
        %s670 = sld [smem:[#allocation3 + $0x2a]]
        %v671 = vstv %s670
        %v672 = vmul.f32 %v671, %v662
        %v673 = vmul.f32 %v671, %v663
        %v674 = vadd.f32 %v654, %v672
        %v675 = vadd.f32 %v655, %v673
        %s676 = sld [smem:[#allocation3 + $0x45]]
        %v677 = vstv %s676
        %v678 = vmul.f32 %v677, %v662
        %v679 = vmul.f32 %v677, %v663
        %v680 = vadd.f32 %v660, %v678
        %v681 = vadd.f32 %v661, %v679
        %v682 = vld [vmem:[%s380 + $0x14] sm:$0xff]
        %v683 = vld [vmem:[%s380 + $0x1c] sm:$0xff]
        %s684 = sld [smem:[#allocation3 + $0x10]]
        %v685 = vstv %s684
        %v686 = vmul.f32 %v685, %v682
        %v687 = vmul.f32 %v685, %v683
        %v688 = vadd.f32 %v668, %v686
        %v689 = vadd.f32 %v669, %v687
        %s690 = sld [smem:[#allocation3 + $0x2b]]
        %v691 = vstv %s690
        %v692 = vmul.f32 %v691, %v682
        %v693 = vmul.f32 %v691, %v683
        %v694 = vadd.f32 %v674, %v692
        %v695 = vadd.f32 %v675, %v693
        %s696 = sld [smem:[#allocation3 + $0x46]]
        %v697 = vstv %s696
        %v698 = vmul.f32 %v697, %v682
        %v699 = vmul.f32 %v697, %v683
        %v700 = vadd.f32 %v680, %v698
        %v701 = vadd.f32 %v681, %v699
        %v702 = vld [vmem:[%s401 + $0x14] sm:$0xff]
        %v703 = vld [vmem:[%s401 + $0x1c] sm:$0xff]
        %s704 = sld [smem:[#allocation3 + $0x11]]
        %v705 = vstv %s704
        %v706 = vmul.f32 %v705, %v702
        %v707 = vmul.f32 %v705, %v703
        %v708 = vadd.f32 %v688, %v706
        %v709 = vadd.f32 %v689, %v707
        %s710 = sld [smem:[#allocation3 + $0x2c]]
        %v711 = vstv %s710
        %v712 = vmul.f32 %v711, %v702
        %v713 = vmul.f32 %v711, %v703
        %v714 = vadd.f32 %v694, %v712
        %v715 = vadd.f32 %v695, %v713
        %s716 = sld [smem:[#allocation3 + $0x47]]
        %v717 = vstv %s716
        %v718 = vmul.f32 %v717, %v702
        %v719 = vmul.f32 %v717, %v703
        %v720 = vadd.f32 %v700, %v718
        %v721 = vadd.f32 %v701, %v719
        %v722 = vld [vmem:[%s354 + $0x24] sm:$0xff]
        %v723 = vld [vmem:[%s354 + $0x2c] sm:$0xff]
        %s724 = sld [smem:[#allocation3 + $0x12]]
        %v725 = vstv %s724
        %v726 = vmul.f32 %v725, %v722
        %v727 = vmul.f32 %v725, %v723
        %v728 = vadd.f32 %v708, %v726
        %v729 = vadd.f32 %v709, %v727
        %s730 = sld [smem:[#allocation3 + $0x2d]]
        %v731 = vstv %s730
        %v732 = vmul.f32 %v731, %v722
        %v733 = vmul.f32 %v731, %v723
        %v734 = vadd.f32 %v714, %v732
        %v735 = vadd.f32 %v715, %v733
        %s736 = sld [smem:[#allocation3 + $0x48]]
        %v737 = vstv %s736
        %v738 = vmul.f32 %v737, %v722
        %v739 = vmul.f32 %v737, %v723
        %v740 = vadd.f32 %v720, %v738
        %v741 = vadd.f32 %v721, %v739
        %v742 = vld [vmem:[%s380 + $0x24] sm:$0xff]
        %v743 = vld [vmem:[%s380 + $0x2c] sm:$0xff]
        %s744 = sld [smem:[#allocation3 + $0x13]]
        %v745 = vstv %s744
        %v746 = vmul.f32 %v745, %v742
        %v747 = vmul.f32 %v745, %v743
        %v748 = vadd.f32 %v728, %v746
        %v749 = vadd.f32 %v729, %v747
        %s750 = sld [smem:[#allocation3 + $0x2e]]
        %v751 = vstv %s750
        %v752 = vmul.f32 %v751, %v742
        %v753 = vmul.f32 %v751, %v743
        %v754 = vadd.f32 %v734, %v752
        %v755 = vadd.f32 %v735, %v753
        %s756 = sld [smem:[#allocation3 + $0x49]]
        %v757 = vstv %s756
        %v758 = vmul.f32 %v757, %v742
        %v759 = vmul.f32 %v757, %v743
        %v760 = vadd.f32 %v740, %v758
        %v761 = vadd.f32 %v741, %v759
        %v762 = vld [vmem:[%s401 + $0x24] sm:$0xff]
        %v763 = vld [vmem:[%s401 + $0x2c] sm:$0xff]
        %s764 = sld [smem:[#allocation3 + $0x14]]
        %v765 = vstv %s764
        %v766 = vmul.f32 %v765, %v762
        %v767 = vmul.f32 %v765, %v763
        %v768 = vadd.f32 %v748, %v766
        %v769 = vadd.f32 %v749, %v767
        %s770 = sld [smem:[#allocation3 + $0x2f]]
        %v771 = vstv %s770
        %v772 = vmul.f32 %v771, %v762
        %v773 = vmul.f32 %v771, %v763
        %v774 = vadd.f32 %v754, %v772
        %v775 = vadd.f32 %v755, %v773
        %s776 = sld [smem:[#allocation3 + $0x4a]]
        %v777 = vstv %s776
        %v778 = vmul.f32 %v777, %v762
        %v779 = vmul.f32 %v777, %v763
        %v780 = vadd.f32 %v760, %v778
        %v781 = vadd.f32 %v761, %v779
        %v782 = vld [vmem:[%s354 + $0x25] sm:$0xff]
        %v783 = vld [vmem:[%s354 + $0x2d] sm:$0xff]
        %s784 = sld [smem:[#allocation3 + $0x15]]
        %v785 = vstv %s784
        %v786 = vmul.f32 %v785, %v782
        %v787 = vmul.f32 %v785, %v783
        %v788 = vadd.f32 %v768, %v786
        %v789 = vadd.f32 %v769, %v787
        %s790 = sld [smem:[#allocation3 + $0x30]]
        %v791 = vstv %s790
        %v792 = vmul.f32 %v791, %v782
        %v793 = vmul.f32 %v791, %v783
        %v794 = vadd.f32 %v774, %v792
        %v795 = vadd.f32 %v775, %v793
        %s796 = sld [smem:[#allocation3 + $0x4b]]
        %v797 = vstv %s796
        %v798 = vmul.f32 %v797, %v782
        %v799 = vmul.f32 %v797, %v783
        %v800 = vadd.f32 %v780, %v798
        %v801 = vadd.f32 %v781, %v799
        %v802 = vld [vmem:[%s380 + $0x25] sm:$0xff]
        %v803 = vld [vmem:[%s380 + $0x2d] sm:$0xff]
        %s804 = sld [smem:[#allocation3 + $0x16]]
        %v805 = vstv %s804
        %v806 = vmul.f32 %v805, %v802
        %v807 = vmul.f32 %v805, %v803
        %v808 = vadd.f32 %v788, %v806
        %v809 = vadd.f32 %v789, %v807
        %s810 = sld [smem:[#allocation3 + $0x31]]
        %v811 = vstv %s810
        %v812 = vmul.f32 %v811, %v802
        %v813 = vmul.f32 %v811, %v803
        %v814 = vadd.f32 %v794, %v812
        %v815 = vadd.f32 %v795, %v813
        %s816 = sld [smem:[#allocation3 + $0x4c]]
        %v817 = vstv %s816
        %v818 = vmul.f32 %v817, %v802
        %v819 = vmul.f32 %v817, %v803
        %v820 = vadd.f32 %v800, %v818
        %v821 = vadd.f32 %v801, %v819
        %v822 = vld [vmem:[%s401 + $0x25] sm:$0xff]
        %v823 = vld [vmem:[%s401 + $0x2d] sm:$0xff]
        %s824 = sld [smem:[#allocation3 + $0x17]]
        %v825 = vstv %s824
        %v826 = vmul.f32 %v825, %v822
        %v827 = vmul.f32 %v825, %v823
        %v828 = vadd.f32 %v808, %v826
        %v829 = vadd.f32 %v809, %v827
        %s830 = sld [smem:[#allocation3 + $0x32]]
        %v831 = vstv %s830
        %v832 = vmul.f32 %v831, %v822
        %v833 = vmul.f32 %v831, %v823
        %v834 = vadd.f32 %v814, %v832
        %v835 = vadd.f32 %v815, %v833
        %s836 = sld [smem:[#allocation3 + $0x4d]]
        %v837 = vstv %s836
        %v838 = vmul.f32 %v837, %v822
        %v839 = vmul.f32 %v837, %v823
        %v840 = vadd.f32 %v820, %v838
        %v841 = vadd.f32 %v821, %v839
        %v842 = vld [vmem:[%s354 + $0x26] sm:$0xff]
        %v843 = vld [vmem:[%s354 + $0x2e] sm:$0xff]
        %s844 = sld [smem:[#allocation3 + $0x18]]
        %v845 = vstv %s844
        %v846 = vmul.f32 %v845, %v842
        %v847 = vmul.f32 %v845, %v843
        %v848 = vadd.f32 %v828, %v846
        %v849 = vadd.f32 %v829, %v847
        %s850 = sld [smem:[#allocation3 + $0x33]]
        %v851 = vstv %s850
        %v852 = vmul.f32 %v851, %v842
        %v853 = vmul.f32 %v851, %v843
        %v854 = vadd.f32 %v834, %v852
        %v855 = vadd.f32 %v835, %v853
        %s856 = sld [smem:[#allocation3 + $0x4e]]
        %v857 = vstv %s856
        %v858 = vmul.f32 %v857, %v842
        %v859 = vmul.f32 %v857, %v843
        %v860 = vadd.f32 %v840, %v858
        %v861 = vadd.f32 %v841, %v859
        %v862 = vld [vmem:[%s380 + $0x26] sm:$0xff]
        %v863 = vld [vmem:[%s380 + $0x2e] sm:$0xff]
        %s864 = sld [smem:[#allocation3 + $0x19]]
        %v865 = vstv %s864
        %v866 = vmul.f32 %v865, %v862
        %v867 = vmul.f32 %v865, %v863
        %v868 = vadd.f32 %v848, %v866
        %v869 = vadd.f32 %v849, %v867
        %s870 = sld [smem:[#allocation3 + $0x34]]
        %v871 = vstv %s870
        %v872 = vmul.f32 %v871, %v862
        %v873 = vmul.f32 %v871, %v863
        %v874 = vadd.f32 %v854, %v872
        %v875 = vadd.f32 %v855, %v873
        %s876 = sld [smem:[#allocation3 + $0x4f]]
        %v877 = vstv %s876
        %v878 = vmul.f32 %v877, %v862
        %v879 = vmul.f32 %v877, %v863
        %v880 = vadd.f32 %v860, %v878
        %v881 = vadd.f32 %v861, %v879
        %v882 = vld [vmem:[%s401 + $0x26] sm:$0xff]
        %v883 = vld [vmem:[%s401 + $0x2e] sm:$0xff]
        %s884 = sld [smem:[#allocation3 + $0x1a]]
        %v885 = vstv %s884
        %v886 = vmul.f32 %v885, %v882
        %v887 = vmul.f32 %v885, %v883
        %v888 = vadd.f32 %v868, %v886
        %v889 = vadd.f32 %v869, %v887
        %s890 = sld [smem:[#allocation3 + $0x35]]
        %v891 = vstv %s890
        %v892 = vmul.f32 %v891, %v882
        %v893 = vmul.f32 %v891, %v883
        %v894 = vadd.f32 %v874, %v892
        %v895 = vadd.f32 %v875, %v893
        %s896 = sld [smem:[#allocation3 + $0x50]]
        %v897 = vstv %s896
        %v898 = vmul.f32 %v897, %v882
        %v899 = vmul.f32 %v897, %v883
        %v900 = vadd.f32 %v880, %v898
        %v901 = vadd.f32 %v881, %v899
        %s902 = sld [smem:[#allocation5]]
        %v903 = vstv %s902
        %v904 = vadd.f32 %v888, %v903
        %v905 = vadd.f32 %v889, %v903
        %v906 = vmax.f32 %v904, 0.0
        %v907 = vmax.f32 %v905, 0.0
        %908 = vst [vmem:[#allocation2] sm:$0xff] %v906
        %909 = vst [vmem:[#allocation2 + $0x8] sm:$0xff] %v907
        %s910 = sld [smem:[#allocation5 + $0x1]]
        %v911 = vstv %s910
        %v912 = vadd.f32 %v894, %v911
        %v913 = vadd.f32 %v895, %v911
        %v914 = vmax.f32 %v912, 0.0
        %v915 = vmax.f32 %v913, 0.0
        %916 = vst [vmem:[#allocation2 + $0x10] sm:$0xff] %v914
        %917 = vst [vmem:[#allocation2 + $0x18] sm:$0xff] %v915
        %s918 = sld [smem:[#allocation5 + $0x2]]
        %v919 = vstv %s918
        %v920 = vadd.f32 %v900, %v919
        %v921 = vadd.f32 %v901, %v919
        %v922 = vmax.f32 %v920, 0.0
        %v923 = vmax.f32 %v921, 0.0
        %924 = vst [vmem:[#allocation2 + $0x20] sm:$0xff] %v922
        %925 = vst [vmem:[#allocation2 + $0x28] sm:$0xff] %v923
        %v926 = vld [vmem:[#allocation2] sm:$0xff]
        %v927 = vld [vmem:[#allocation2 + $0x8] sm:$0xff]
        %v928 = vld [vmem:[#allocation2 + $0x10] sm:$0xff]
        %v929 = vld [vmem:[#allocation2 + $0x18] sm:$0xff]
        %v930 = vld [vmem:[#allocation2 + $0x20] sm:$0xff]
        %v931 = vld [vmem:[#allocation2 + $0x28] sm:$0xff]
        %v932 = vld [vmem:[%s3] sm:$0xff]
        %v933 = vld [vmem:[%s3 + $0x8] sm:$0xf]
        %vm934 = vcmask 392192
        %v936 = vsel %vm934, %v932, 0
        %v939 = vsel %vm934, %v933, 0
        %941 = vmatprep.subr.mxu0 0.0
        %942 = vmatpush1.msra.mxu0 %v926
        %943 = vmatprep.subr.mxu0 0.0
        %944 = vmatpush1.msra.mxu0 %v927
        %945 = vmatprep.subr.mxu0 0.0
        %946 = vmatpush1.msra.mxu0 %v928
        %947 = vmatprep.subr.mxu0 0.0
        %948 = vmatpush1.msra.mxu0 %v929
        %949 = vmatprep.subr.mxu0 0.0
        %950 = vmatpush1.msra.mxu0 %v930
        %951 = vmatprep.subr.mxu0 0.0
        %952 = vmatpush1.msra.mxu0 %v931
        %953 = vmatprep.subr.mxu0 0.0
        %954 = vmatpush1.msra.mxu0 0.0
        %955 = vmatprep.subr.mxu0 0.0
        %956 = vmatpush1.msra.mxu0 0.0
        %957 = vmatprep.subr.mxu0 0.0
        %958 = vmatpush1.msra.mxu0 0.0
        %959 = vmatprep.subr.mxu0 0.0
        %960 = vmatpush1.msra.mxu0 0.0
        %961 = vmatprep.subr.mxu0 0.0
        %962 = vmatpush1.msra.mxu0 0.0
        %963 = vmatprep.subr.mxu0 0.0
        %964 = vmatpush1.msra.mxu0 0.0
        %965 = vmatprep.subr.mxu0 0.0
        %966 = vmatpush1.msra.mxu0 0.0
        %967 = vmatprep.subr.mxu0 0.0
        %968 = vmatpush1.msra.mxu0 0.0
        %969 = vmatprep.subr.mxu0 0.0
        %970 = vmatpush1.msra.mxu0 0.0
        %971 = vmatprep.subr.mxu0 0.0
        %972 = vmatpush1.msra.mxu0 0.0
        %973 = vmatprep.subr.mxu0 0.0
        %974 = vmatpush1.msra.mxu0 0.0
        %975 = vmatprep.subr.mxu0 0.0
        %976 = vmatpush1.msra.mxu0 0.0
        %977 = vmatprep.subr.mxu0 0.0
        %978 = vmatpush1.msra.mxu0 0.0
        %979 = vmatprep.subr.mxu0 0.0
        %980 = vmatpush1.msra.mxu0 0.0
        %981 = vmatprep.subr.mxu0 0.0
        %982 = vmatpush1.msra.mxu0 0.0
        %983 = vmatprep.subr.mxu0 0.0
        %984 = vmatpush1.msra.mxu0 0.0
        %985 = vmatprep.subr.mxu0 0.0
        %986 = vmatpush1.msra.mxu0 0.0
        %987 = vmatprep.subr.mxu0 0.0
        %988 = vmatpush1.msra.mxu0 0.0
        %989 = vmatprep.subr.mxu0 0.0
        %990 = vmatpush1.msra.mxu0 0.0
        %991 = vmatprep.subr.mxu0 0.0
        %992 = vmatpush1.msra.mxu0 0.0
        %993 = vmatprep.subr.mxu0 0.0
        %994 = vmatpush1.msra.mxu0 0.0
        %995 = vmatprep.subr.mxu0 0.0
        %996 = vmatpush1.msra.mxu0 0.0
        %997 = vmatprep.subr.mxu0 0.0
        %998 = vmatpush1.msra.mxu0 0.0
        %999 = vmatprep.subr.mxu0 0.0
        %1000 = vmatpush1.msra.mxu0 0.0
        %1001 = vmatprep.subr.mxu0 0.0
        %1002 = vmatpush1.msra.mxu0 0.0
        %1003 = vmatprep.subr.mxu0 0.0
        %1004 = vmatpush1.msra.mxu0 0.0
        %1005 = vmatprep.mubr.f32.mxu0 0.0
        %1006 = vmatmul.mubr.f32.gmra.mrb[0].mxu0 %v936
        %v1007 = vpop.f32.mrb[0].mxu0
        %v1008 = vadd.f32 0.0, %v1007
        %v1009 = vpop.f32.mrb[0].mxu0
        %1010 = vmatprep.mubr.f32.mxu0 0.0
        %1011 = vmatmul.mubr.f32.gmra.mrb[0].mxu0 %v939
        %v1012 = vpop.f32.mrb[0].mxu0
        %v1013 = vadd.f32 0.0, %v1012
        %v1014 = vpop.f32.mrb[0].mxu0
        %1015 = vdwg.mxu0
        %s1016 = scalar_lea.vmem %s3, 16
        %v1017 = vld [vmem:[%s1016] sm:$0xff]
        %v1018 = vld [vmem:[%s1016 + $0x8] sm:$0xf]
        %v1020 = vsel %vm934, %v1017, 0
        %v1023 = vsel %vm934, %v1018, 0
        %1025 = vmatprep.subr.mxu0 0.0
        %1026 = vmatpush1.msra.mxu0 %v926
        %1027 = vmatprep.subr.mxu0 0.0
        %1028 = vmatpush1.msra.mxu0 %v927
        %1029 = vmatprep.subr.mxu0 0.0
        %1030 = vmatpush1.msra.mxu0 %v928
        %1031 = vmatprep.subr.mxu0 0.0
        %1032 = vmatpush1.msra.mxu0 %v929
        %1033 = vmatprep.subr.mxu0 0.0
        %1034 = vmatpush1.msra.mxu0 %v930
        %1035 = vmatprep.subr.mxu0 0.0
        %1036 = vmatpush1.msra.mxu0 %v931
        %1037 = vmatprep.subr.mxu0 0.0
        %1038 = vmatpush1.msra.mxu0 0.0
        %1039 = vmatprep.subr.mxu0 0.0
        %1040 = vmatpush1.msra.mxu0 0.0
        %1041 = vmatprep.subr.mxu0 0.0
        %1042 = vmatpush1.msra.mxu0 0.0
        %1043 = vmatprep.subr.mxu0 0.0
        %1044 = vmatpush1.msra.mxu0 0.0
        %1045 = vmatprep.subr.mxu0 0.0
        %1046 = vmatpush1.msra.mxu0 0.0
        %1047 = vmatprep.subr.mxu0 0.0
        %1048 = vmatpush1.msra.mxu0 0.0
        %1049 = vmatprep.subr.mxu0 0.0
        %1050 = vmatpush1.msra.mxu0 0.0
        %1051 = vmatprep.subr.mxu0 0.0
        %1052 = vmatpush1.msra.mxu0 0.0
        %1053 = vmatprep.subr.mxu0 0.0
        %1054 = vmatpush1.msra.mxu0 0.0
        %1055 = vmatprep.subr.mxu0 0.0
        %1056 = vmatpush1.msra.mxu0 0.0
        %1057 = vmatprep.subr.mxu0 0.0
        %1058 = vmatpush1.msra.mxu0 0.0
        %1059 = vmatprep.subr.mxu0 0.0
        %1060 = vmatpush1.msra.mxu0 0.0
        %1061 = vmatprep.subr.mxu0 0.0
        %1062 = vmatpush1.msra.mxu0 0.0
        %1063 = vmatprep.subr.mxu0 0.0
        %1064 = vmatpush1.msra.mxu0 0.0
        %1065 = vmatprep.subr.mxu0 0.0
        %1066 = vmatpush1.msra.mxu0 0.0
        %1067 = vmatprep.subr.mxu0 0.0
        %1068 = vmatpush1.msra.mxu0 0.0
        %1069 = vmatprep.subr.mxu0 0.0
        %1070 = vmatpush1.msra.mxu0 0.0
        %1071 = vmatprep.subr.mxu0 0.0
        %1072 = vmatpush1.msra.mxu0 0.0
        %1073 = vmatprep.subr.mxu0 0.0
        %1074 = vmatpush1.msra.mxu0 0.0
        %1075 = vmatprep.subr.mxu0 0.0
        %1076 = vmatpush1.msra.mxu0 0.0
        %1077 = vmatprep.subr.mxu0 0.0
        %1078 = vmatpush1.msra.mxu0 0.0
        %1079 = vmatprep.subr.mxu0 0.0
        %1080 = vmatpush1.msra.mxu0 0.0
        %1081 = vmatprep.subr.mxu0 0.0
        %1082 = vmatpush1.msra.mxu0 0.0
        %1083 = vmatprep.subr.mxu0 0.0
        %1084 = vmatpush1.msra.mxu0 0.0
        %1085 = vmatprep.subr.mxu0 0.0
        %1086 = vmatpush1.msra.mxu0 0.0
        %1087 = vmatprep.subr.mxu0 0.0
        %1088 = vmatpush1.msra.mxu0 0.0
        %1089 = vmatprep.mubr.f32.mxu0 0.0
        %1090 = vmatmul.mubr.f32.gmra.mrb[0].mxu0 %v1020
        %v1091 = vpop.f32.mrb[0].mxu0
        %v1092 = vadd.f32 0.0, %v1091
        %v1093 = vpop.f32.mrb[0].mxu0
        %1094 = vmatprep.mubr.f32.mxu0 0.0
        %1095 = vmatmul.mubr.f32.gmra.mrb[0].mxu0 %v1023
        %v1096 = vpop.f32.mrb[0].mxu0
        %v1097 = vadd.f32 0.0, %v1096
        %v1098 = vpop.f32.mrb[0].mxu0
        %1099 = vdwg.mxu0
        %v1100 = vmax.f32 %v1008, %v1092
        %v1101 = vmax.f32 %v1013, %v1097
        %s1102 = scalar_lea.vmem %s3, 32
        %v1103 = vld [vmem:[%s1102] sm:$0xff]
        %v1104 = vld [vmem:[%s1102 + $0x8] sm:$0xf]
        %v1106 = vsel %vm934, %v1103, 0
        %v1109 = vsel %vm934, %v1104, 0
        %1111 = vmatprep.subr.mxu0 0.0
        %1112 = vmatpush1.msra.mxu0 %v926
        %1113 = vmatprep.subr.mxu0 0.0
        %1114 = vmatpush1.msra.mxu0 %v927
        %1115 = vmatprep.subr.mxu0 0.0
        %1116 = vmatpush1.msra.mxu0 %v928
        %1117 = vmatprep.subr.mxu0 0.0
        %1118 = vmatpush1.msra.mxu0 %v929
        %1119 = vmatprep.subr.mxu0 0.0
        %1120 = vmatpush1.msra.mxu0 %v930
        %1121 = vmatprep.subr.mxu0 0.0
        %1122 = vmatpush1.msra.mxu0 %v931
        %1123 = vmatprep.subr.mxu0 0.0
        %1124 = vmatpush1.msra.mxu0 0.0
        %1125 = vmatprep.subr.mxu0 0.0
        %1126 = vmatpush1.msra.mxu0 0.0
        %1127 = vmatprep.subr.mxu0 0.0
        %1128 = vmatpush1.msra.mxu0 0.0
        %1129 = vmatprep.subr.mxu0 0.0
        %1130 = vmatpush1.msra.mxu0 0.0
        %1131 = vmatprep.subr.mxu0 0.0
        %1132 = vmatpush1.msra.mxu0 0.0
        %1133 = vmatprep.subr.mxu0 0.0
        %1134 = vmatpush1.msra.mxu0 0.0
        %1135 = vmatprep.subr.mxu0 0.0
        %1136 = vmatpush1.msra.mxu0 0.0
        %1137 = vmatprep.subr.mxu0 0.0
        %1138 = vmatpush1.msra.mxu0 0.0
        %1139 = vmatprep.subr.mxu0 0.0
        %1140 = vmatpush1.msra.mxu0 0.0
        %1141 = vmatprep.subr.mxu0 0.0
        %1142 = vmatpush1.msra.mxu0 0.0
        %1143 = vmatprep.subr.mxu0 0.0
        %1144 = vmatpush1.msra.mxu0 0.0
        %1145 = vmatprep.subr.mxu0 0.0
        %1146 = vmatpush1.msra.mxu0 0.0
        %1147 = vmatprep.subr.mxu0 0.0
        %1148 = vmatpush1.msra.mxu0 0.0
        %1149 = vmatprep.subr.mxu0 0.0
        %1150 = vmatpush1.msra.mxu0 0.0
        %1151 = vmatprep.subr.mxu0 0.0
        %1152 = vmatpush1.msra.mxu0 0.0
        %1153 = vmatprep.subr.mxu0 0.0
        %1154 = vmatpush1.msra.mxu0 0.0
        %1155 = vmatprep.subr.mxu0 0.0
        %1156 = vmatpush1.msra.mxu0 0.0
        %1157 = vmatprep.subr.mxu0 0.0
        %1158 = vmatpush1.msra.mxu0 0.0
        %1159 = vmatprep.subr.mxu0 0.0
        %1160 = vmatpush1.msra.mxu0 0.0
        %1161 = vmatprep.subr.mxu0 0.0
        %1162 = vmatpush1.msra.mxu0 0.0
        %1163 = vmatprep.subr.mxu0 0.0
        %1164 = vmatpush1.msra.mxu0 0.0
        %1165 = vmatprep.subr.mxu0 0.0
        %1166 = vmatpush1.msra.mxu0 0.0
        %1167 = vmatprep.subr.mxu0 0.0
        %1168 = vmatpush1.msra.mxu0 0.0
        %1169 = vmatprep.subr.mxu0 0.0
        %1170 = vmatpush1.msra.mxu0 0.0
        %1171 = vmatprep.subr.mxu0 0.0
        %1172 = vmatpush1.msra.mxu0 0.0
        %1173 = vmatprep.subr.mxu0 0.0
        %1174 = vmatpush1.msra.mxu0 0.0
        %1175 = vmatprep.mubr.f32.mxu0 0.0
        %1176 = vmatmul.mubr.f32.gmra.mrb[0].mxu0 %v1106
        %v1177 = vpop.f32.mrb[0].mxu0
        %v1178 = vadd.f32 0.0, %v1177
        %v1179 = vpop.f32.mrb[0].mxu0
        %1180 = vmatprep.mubr.f32.mxu0 0.0
        %1181 = vmatmul.mubr.f32.gmra.mrb[0].mxu0 %v1109
        %v1182 = vpop.f32.mrb[0].mxu0
        %v1183 = vadd.f32 0.0, %v1182
        %v1184 = vpop.f32.mrb[0].mxu0
        %1185 = vdwg.mxu0
        %v1186 = vmax.f32 %v1100, %v1178
        %v1187 = vmax.f32 %v1101, %v1183
        %s1188 = scalar_lea.vmem %s3, 48
        %v1189 = vld [vmem:[%s1188] sm:$0xff]
        %v1190 = vld [vmem:[%s1188 + $0x8] sm:$0xf]
        %v1192 = vsel %vm934, %v1189, 0
        %v1195 = vsel %vm934, %v1190, 0
        %1197 = vmatprep.subr.mxu0 0.0
        %1198 = vmatpush1.msra.mxu0 %v926
        %1199 = vmatprep.subr.mxu0 0.0
        %1200 = vmatpush1.msra.mxu0 %v927
        %1201 = vmatprep.subr.mxu0 0.0
        %1202 = vmatpush1.msra.mxu0 %v928
        %1203 = vmatprep.subr.mxu0 0.0
        %1204 = vmatpush1.msra.mxu0 %v929
        %1205 = vmatprep.subr.mxu0 0.0
        %1206 = vmatpush1.msra.mxu0 %v930
        %1207 = vmatprep.subr.mxu0 0.0
        %1208 = vmatpush1.msra.mxu0 %v931
        %1209 = vmatprep.subr.mxu0 0.0
        %1210 = vmatpush1.msra.mxu0 0.0
        %1211 = vmatprep.subr.mxu0 0.0
        %1212 = vmatpush1.msra.mxu0 0.0
        %1213 = vmatprep.subr.mxu0 0.0
        %1214 = vmatpush1.msra.mxu0 0.0
        %1215 = vmatprep.subr.mxu0 0.0
        %1216 = vmatpush1.msra.mxu0 0.0
        %1217 = vmatprep.subr.mxu0 0.0
        %1218 = vmatpush1.msra.mxu0 0.0
        %1219 = vmatprep.subr.mxu0 0.0
        %1220 = vmatpush1.msra.mxu0 0.0
        %1221 = vmatprep.subr.mxu0 0.0
        %1222 = vmatpush1.msra.mxu0 0.0
        %1223 = vmatprep.subr.mxu0 0.0
        %1224 = vmatpush1.msra.mxu0 0.0
        %1225 = vmatprep.subr.mxu0 0.0
        %1226 = vmatpush1.msra.mxu0 0.0
        %1227 = vmatprep.subr.mxu0 0.0
        %1228 = vmatpush1.msra.mxu0 0.0
        %1229 = vmatprep.subr.mxu0 0.0
        %1230 = vmatpush1.msra.mxu0 0.0
        %1231 = vmatprep.subr.mxu0 0.0
        %1232 = vmatpush1.msra.mxu0 0.0
        %1233 = vmatprep.subr.mxu0 0.0
        %1234 = vmatpush1.msra.mxu0 0.0
        %1235 = vmatprep.subr.mxu0 0.0
        %1236 = vmatpush1.msra.mxu0 0.0
        %1237 = vmatprep.subr.mxu0 0.0
        %1238 = vmatpush1.msra.mxu0 0.0
        %1239 = vmatprep.subr.mxu0 0.0
        %1240 = vmatpush1.msra.mxu0 0.0
        %1241 = vmatprep.subr.mxu0 0.0
        %1242 = vmatpush1.msra.mxu0 0.0
        %1243 = vmatprep.subr.mxu0 0.0
        %1244 = vmatpush1.msra.mxu0 0.0
        %1245 = vmatprep.subr.mxu0 0.0
        %1246 = vmatpush1.msra.mxu0 0.0
        %1247 = vmatprep.subr.mxu0 0.0
        %1248 = vmatpush1.msra.mxu0 0.0
        %1249 = vmatprep.subr.mxu0 0.0
        %1250 = vmatpush1.msra.mxu0 0.0
        %1251 = vmatprep.subr.mxu0 0.0
        %1252 = vmatpush1.msra.mxu0 0.0
        %1253 = vmatprep.subr.mxu0 0.0
        %1254 = vmatpush1.msra.mxu0 0.0
        %1255 = vmatprep.subr.mxu0 0.0
        %1256 = vmatpush1.msra.mxu0 0.0
        %1257 = vmatprep.subr.mxu0 0.0
        %1258 = vmatpush1.msra.mxu0 0.0
        %1259 = vmatprep.subr.mxu0 0.0
        %1260 = vmatpush1.msra.mxu0 0.0
        %1261 = vmatprep.mubr.f32.mxu0 0.0
        %1262 = vmatmul.mubr.f32.gmra.mrb[0].mxu0 %v1192
        %v1263 = vpop.f32.mrb[0].mxu0
        %v1264 = vadd.f32 0.0, %v1263
        %v1265 = vpop.f32.mrb[0].mxu0
        %1266 = vmatprep.mubr.f32.mxu0 0.0
        %1267 = vmatmul.mubr.f32.gmra.mrb[0].mxu0 %v1195
        %v1268 = vpop.f32.mrb[0].mxu0
        %v1269 = vadd.f32 0.0, %v1268
        %v1270 = vpop.f32.mrb[0].mxu0
        %1271 = vdwg.mxu0
        %v1272 = vmax.f32 %v1186, %v1264
        %v1273 = vmax.f32 %v1187, %v1269
        %v1274 = vld [vmem:[%s4] sm:$0xff]
        %v1275 = vld [vmem:[%s4 + $0x8] sm:$0xff]
        %v1276 = vld [vmem:[%s4 + $0x10] sm:$0xff]
        %v1277 = vld [vmem:[%s4 + $0x18] sm:$0xff]
        %v1278 = vld [vmem:[%s4 + $0x20] sm:$0xff]
        %v1279 = vld [vmem:[%s4 + $0x28] sm:$0xff]
        %v1280 = vld [vmem:[%s4 + $0x30] sm:$0xff]
        %v1281 = vld [vmem:[%s4 + $0x38] sm:$0xff]
        %v1282 = vld [vmem:[%s4 + $0x40] sm:$0xff]
        %v1283 = vld [vmem:[%s4 + $0x48] sm:$0xff]
        %v1284 = vld [vmem:[%s4 + $0x50] sm:$0xff]
        %v1285 = vld [vmem:[%s4 + $0x58] sm:$0xff]
        %v1286 = vld [vmem:[%s4 + $0x60] sm:$0xff]
        %v1287 = vld [vmem:[%s4 + $0x68] sm:$0xff]
        %v1288 = vld [vmem:[%s4 + $0x70] sm:$0xff]
        %v1289 = vld [vmem:[%s4 + $0x78] sm:$0xff]
        %1290 = vmatprep.subr.mxu0 0.0
        %1291 = vmatpush1.msra.mxu0 %v1274
        %1292 = vmatprep.subr.mxu0 0.0
        %1293 = vmatpush1.msra.mxu0 %v1275
        %1294 = vmatprep.subr.mxu0 0.0
        %1295 = vmatpush1.msra.mxu0 %v1276
        %1296 = vmatprep.subr.mxu0 0.0
        %1297 = vmatpush1.msra.mxu0 %v1277
        %1298 = vmatprep.subr.mxu0 0.0
        %1299 = vmatpush1.msra.mxu0 %v1278
        %1300 = vmatprep.subr.mxu0 0.0
        %1301 = vmatpush1.msra.mxu0 %v1279
        %1302 = vmatprep.subr.mxu0 0.0
        %1303 = vmatpush1.msra.mxu0 %v1280
        %1304 = vmatprep.subr.mxu0 0.0
        %1305 = vmatpush1.msra.mxu0 %v1281
        %1306 = vmatprep.subr.mxu0 0.0
        %1307 = vmatpush1.msra.mxu0 %v1282
        %1308 = vmatprep.subr.mxu0 0.0
        %1309 = vmatpush1.msra.mxu0 %v1283
        %1310 = vmatprep.subr.mxu0 0.0
        %1311 = vmatpush1.msra.mxu0 %v1284
        %1312 = vmatprep.subr.mxu0 0.0
        %1313 = vmatpush1.msra.mxu0 %v1285
        %1314 = vmatprep.subr.mxu0 0.0
        %1315 = vmatpush1.msra.mxu0 %v1286
        %1316 = vmatprep.subr.mxu0 0.0
        %1317 = vmatpush1.msra.mxu0 %v1287
        %1318 = vmatprep.subr.mxu0 0.0
        %1319 = vmatpush1.msra.mxu0 %v1288
        %1320 = vmatprep.subr.mxu0 0.0
        %1321 = vmatpush1.msra.mxu0 %v1289
        %1322 = vmatprep.subr.mxu0 0.0
        %1323 = vmatpush1.msra.mxu0 0.0
        %1324 = vmatprep.subr.mxu0 0.0
        %1325 = vmatpush1.msra.mxu0 0.0
        %1326 = vmatprep.subr.mxu0 0.0
        %1327 = vmatpush1.msra.mxu0 0.0
        %1328 = vmatprep.subr.mxu0 0.0
        %1329 = vmatpush1.msra.mxu0 0.0
        %1330 = vmatprep.subr.mxu0 0.0
        %1331 = vmatpush1.msra.mxu0 0.0
        %1332 = vmatprep.subr.mxu0 0.0
        %1333 = vmatpush1.msra.mxu0 0.0
        %1334 = vmatprep.subr.mxu0 0.0
        %1335 = vmatpush1.msra.mxu0 0.0
        %1336 = vmatprep.subr.mxu0 0.0
        %1337 = vmatpush1.msra.mxu0 0.0
        %1338 = vmatprep.subr.mxu0 0.0
        %1339 = vmatpush1.msra.mxu0 0.0
        %1340 = vmatprep.subr.mxu0 0.0
        %1341 = vmatpush1.msra.mxu0 0.0
        %1342 = vmatprep.subr.mxu0 0.0
        %1343 = vmatpush1.msra.mxu0 0.0
        %1344 = vmatprep.subr.mxu0 0.0
        %1345 = vmatpush1.msra.mxu0 0.0
        %1346 = vmatprep.subr.mxu0 0.0
        %1347 = vmatpush1.msra.mxu0 0.0
        %1348 = vmatprep.subr.mxu0 0.0
        %1349 = vmatpush1.msra.mxu0 0.0
        %1350 = vmatprep.subr.mxu0 0.0
        %1351 = vmatpush1.msra.mxu0 0.0
        %1352 = vmatprep.subr.mxu0 0.0
        %1353 = vmatpush1.msra.mxu0 0.0
        %1354 = vmatprep.mubr.f32.mxu0 0.0
        %1355 = vmatmul.mubr.f32.gmra.mrb[0].mxu0 %v1272
        %v1356 = vpop.f32.mrb[0].mxu0
        %v1357 = vadd.f32 0.0, %v1356
        %v1358 = vpop.f32.mrb[0].mxu0
        %1359 = vmatprep.mubr.f32.mxu0 0.0
        %1360 = vmatmul.mubr.f32.gmra.mrb[0].mxu0 %v1273
        %v1361 = vpop.f32.mrb[0].mxu0
        %v1362 = vadd.f32 0.0, %v1361
        %v1363 = vpop.f32.mrb[0].mxu0
        %1364 = vdwg.mxu0
        %s1365 = scalar_lea.vmem %s4, 128
        %v1366 = vld [vmem:[%s1365] sm:$0xff]
        %v1367 = vld [vmem:[%s1365 + $0x8] sm:$0xff]
        %v1368 = vld [vmem:[%s1365 + $0x10] sm:$0xff]
        %v1369 = vld [vmem:[%s1365 + $0x18] sm:$0xff]
        %v1370 = vld [vmem:[%s1365 + $0x20] sm:$0xff]
        %v1371 = vld [vmem:[%s1365 + $0x28] sm:$0xff]
        %v1372 = vld [vmem:[%s1365 + $0x30] sm:$0xff]
        %v1373 = vld [vmem:[%s1365 + $0x38] sm:$0xff]
        %v1374 = vld [vmem:[%s1365 + $0x40] sm:$0xff]
        %v1375 = vld [vmem:[%s1365 + $0x48] sm:$0xff]
        %v1376 = vld [vmem:[%s1365 + $0x50] sm:$0xff]
        %v1377 = vld [vmem:[%s1365 + $0x58] sm:$0xff]
        %v1378 = vld [vmem:[%s1365 + $0x60] sm:$0xff]
        %v1379 = vld [vmem:[%s1365 + $0x68] sm:$0xff]
        %v1380 = vld [vmem:[%s1365 + $0x70] sm:$0xff]
        %v1381 = vld [vmem:[%s1365 + $0x78] sm:$0xff]
        %1382 = vmatprep.subr.mxu0 0.0
        %1383 = vmatpush1.msra.mxu0 %v1366
        %1384 = vmatprep.subr.mxu0 0.0
        %1385 = vmatpush1.msra.mxu0 %v1367
        %1386 = vmatprep.subr.mxu0 0.0
        %1387 = vmatpush1.msra.mxu0 %v1368
        %1388 = vmatprep.subr.mxu0 0.0
        %1389 = vmatpush1.msra.mxu0 %v1369
        %1390 = vmatprep.subr.mxu0 0.0
        %1391 = vmatpush1.msra.mxu0 %v1370
        %1392 = vmatprep.subr.mxu0 0.0
        %1393 = vmatpush1.msra.mxu0 %v1371
        %1394 = vmatprep.subr.mxu0 0.0
        %1395 = vmatpush1.msra.mxu0 %v1372
        %1396 = vmatprep.subr.mxu0 0.0
        %1397 = vmatpush1.msra.mxu0 %v1373
        %1398 = vmatprep.subr.mxu0 0.0
        %1399 = vmatpush1.msra.mxu0 %v1374
        %1400 = vmatprep.subr.mxu0 0.0
        %1401 = vmatpush1.msra.mxu0 %v1375
        %1402 = vmatprep.subr.mxu0 0.0
        %1403 = vmatpush1.msra.mxu0 %v1376
        %1404 = vmatprep.subr.mxu0 0.0
        %1405 = vmatpush1.msra.mxu0 %v1377
        %1406 = vmatprep.subr.mxu0 0.0
        %1407 = vmatpush1.msra.mxu0 %v1378
        %1408 = vmatprep.subr.mxu0 0.0
        %1409 = vmatpush1.msra.mxu0 %v1379
        %1410 = vmatprep.subr.mxu0 0.0
        %1411 = vmatpush1.msra.mxu0 %v1380
        %1412 = vmatprep.subr.mxu0 0.0
        %1413 = vmatpush1.msra.mxu0 %v1381
        %1414 = vmatprep.subr.mxu0 0.0
        %1415 = vmatpush1.msra.mxu0 0.0
        %1416 = vmatprep.subr.mxu0 0.0
        %1417 = vmatpush1.msra.mxu0 0.0
        %1418 = vmatprep.subr.mxu0 0.0
        %1419 = vmatpush1.msra.mxu0 0.0
        %1420 = vmatprep.subr.mxu0 0.0
        %1421 = vmatpush1.msra.mxu0 0.0
        %1422 = vmatprep.subr.mxu0 0.0
        %1423 = vmatpush1.msra.mxu0 0.0
        %1424 = vmatprep.subr.mxu0 0.0
        %1425 = vmatpush1.msra.mxu0 0.0
        %1426 = vmatprep.subr.mxu0 0.0
        %1427 = vmatpush1.msra.mxu0 0.0
        %1428 = vmatprep.subr.mxu0 0.0
        %1429 = vmatpush1.msra.mxu0 0.0
        %1430 = vmatprep.subr.mxu0 0.0
        %1431 = vmatpush1.msra.mxu0 0.0
        %1432 = vmatprep.subr.mxu0 0.0
        %1433 = vmatpush1.msra.mxu0 0.0
        %1434 = vmatprep.subr.mxu0 0.0
        %1435 = vmatpush1.msra.mxu0 0.0
        %1436 = vmatprep.subr.mxu0 0.0
        %1437 = vmatpush1.msra.mxu0 0.0
        %1438 = vmatprep.subr.mxu0 0.0
        %1439 = vmatpush1.msra.mxu0 0.0
        %1440 = vmatprep.subr.mxu0 0.0
        %1441 = vmatpush1.msra.mxu0 0.0
        %1442 = vmatprep.subr.mxu0 0.0
        %1443 = vmatpush1.msra.mxu0 0.0
        %1444 = vmatprep.subr.mxu0 0.0
        %1445 = vmatpush1.msra.mxu0 0.0
        %1446 = vmatprep.mubr.f32.mxu0 0.0
        %1447 = vmatmul.mubr.f32.gmra.mrb[0].mxu0 %v1272
        %v1448 = vpop.f32.mrb[0].mxu0
        %v1449 = vadd.f32 0.0, %v1448
        %v1450 = vpop.f32.mrb[0].mxu0
        %1451 = vmatprep.mubr.f32.mxu0 0.0
        %1452 = vmatmul.mubr.f32.gmra.mrb[0].mxu0 %v1273
        %v1453 = vpop.f32.mrb[0].mxu0
        %v1454 = vadd.f32 0.0, %v1453
        %v1455 = vpop.f32.mrb[0].mxu0
        %1456 = vdwg.mxu0
        %v1457 = vmax.f32 %v1357, %v1449
        %v1458 = vmax.f32 %v1362, %v1454
        %s1459 = scalar_lea.vmem %s4, 256
        %v1460 = vld [vmem:[%s1459] sm:$0xff]
        %v1461 = vld [vmem:[%s1459 + $0x8] sm:$0xff]
        %v1462 = vld [vmem:[%s1459 + $0x10] sm:$0xff]
        %v1463 = vld [vmem:[%s1459 + $0x18] sm:$0xff]
        %v1464 = vld [vmem:[%s1459 + $0x20] sm:$0xff]
        %v1465 = vld [vmem:[%s1459 + $0x28] sm:$0xff]
        %v1466 = vld [vmem:[%s1459 + $0x30] sm:$0xff]
        %v1467 = vld [vmem:[%s1459 + $0x38] sm:$0xff]
        %v1468 = vld [vmem:[%s1459 + $0x40] sm:$0xff]
        %v1469 = vld [vmem:[%s1459 + $0x48] sm:$0xff]
        %v1470 = vld [vmem:[%s1459 + $0x50] sm:$0xff]
        %v1471 = vld [vmem:[%s1459 + $0x58] sm:$0xff]
        %v1472 = vld [vmem:[%s1459 + $0x60] sm:$0xff]
        %v1473 = vld [vmem:[%s1459 + $0x68] sm:$0xff]
        %v1474 = vld [vmem:[%s1459 + $0x70] sm:$0xff]
        %v1475 = vld [vmem:[%s1459 + $0x78] sm:$0xff]
        %1476 = vmatprep.subr.mxu0 0.0
        %1477 = vmatpush1.msra.mxu0 %v1460
        %1478 = vmatprep.subr.mxu0 0.0
        %1479 = vmatpush1.msra.mxu0 %v1461
        %1480 = vmatprep.subr.mxu0 0.0
        %1481 = vmatpush1.msra.mxu0 %v1462
        %1482 = vmatprep.subr.mxu0 0.0
        %1483 = vmatpush1.msra.mxu0 %v1463
        %1484 = vmatprep.subr.mxu0 0.0
        %1485 = vmatpush1.msra.mxu0 %v1464
        %1486 = vmatprep.subr.mxu0 0.0
        %1487 = vmatpush1.msra.mxu0 %v1465
        %1488 = vmatprep.subr.mxu0 0.0
        %1489 = vmatpush1.msra.mxu0 %v1466
        %1490 = vmatprep.subr.mxu0 0.0
        %1491 = vmatpush1.msra.mxu0 %v1467
        %1492 = vmatprep.subr.mxu0 0.0
        %1493 = vmatpush1.msra.mxu0 %v1468
        %1494 = vmatprep.subr.mxu0 0.0
        %1495 = vmatpush1.msra.mxu0 %v1469
        %1496 = vmatprep.subr.mxu0 0.0
        %1497 = vmatpush1.msra.mxu0 %v1470
        %1498 = vmatprep.subr.mxu0 0.0
        %1499 = vmatpush1.msra.mxu0 %v1471
        %1500 = vmatprep.subr.mxu0 0.0
        %1501 = vmatpush1.msra.mxu0 %v1472
        %1502 = vmatprep.subr.mxu0 0.0
        %1503 = vmatpush1.msra.mxu0 %v1473
        %1504 = vmatprep.subr.mxu0 0.0
        %1505 = vmatpush1.msra.mxu0 %v1474
        %1506 = vmatprep.subr.mxu0 0.0
        %1507 = vmatpush1.msra.mxu0 %v1475
        %1508 = vmatprep.subr.mxu0 0.0
        %1509 = vmatpush1.msra.mxu0 0.0
        %1510 = vmatprep.subr.mxu0 0.0
        %1511 = vmatpush1.msra.mxu0 0.0
        %1512 = vmatprep.subr.mxu0 0.0
        %1513 = vmatpush1.msra.mxu0 0.0
        %1514 = vmatprep.subr.mxu0 0.0
        %1515 = vmatpush1.msra.mxu0 0.0
        %1516 = vmatprep.subr.mxu0 0.0
        %1517 = vmatpush1.msra.mxu0 0.0
        %1518 = vmatprep.subr.mxu0 0.0
        %1519 = vmatpush1.msra.mxu0 0.0
        %1520 = vmatprep.subr.mxu0 0.0
        %1521 = vmatpush1.msra.mxu0 0.0
        %1522 = vmatprep.subr.mxu0 0.0
        %1523 = vmatpush1.msra.mxu0 0.0
        %1524 = vmatprep.subr.mxu0 0.0
        %1525 = vmatpush1.msra.mxu0 0.0
        %1526 = vmatprep.subr.mxu0 0.0
        %1527 = vmatpush1.msra.mxu0 0.0
        %1528 = vmatprep.subr.mxu0 0.0
        %1529 = vmatpush1.msra.mxu0 0.0
        %1530 = vmatprep.subr.mxu0 0.0
        %1531 = vmatpush1.msra.mxu0 0.0
        %1532 = vmatprep.subr.mxu0 0.0
        %1533 = vmatpush1.msra.mxu0 0.0
        %1534 = vmatprep.subr.mxu0 0.0
        %1535 = vmatpush1.msra.mxu0 0.0
        %1536 = vmatprep.subr.mxu0 0.0
        %1537 = vmatpush1.msra.mxu0 0.0
        %1538 = vmatprep.subr.mxu0 0.0
        %1539 = vmatpush1.msra.mxu0 0.0
        %1540 = vmatprep.mubr.f32.mxu0 0.0
        %1541 = vmatmul.mubr.f32.gmra.mrb[0].mxu0 %v1272
        %v1542 = vpop.f32.mrb[0].mxu0
        %v1543 = vadd.f32 0.0, %v1542
        %v1544 = vpop.f32.mrb[0].mxu0
        %1545 = vmatprep.mubr.f32.mxu0 0.0
        %1546 = vmatmul.mubr.f32.gmra.mrb[0].mxu0 %v1273
        %v1547 = vpop.f32.mrb[0].mxu0
        %v1548 = vadd.f32 0.0, %v1547
        %v1549 = vpop.f32.mrb[0].mxu0
        %1550 = vdwg.mxu0
        %v1551 = vmax.f32 %v1457, %v1543
        %v1552 = vmax.f32 %v1458, %v1548
        %s1553 = scalar_lea.vmem %s4, 384
        %v1554 = vld [vmem:[%s1553] sm:$0xff]
        %v1555 = vld [vmem:[%s1553 + $0x8] sm:$0xff]
        %v1556 = vld [vmem:[%s1553 + $0x10] sm:$0xff]
        %v1557 = vld [vmem:[%s1553 + $0x18] sm:$0xff]
        %v1558 = vld [vmem:[%s1553 + $0x20] sm:$0xff]
        %v1559 = vld [vmem:[%s1553 + $0x28] sm:$0xff]
        %v1560 = vld [vmem:[%s1553 + $0x30] sm:$0xff]
        %v1561 = vld [vmem:[%s1553 + $0x38] sm:$0xff]
        %v1562 = vld [vmem:[%s1553 + $0x40] sm:$0xff]
        %v1563 = vld [vmem:[%s1553 + $0x48] sm:$0xff]
        %v1564 = vld [vmem:[%s1553 + $0x50] sm:$0xff]
        %v1565 = vld [vmem:[%s1553 + $0x58] sm:$0xff]
        %v1566 = vld [vmem:[%s1553 + $0x60] sm:$0xff]
        %v1567 = vld [vmem:[%s1553 + $0x68] sm:$0xff]
        %v1568 = vld [vmem:[%s1553 + $0x70] sm:$0xff]
        %v1569 = vld [vmem:[%s1553 + $0x78] sm:$0xff]
        %1570 = vmatprep.subr.mxu0 0.0
        %1571 = vmatpush1.msra.mxu0 %v1554
        %1572 = vmatprep.subr.mxu0 0.0
        %1573 = vmatpush1.msra.mxu0 %v1555
        %1574 = vmatprep.subr.mxu0 0.0
        %1575 = vmatpush1.msra.mxu0 %v1556
        %1576 = vmatprep.subr.mxu0 0.0
        %1577 = vmatpush1.msra.mxu0 %v1557
        %1578 = vmatprep.subr.mxu0 0.0
        %1579 = vmatpush1.msra.mxu0 %v1558
        %1580 = vmatprep.subr.mxu0 0.0
        %1581 = vmatpush1.msra.mxu0 %v1559
        %1582 = vmatprep.subr.mxu0 0.0
        %1583 = vmatpush1.msra.mxu0 %v1560
        %1584 = vmatprep.subr.mxu0 0.0
        %1585 = vmatpush1.msra.mxu0 %v1561
        %1586 = vmatprep.subr.mxu0 0.0
        %1587 = vmatpush1.msra.mxu0 %v1562
        %1588 = vmatprep.subr.mxu0 0.0
        %1589 = vmatpush1.msra.mxu0 %v1563
        %1590 = vmatprep.subr.mxu0 0.0
        %1591 = vmatpush1.msra.mxu0 %v1564
        %1592 = vmatprep.subr.mxu0 0.0
        %1593 = vmatpush1.msra.mxu0 %v1565
        %1594 = vmatprep.subr.mxu0 0.0
        %1595 = vmatpush1.msra.mxu0 %v1566
        %1596 = vmatprep.subr.mxu0 0.0
        %1597 = vmatpush1.msra.mxu0 %v1567
        %1598 = vmatprep.subr.mxu0 0.0
        %1599 = vmatpush1.msra.mxu0 %v1568
        %1600 = vmatprep.subr.mxu0 0.0
        %1601 = vmatpush1.msra.mxu0 %v1569
        %1602 = vmatprep.subr.mxu0 0.0
        %1603 = vmatpush1.msra.mxu0 0.0
        %1604 = vmatprep.subr.mxu0 0.0
        %1605 = vmatpush1.msra.mxu0 0.0
        %1606 = vmatprep.subr.mxu0 0.0
        %1607 = vmatpush1.msra.mxu0 0.0
        %1608 = vmatprep.subr.mxu0 0.0
        %1609 = vmatpush1.msra.mxu0 0.0
        %1610 = vmatprep.subr.mxu0 0.0
        %1611 = vmatpush1.msra.mxu0 0.0
        %1612 = vmatprep.subr.mxu0 0.0
        %1613 = vmatpush1.msra.mxu0 0.0
        %1614 = vmatprep.subr.mxu0 0.0
        %1615 = vmatpush1.msra.mxu0 0.0
        %1616 = vmatprep.subr.mxu0 0.0
        %1617 = vmatpush1.msra.mxu0 0.0
        %1618 = vmatprep.subr.mxu0 0.0
        %1619 = vmatpush1.msra.mxu0 0.0
        %1620 = vmatprep.subr.mxu0 0.0
        %1621 = vmatpush1.msra.mxu0 0.0
        %1622 = vmatprep.subr.mxu0 0.0
        %1623 = vmatpush1.msra.mxu0 0.0
        %1624 = vmatprep.subr.mxu0 0.0
        %1625 = vmatpush1.msra.mxu0 0.0
        %1626 = vmatprep.subr.mxu0 0.0
        %1627 = vmatpush1.msra.mxu0 0.0
        %1628 = vmatprep.subr.mxu0 0.0
        %1629 = vmatpush1.msra.mxu0 0.0
        %1630 = vmatprep.subr.mxu0 0.0
        %1631 = vmatpush1.msra.mxu0 0.0
        %1632 = vmatprep.subr.mxu0 0.0
        %1633 = vmatpush1.msra.mxu0 0.0
        %1634 = vmatprep.mubr.f32.mxu0 0.0
        %1635 = vmatmul.mubr.f32.gmra.mrb[0].mxu0 %v1272
        %v1636 = vpop.f32.mrb[0].mxu0
        %v1637 = vadd.f32 0.0, %v1636
        %v1638 = vpop.f32.mrb[0].mxu0
        %1639 = vmatprep.mubr.f32.mxu0 0.0
        %1640 = vmatmul.mubr.f32.gmra.mrb[0].mxu0 %v1273
        %v1641 = vpop.f32.mrb[0].mxu0
        %v1642 = vadd.f32 0.0, %v1641
        %v1643 = vpop.f32.mrb[0].mxu0
        %1644 = vdwg.mxu0
        %v1645 = vmax.f32 %v1551, %v1637
        %v1646 = vmax.f32 %v1552, %v1642
        %v1647 = vld [vmem:[%s5] sm:$0xff]
        %v1648 = vld [vmem:[%s5 + $0x8] sm:$0xff]
        %v1649 = vld [vmem:[%s5 + $0x10] sm:$0xff]
        %v1650 = vld [vmem:[%s5 + $0x18] sm:$0xff]
        %s1651 = scalar_lea.vmem %s5, 32
        %v1652 = vld [vmem:[%s1651] sm:$0xff]
        %v1653 = vld [vmem:[%s1651 + $0x8] sm:$0xff]
        %v1654 = vld [vmem:[%s1651 + $0x10] sm:$0xff]
        %v1655 = vld [vmem:[%s1651 + $0x18] sm:$0xff]
        %1658 = vrot.lane.b32.xlu0 %v1645, 120
        %v1659 = vpop.permute.xlu0 %1658
        %1660 = vrot.lane.b32.xlu0 %v1646, 120
        %v1661 = vpop.permute.xlu0 %1660
        %vm1663 = vcmask 97280
        %v1665 = vsel %vm1663, %v1652, 0
        %v1668 = vsel %vm1663, %v1653, 0
        %v1671 = vsel %vm1663, %v1654, 0
        %v1674 = vsel %vm1663, %v1655, 0
        %vm1676 = vcmask 1043456
        %v1677 = vsel %vm1676, %v1661, 0
        %1679 = vmatprep.subr.mxu0 0.0
        %1680 = vmatpush1.msra.mxu0 %v1659
        %1681 = vmatprep.subr.mxu0 0.0
        %1682 = vmatpush1.msra.mxu0 %v1677
        %1683 = vmatprep.subr.mxu0 0.0
        %1684 = vmatpush1.msra.mxu0 0.0
        %1685 = vmatprep.subr.mxu0 0.0
        %1686 = vmatpush1.msra.mxu0 0.0
        %1687 = vmatprep.subr.mxu0 0.0
        %1688 = vmatpush1.msra.mxu0 0.0
        %1689 = vmatprep.subr.mxu0 0.0
        %1690 = vmatpush1.msra.mxu0 0.0
        %1691 = vmatprep.subr.mxu0 0.0
        %1692 = vmatpush1.msra.mxu0 0.0
        %1693 = vmatprep.subr.mxu0 0.0
        %1694 = vmatpush1.msra.mxu0 0.0
        %1695 = vmatprep.subr.mxu0 0.0
        %1696 = vmatpush1.msra.mxu0 0.0
        %1697 = vmatprep.subr.mxu0 0.0
        %1698 = vmatpush1.msra.mxu0 0.0
        %1699 = vmatprep.subr.mxu0 0.0
        %1700 = vmatpush1.msra.mxu0 0.0
        %1701 = vmatprep.subr.mxu0 0.0
        %1702 = vmatpush1.msra.mxu0 0.0
        %1703 = vmatprep.subr.mxu0 0.0
        %1704 = vmatpush1.msra.mxu0 0.0
        %1705 = vmatprep.subr.mxu0 0.0
        %1706 = vmatpush1.msra.mxu0 0.0
        %1707 = vmatprep.subr.mxu0 0.0
        %1708 = vmatpush1.msra.mxu0 0.0
        %1709 = vmatprep.subr.mxu0 0.0
        %1710 = vmatpush1.msra.mxu0 0.0
        %1711 = vmatprep.subr.mxu0 0.0
        %1712 = vmatpush1.msra.mxu0 0.0
        %1713 = vmatprep.subr.mxu0 0.0
        %1714 = vmatpush1.msra.mxu0 0.0
        %1715 = vmatprep.subr.mxu0 0.0
        %1716 = vmatpush1.msra.mxu0 0.0
        %1717 = vmatprep.subr.mxu0 0.0
        %1718 = vmatpush1.msra.mxu0 0.0
        %1719 = vmatprep.subr.mxu0 0.0
        %1720 = vmatpush1.msra.mxu0 0.0
        %1721 = vmatprep.subr.mxu0 0.0
        %1722 = vmatpush1.msra.mxu0 0.0
        %1723 = vmatprep.subr.mxu0 0.0
        %1724 = vmatpush1.msra.mxu0 0.0
        %1725 = vmatprep.subr.mxu0 0.0
        %1726 = vmatpush1.msra.mxu0 0.0
        %1727 = vmatprep.subr.mxu0 0.0
        %1728 = vmatpush1.msra.mxu0 0.0
        %1729 = vmatprep.subr.mxu0 0.0
        %1730 = vmatpush1.msra.mxu0 0.0
        %1731 = vmatprep.subr.mxu0 0.0
        %1732 = vmatpush1.msra.mxu0 0.0
        %1733 = vmatprep.subr.mxu0 0.0
        %1734 = vmatpush1.msra.mxu0 0.0
        %1735 = vmatprep.subr.mxu0 0.0
        %1736 = vmatpush1.msra.mxu0 0.0
        %1737 = vmatprep.subr.mxu0 0.0
        %1738 = vmatpush1.msra.mxu0 0.0
        %1739 = vmatprep.subr.mxu0 0.0
        %1740 = vmatpush1.msra.mxu0 0.0
        %1741 = vmatprep.subr.mxu0 0.0
        %1742 = vmatpush1.msra.mxu0 0.0
        %1743 = vmatprep.mubr.f32.mxu0 0.0
        %1744 = vmatmul.mubr.f32.gmra.mrb[0].mxu0 %v1665
        %v1745 = vpop.f32.mrb[0].mxu0
        %v1746 = vadd.f32 0.0, %v1745
        %v1747 = vpop.f32.mrb[0].mxu0
        %1748 = vmatprep.mubr.f32.mxu0 0.0
        %1749 = vmatmul.mubr.f32.gmra.mrb[0].mxu0 %v1668
        %v1750 = vpop.f32.mrb[0].mxu0
        %v1751 = vadd.f32 0.0, %v1750
        %v1752 = vpop.f32.mrb[0].mxu0
        %1753 = vmatprep.mubr.f32.mxu0 0.0
        %1754 = vmatmul.mubr.f32.gmra.mrb[0].mxu0 %v1671
        %v1755 = vpop.f32.mrb[0].mxu0
        %v1756 = vadd.f32 0.0, %v1755
        %v1757 = vpop.f32.mrb[0].mxu0
        %1758 = vmatprep.mubr.f32.mxu0 0.0
        %1759 = vmatmul.mubr.f32.gmra.mrb[0].mxu0 %v1674
        %v1760 = vpop.f32.mrb[0].mxu0
        %v1761 = vadd.f32 0.0, %v1760
        %v1762 = vpop.f32.mrb[0].mxu0
        %1763 = vdwg.mxu0
        %v1765 = vsel %vm1663, %v1647, 0
        %v1768 = vsel %vm1663, %v1648, 0
        %v1771 = vsel %vm1663, %v1649, 0
        %v1774 = vsel %vm1663, %v1650, 0
        %v1776 = vsel %vm1676, %v1646, 0
        %1778 = vmatprep.subr.mxu0 0.0
        %1779 = vmatpush1.msra.mxu0 %v1645
        %1780 = vmatprep.subr.mxu0 0.0
        %1781 = vmatpush1.msra.mxu0 %v1776
        %1782 = vmatprep.subr.mxu0 0.0
        %1783 = vmatpush1.msra.mxu0 0.0
        %1784 = vmatprep.subr.mxu0 0.0
        %1785 = vmatpush1.msra.mxu0 0.0
        %1786 = vmatprep.subr.mxu0 0.0
        %1787 = vmatpush1.msra.mxu0 0.0
        %1788 = vmatprep.subr.mxu0 0.0
        %1789 = vmatpush1.msra.mxu0 0.0
        %1790 = vmatprep.subr.mxu0 0.0
        %1791 = vmatpush1.msra.mxu0 0.0
        %1792 = vmatprep.subr.mxu0 0.0
        %1793 = vmatpush1.msra.mxu0 0.0
        %1794 = vmatprep.subr.mxu0 0.0
        %1795 = vmatpush1.msra.mxu0 0.0
        %1796 = vmatprep.subr.mxu0 0.0
        %1797 = vmatpush1.msra.mxu0 0.0
        %1798 = vmatprep.subr.mxu0 0.0
        %1799 = vmatpush1.msra.mxu0 0.0
        %1800 = vmatprep.subr.mxu0 0.0
        %1801 = vmatpush1.msra.mxu0 0.0
        %1802 = vmatprep.subr.mxu0 0.0
        %1803 = vmatpush1.msra.mxu0 0.0
        %1804 = vmatprep.subr.mxu0 0.0
        %1805 = vmatpush1.msra.mxu0 0.0
        %1806 = vmatprep.subr.mxu0 0.0
        %1807 = vmatpush1.msra.mxu0 0.0
        %1808 = vmatprep.subr.mxu0 0.0
        %1809 = vmatpush1.msra.mxu0 0.0
        %1810 = vmatprep.subr.mxu0 0.0
        %1811 = vmatpush1.msra.mxu0 0.0
        %1812 = vmatprep.subr.mxu0 0.0
        %1813 = vmatpush1.msra.mxu0 0.0
        %1814 = vmatprep.subr.mxu0 0.0
        %1815 = vmatpush1.msra.mxu0 0.0
        %1816 = vmatprep.subr.mxu0 0.0
        %1817 = vmatpush1.msra.mxu0 0.0
        %1818 = vmatprep.subr.mxu0 0.0
        %1819 = vmatpush1.msra.mxu0 0.0
        %1820 = vmatprep.subr.mxu0 0.0
        %1821 = vmatpush1.msra.mxu0 0.0
        %1822 = vmatprep.subr.mxu0 0.0
        %1823 = vmatpush1.msra.mxu0 0.0
        %1824 = vmatprep.subr.mxu0 0.0
        %1825 = vmatpush1.msra.mxu0 0.0
        %1826 = vmatprep.subr.mxu0 0.0
        %1827 = vmatpush1.msra.mxu0 0.0
        %1828 = vmatprep.subr.mxu0 0.0
        %1829 = vmatpush1.msra.mxu0 0.0
        %1830 = vmatprep.subr.mxu0 0.0
        %1831 = vmatpush1.msra.mxu0 0.0
        %1832 = vmatprep.subr.mxu0 0.0
        %1833 = vmatpush1.msra.mxu0 0.0
        %1834 = vmatprep.subr.mxu0 0.0
        %1835 = vmatpush1.msra.mxu0 0.0
        %1836 = vmatprep.subr.mxu0 0.0
        %1837 = vmatpush1.msra.mxu0 0.0
        %1838 = vmatprep.subr.mxu0 0.0
        %1839 = vmatpush1.msra.mxu0 0.0
        %1840 = vmatprep.subr.mxu0 0.0
        %1841 = vmatpush1.msra.mxu0 0.0
        %1842 = vmatprep.mubr.f32.mxu0 0.0
        %1843 = vmatmul.mubr.f32.gmra.mrb[0].mxu0 %v1765
        %v1844 = vpop.f32.mrb[0].mxu0
        %v1845 = vadd.f32 %v1746, %v1844
        %v1846 = vpop.f32.mrb[0].mxu0
        %1847 = vmatprep.mubr.f32.mxu0 0.0
        %1848 = vmatmul.mubr.f32.gmra.mrb[0].mxu0 %v1768
        %v1849 = vpop.f32.mrb[0].mxu0
        %v1850 = vadd.f32 %v1751, %v1849
        %v1851 = vpop.f32.mrb[0].mxu0
        %1852 = vmatprep.mubr.f32.mxu0 0.0
        %1853 = vmatmul.mubr.f32.gmra.mrb[0].mxu0 %v1771
        %v1854 = vpop.f32.mrb[0].mxu0
        %v1855 = vadd.f32 %v1756, %v1854
        %v1856 = vpop.f32.mrb[0].mxu0
        %1857 = vmatprep.mubr.f32.mxu0 0.0
        %1858 = vmatmul.mubr.f32.gmra.mrb[0].mxu0 %v1774
        %v1859 = vpop.f32.mrb[0].mxu0
        %v1860 = vadd.f32 %v1761, %v1859
        %v1861 = vpop.f32.mrb[0].mxu0
        %1862 = vdwg.mxu0
        %s1863 = scalar_lea.vmem %s5, 64
        %v1864 = vld [vmem:[%s1863] sm:$0xff]
        %v1865 = vld [vmem:[%s1863 + $0x8] sm:$0xff]
        %v1866 = vld [vmem:[%s1863 + $0x10] sm:$0xff]
        %v1867 = vld [vmem:[%s1863 + $0x18] sm:$0xff]
        %1868 = vrot.lane.b32.xlu0 %v1645, 112
        %v1869 = vpop.permute.xlu0 %1868
        %1870 = vrot.lane.b32.xlu0 %v1646, 112
        %v1871 = vpop.permute.xlu0 %1870
        %v1874 = vsel %vm1663, %v1864, 0
        %v1877 = vsel %vm1663, %v1865, 0
        %v1880 = vsel %vm1663, %v1866, 0
        %v1883 = vsel %vm1663, %v1867, 0
        %v1885 = vsel %vm1676, %v1871, 0
        %1887 = vmatprep.subr.mxu0 0.0
        %1888 = vmatpush1.msra.mxu0 %v1869
        %1889 = vmatprep.subr.mxu0 0.0
        %1890 = vmatpush1.msra.mxu0 %v1885
        %1891 = vmatprep.subr.mxu0 0.0
        %1892 = vmatpush1.msra.mxu0 0.0
        %1893 = vmatprep.subr.mxu0 0.0
        %1894 = vmatpush1.msra.mxu0 0.0
        %1895 = vmatprep.subr.mxu0 0.0
        %1896 = vmatpush1.msra.mxu0 0.0
        %1897 = vmatprep.subr.mxu0 0.0
        %1898 = vmatpush1.msra.mxu0 0.0
        %1899 = vmatprep.subr.mxu0 0.0
        %1900 = vmatpush1.msra.mxu0 0.0
        %1901 = vmatprep.subr.mxu0 0.0
        %1902 = vmatpush1.msra.mxu0 0.0
        %1903 = vmatprep.subr.mxu0 0.0
        %1904 = vmatpush1.msra.mxu0 0.0
        %1905 = vmatprep.subr.mxu0 0.0
        %1906 = vmatpush1.msra.mxu0 0.0
        %1907 = vmatprep.subr.mxu0 0.0
        %1908 = vmatpush1.msra.mxu0 0.0
        %1909 = vmatprep.subr.mxu0 0.0
        %1910 = vmatpush1.msra.mxu0 0.0
        %1911 = vmatprep.subr.mxu0 0.0
        %1912 = vmatpush1.msra.mxu0 0.0
        %1913 = vmatprep.subr.mxu0 0.0
        %1914 = vmatpush1.msra.mxu0 0.0
        %1915 = vmatprep.subr.mxu0 0.0
        %1916 = vmatpush1.msra.mxu0 0.0
        %1917 = vmatprep.subr.mxu0 0.0
        %1918 = vmatpush1.msra.mxu0 0.0
        %1919 = vmatprep.subr.mxu0 0.0
        %1920 = vmatpush1.msra.mxu0 0.0
        %1921 = vmatprep.subr.mxu0 0.0
        %1922 = vmatpush1.msra.mxu0 0.0
        %1923 = vmatprep.subr.mxu0 0.0
        %1924 = vmatpush1.msra.mxu0 0.0
        %1925 = vmatprep.subr.mxu0 0.0
        %1926 = vmatpush1.msra.mxu0 0.0
        %1927 = vmatprep.subr.mxu0 0.0
        %1928 = vmatpush1.msra.mxu0 0.0
        %1929 = vmatprep.subr.mxu0 0.0
        %1930 = vmatpush1.msra.mxu0 0.0
        %1931 = vmatprep.subr.mxu0 0.0
        %1932 = vmatpush1.msra.mxu0 0.0
        %1933 = vmatprep.subr.mxu0 0.0
        %1934 = vmatpush1.msra.mxu0 0.0
        %1935 = vmatprep.subr.mxu0 0.0
        %1936 = vmatpush1.msra.mxu0 0.0
        %1937 = vmatprep.subr.mxu0 0.0
        %1938 = vmatpush1.msra.mxu0 0.0
        %1939 = vmatprep.subr.mxu0 0.0
        %1940 = vmatpush1.msra.mxu0 0.0
        %1941 = vmatprep.subr.mxu0 0.0
        %1942 = vmatpush1.msra.mxu0 0.0
        %1943 = vmatprep.subr.mxu0 0.0
        %1944 = vmatpush1.msra.mxu0 0.0
        %1945 = vmatprep.subr.mxu0 0.0
        %1946 = vmatpush1.msra.mxu0 0.0
        %1947 = vmatprep.subr.mxu0 0.0
        %1948 = vmatpush1.msra.mxu0 0.0
        %1949 = vmatprep.subr.mxu0 0.0
        %1950 = vmatpush1.msra.mxu0 0.0
        %1951 = vmatprep.mubr.f32.mxu0 0.0
        %1952 = vmatmul.mubr.f32.gmra.mrb[0].mxu0 %v1874
        %v1953 = vpop.f32.mrb[0].mxu0
        %v1954 = vadd.f32 0.0, %v1953
        %v1955 = vpop.f32.mrb[0].mxu0
        %1956 = vmatprep.mubr.f32.mxu0 0.0
        %1957 = vmatmul.mubr.f32.gmra.mrb[0].mxu0 %v1877
        %v1958 = vpop.f32.mrb[0].mxu0
        %v1959 = vadd.f32 0.0, %v1958
        %v1960 = vpop.f32.mrb[0].mxu0
        %1961 = vmatprep.mubr.f32.mxu0 0.0
        %1962 = vmatmul.mubr.f32.gmra.mrb[0].mxu0 %v1880
        %v1963 = vpop.f32.mrb[0].mxu0
        %v1964 = vadd.f32 0.0, %v1963
        %v1965 = vpop.f32.mrb[0].mxu0
        %1966 = vmatprep.mubr.f32.mxu0 0.0
        %1967 = vmatmul.mubr.f32.gmra.mrb[0].mxu0 %v1883
        %v1968 = vpop.f32.mrb[0].mxu0
        %v1969 = vadd.f32 0.0, %v1968
        %v1970 = vpop.f32.mrb[0].mxu0
        %1971 = vdwg.mxu0
        %v1972 = vadd.f32 %v1845, %v1954
        %v1973 = vadd.f32 %v1850, %v1959
        %v1974 = vadd.f32 %v1855, %v1964
        %v1975 = vadd.f32 %v1860, %v1969
        %s1976 = scalar_lea.vmem %s5, 96
        %v1977 = vld [vmem:[%s1976] sm:$0xff]
        %v1978 = vld [vmem:[%s1976 + $0x8] sm:$0xff]
        %v1979 = vld [vmem:[%s1976 + $0x10] sm:$0xff]
        %v1980 = vld [vmem:[%s1976 + $0x18] sm:$0xff]
        %1981 = vrot.lane.b32.xlu0 %v1645, 104
        %v1982 = vpop.permute.xlu0 %1981
        %1983 = vrot.lane.b32.xlu0 %v1646, 104
        %v1984 = vpop.permute.xlu0 %1983
        %v1987 = vsel %vm1663, %v1977, 0
        %v1990 = vsel %vm1663, %v1978, 0
        %v1993 = vsel %vm1663, %v1979, 0
        %v1996 = vsel %vm1663, %v1980, 0
        %v1998 = vsel %vm1676, %v1984, 0
        %2000 = vmatprep.subr.mxu0 0.0
        %2001 = vmatpush1.msra.mxu0 %v1982
        %2002 = vmatprep.subr.mxu0 0.0
        %2003 = vmatpush1.msra.mxu0 %v1998
        %2004 = vmatprep.subr.mxu0 0.0
        %2005 = vmatpush1.msra.mxu0 0.0
        %2006 = vmatprep.subr.mxu0 0.0
        %2007 = vmatpush1.msra.mxu0 0.0
        %2008 = vmatprep.subr.mxu0 0.0
        %2009 = vmatpush1.msra.mxu0 0.0
        %2010 = vmatprep.subr.mxu0 0.0
        %2011 = vmatpush1.msra.mxu0 0.0
        %2012 = vmatprep.subr.mxu0 0.0
        %2013 = vmatpush1.msra.mxu0 0.0
        %2014 = vmatprep.subr.mxu0 0.0
        %2015 = vmatpush1.msra.mxu0 0.0
        %2016 = vmatprep.subr.mxu0 0.0
        %2017 = vmatpush1.msra.mxu0 0.0
        %2018 = vmatprep.subr.mxu0 0.0
        %2019 = vmatpush1.msra.mxu0 0.0
        %2020 = vmatprep.subr.mxu0 0.0
        %2021 = vmatpush1.msra.mxu0 0.0
        %2022 = vmatprep.subr.mxu0 0.0
        %2023 = vmatpush1.msra.mxu0 0.0
        %2024 = vmatprep.subr.mxu0 0.0
        %2025 = vmatpush1.msra.mxu0 0.0
        %2026 = vmatprep.subr.mxu0 0.0
        %2027 = vmatpush1.msra.mxu0 0.0
        %2028 = vmatprep.subr.mxu0 0.0
        %2029 = vmatpush1.msra.mxu0 0.0
        %2030 = vmatprep.subr.mxu0 0.0
        %2031 = vmatpush1.msra.mxu0 0.0
        %2032 = vmatprep.subr.mxu0 0.0
        %2033 = vmatpush1.msra.mxu0 0.0
        %2034 = vmatprep.subr.mxu0 0.0
        %2035 = vmatpush1.msra.mxu0 0.0
        %2036 = vmatprep.subr.mxu0 0.0
        %2037 = vmatpush1.msra.mxu0 0.0
        %2038 = vmatprep.subr.mxu0 0.0
        %2039 = vmatpush1.msra.mxu0 0.0
        %2040 = vmatprep.subr.mxu0 0.0
        %2041 = vmatpush1.msra.mxu0 0.0
        %2042 = vmatprep.subr.mxu0 0.0
        %2043 = vmatpush1.msra.mxu0 0.0
        %2044 = vmatprep.subr.mxu0 0.0
        %2045 = vmatpush1.msra.mxu0 0.0
        %2046 = vmatprep.subr.mxu0 0.0
        %2047 = vmatpush1.msra.mxu0 0.0
        %2048 = vmatprep.subr.mxu0 0.0
        %2049 = vmatpush1.msra.mxu0 0.0
        %2050 = vmatprep.subr.mxu0 0.0
        %2051 = vmatpush1.msra.mxu0 0.0
        %2052 = vmatprep.subr.mxu0 0.0
        %2053 = vmatpush1.msra.mxu0 0.0
        %2054 = vmatprep.subr.mxu0 0.0
        %2055 = vmatpush1.msra.mxu0 0.0
        %2056 = vmatprep.subr.mxu0 0.0
        %2057 = vmatpush1.msra.mxu0 0.0
        %2058 = vmatprep.subr.mxu0 0.0
        %2059 = vmatpush1.msra.mxu0 0.0
        %2060 = vmatprep.subr.mxu0 0.0
        %2061 = vmatpush1.msra.mxu0 0.0
        %2062 = vmatprep.subr.mxu0 0.0
        %2063 = vmatpush1.msra.mxu0 0.0
        %2064 = vmatprep.mubr.f32.mxu0 0.0
        %2065 = vmatmul.mubr.f32.gmra.mrb[0].mxu0 %v1987
        %v2066 = vpop.f32.mrb[0].mxu0
        %v2067 = vadd.f32 0.0, %v2066
        %v2068 = vpop.f32.mrb[0].mxu0
        %2069 = vmatprep.mubr.f32.mxu0 0.0
        %2070 = vmatmul.mubr.f32.gmra.mrb[0].mxu0 %v1990
        %v2071 = vpop.f32.mrb[0].mxu0
        %v2072 = vadd.f32 0.0, %v2071
        %v2073 = vpop.f32.mrb[0].mxu0
        %2074 = vmatprep.mubr.f32.mxu0 0.0
        %2075 = vmatmul.mubr.f32.gmra.mrb[0].mxu0 %v1993
        %v2076 = vpop.f32.mrb[0].mxu0
        %v2077 = vadd.f32 0.0, %v2076
        %v2078 = vpop.f32.mrb[0].mxu0
        %2079 = vmatprep.mubr.f32.mxu0 0.0
        %2080 = vmatmul.mubr.f32.gmra.mrb[0].mxu0 %v1996
        %v2081 = vpop.f32.mrb[0].mxu0
        %v2082 = vadd.f32 0.0, %v2081
        %v2083 = vpop.f32.mrb[0].mxu0
        %2084 = vdwg.mxu0
        %v2085 = vadd.f32 %v1972, %v2067
        %v2086 = vadd.f32 %v1973, %v2072
        %v2087 = vadd.f32 %v1974, %v2077
        %v2088 = vadd.f32 %v1975, %v2082
        %v2089 = vld [vmem:[%s6] sm:$0xff]
        %v2090 = vld [vmem:[%s6 + $0x8] sm:$0xff]
        %v2091 = vld [vmem:[%s6 + $0x10] sm:$0xff]
        %v2092 = vld [vmem:[%s6 + $0x18] sm:$0xff]
        %2094 = vset.pattern.permute.xlu0 0
        %2095 = vperm.xlu0 %2094, %v2089
        %v2096 = vpop.permute.xlu0 %2095
        %2099 = vset.pattern.permute.xlu0 0
        %2100 = vperm.xlu0 %2099, %v2090
        %v2101 = vpop.permute.xlu0 %2100
        %2104 = vset.pattern.permute.xlu0 0
        %2105 = vperm.xlu0 %2104, %v2091
        %v2106 = vpop.permute.xlu0 %2105
        %2109 = vset.pattern.permute.xlu0 0
        %2110 = vperm.xlu0 %2109, %v2092
        %v2111 = vpop.permute.xlu0 %2110
        %v2113 = vadd.f32 %v2085, %v2096
        %v2114 = vadd.f32 %v2086, %v2101
        %v2115 = vadd.f32 %v2087, %v2106
        %v2116 = vadd.f32 %v2088, %v2111
        %v2117 = vmax.f32 %v2113, 0.0
        %v2118 = vmax.f32 %v2114, 0.0
        %v2119 = vmax.f32 %v2115, 0.0
        %v2120 = vmax.f32 %v2116, 0.0
        %v2121 = vld [vmem:[%s7] sm:$0xff]
        %v2122 = vld [vmem:[%s7 + $0x8] sm:$0x3]
        %v2123 = vld [vmem:[%s8] sm:$0xff]
        %v2124 = vld [vmem:[%s8 + $0x8] sm:$0x3]
        %2126 = vset.pattern.permute.xlu0 0
        %2127 = vperm.xlu0 %2126, %v2123
        %v2128 = vpop.permute.xlu0 %2127
        %2131 = vset.pattern.permute.xlu0 0
        %2132 = vperm.xlu0 %2131, %v2124
        %v2133 = vpop.permute.xlu0 %2132
        %vm2135 = vcmask 261120
        %v2137 = vsel %vm2135, %v2121, 0
        %v2140 = vsel %vm2135, %v2122, 0
        %2142 = vmatprep.subr.mxu0 0.0
        %2143 = vmatpush1.msra.mxu0 %v2117
        %2144 = vmatprep.subr.mxu0 0.0
        %2145 = vmatpush1.msra.mxu0 %v2118
        %2146 = vmatprep.subr.mxu0 0.0
        %2147 = vmatpush1.msra.mxu0 %v2119
        %2148 = vmatprep.subr.mxu0 0.0
        %2149 = vmatpush1.msra.mxu0 %v2120
        %2150 = vmatprep.subr.mxu0 0.0
        %2151 = vmatpush1.msra.mxu0 0.0
        %2152 = vmatprep.subr.mxu0 0.0
        %2153 = vmatpush1.msra.mxu0 0.0
        %2154 = vmatprep.subr.mxu0 0.0
        %2155 = vmatpush1.msra.mxu0 0.0
        %2156 = vmatprep.subr.mxu0 0.0
        %2157 = vmatpush1.msra.mxu0 0.0
        %2158 = vmatprep.subr.mxu0 0.0
        %2159 = vmatpush1.msra.mxu0 0.0
        %2160 = vmatprep.subr.mxu0 0.0
        %2161 = vmatpush1.msra.mxu0 0.0
        %2162 = vmatprep.subr.mxu0 0.0
        %2163 = vmatpush1.msra.mxu0 0.0
        %2164 = vmatprep.subr.mxu0 0.0
        %2165 = vmatpush1.msra.mxu0 0.0
        %2166 = vmatprep.subr.mxu0 0.0
        %2167 = vmatpush1.msra.mxu0 0.0
        %2168 = vmatprep.subr.mxu0 0.0
        %2169 = vmatpush1.msra.mxu0 0.0
        %2170 = vmatprep.subr.mxu0 0.0
        %2171 = vmatpush1.msra.mxu0 0.0
        %2172 = vmatprep.subr.mxu0 0.0
        %2173 = vmatpush1.msra.mxu0 0.0
        %2174 = vmatprep.subr.mxu0 0.0
        %2175 = vmatpush1.msra.mxu0 0.0
        %2176 = vmatprep.subr.mxu0 0.0
        %2177 = vmatpush1.msra.mxu0 0.0
        %2178 = vmatprep.subr.mxu0 0.0
        %2179 = vmatpush1.msra.mxu0 0.0
        %2180 = vmatprep.subr.mxu0 0.0
        %2181 = vmatpush1.msra.mxu0 0.0
        %2182 = vmatprep.subr.mxu0 0.0
        %2183 = vmatpush1.msra.mxu0 0.0
        %2184 = vmatprep.subr.mxu0 0.0
        %2185 = vmatpush1.msra.mxu0 0.0
        %2186 = vmatprep.subr.mxu0 0.0
        %2187 = vmatpush1.msra.mxu0 0.0
        %2188 = vmatprep.subr.mxu0 0.0
        %2189 = vmatpush1.msra.mxu0 0.0
        %2190 = vmatprep.subr.mxu0 0.0
        %2191 = vmatpush1.msra.mxu0 0.0
        %2192 = vmatprep.subr.mxu0 0.0
        %2193 = vmatpush1.msra.mxu0 0.0
        %2194 = vmatprep.subr.mxu0 0.0
        %2195 = vmatpush1.msra.mxu0 0.0
        %2196 = vmatprep.subr.mxu0 0.0
        %2197 = vmatpush1.msra.mxu0 0.0
        %2198 = vmatprep.subr.mxu0 0.0
        %2199 = vmatpush1.msra.mxu0 0.0
        %2200 = vmatprep.subr.mxu0 0.0
        %2201 = vmatpush1.msra.mxu0 0.0
        %2202 = vmatprep.subr.mxu0 0.0
        %2203 = vmatpush1.msra.mxu0 0.0
        %2204 = vmatprep.subr.mxu0 0.0
        %2205 = vmatpush1.msra.mxu0 0.0
        %2206 = vmatprep.mubr.f32.mxu0 0.0
        %2207 = vmatmul.mubr.f32.gmra.mrb[0].mxu0 %v2137
        %v2208 = vpop.f32.mrb[0].mxu0
        %v2209 = vadd.f32 %v2128, %v2208
        %v2210 = vpop.f32.mrb[0].mxu0
        %2211 = vmatprep.mubr.f32.mxu0 0.0
        %2212 = vmatmul.mubr.f32.gmra.mrb[0].mxu0 %v2140
        %v2213 = vpop.f32.mrb[0].mxu0
        %v2214 = vadd.f32 %v2133, %v2213
        %v2215 = vpop.f32.mrb[0].mxu0
        %2216 = vdwg.mxu0
        %v2217 = vmax.f32 %v2209, 0.0
        %v2218 = vmax.f32 %v2214, 0.0
        %vm2219 = vcmask 64512
        %2220 = vst.msk [vmem:[%s359] sm:$0xff] %vm2219, %v2217
        %vm2221 = vcmask 58368
        %2222 = vst.msk [vmem:[%s359 + $0x8] sm:$0x3] %vm2221, %v2218
        %p2223 = scmp.lt.s32.totalorder %s22, 1
        %s2224 = scalar_select %p2223, %s22, 1
        %s2225 = smul.addr %s2224, 2
        %s2226 = smul.addr %s2225, 8
        %s2227 = scalar_lea.vmem %s9, %s2226
        // Predicated region
        $region65: #{tpu_custom_call.1} parent=55 // pred_check
          %p2228 = pneg %p234
        $region66: #{tpu_custom_call.1} parent=55 // pred_check_branch
          %2230 = sbr.rel (%p2228) target = $region68
        $region67: #{tpu_custom_call.1} parent=55 // pred_region
          _
        $region68: #{tpu_custom_call.1} parent=55 // pred_fallthru
          _
      $region56: #{tpu_custom_call.1} parent=5 // pred_fallthru
        _
      %p2231 = scmp.le.s32.totalorder 2, %s17
      // Predicated region
      $region69: #{tpu_custom_call.1} parent=5 // pred_check
        %p2232 = pneg %p2231
      $region70: #{tpu_custom_call.1} parent=5 // pred_check_branch
        %2234 = sbr.rel (%p2232) target = $region72
      $region71: #{tpu_custom_call.1} parent=5 // pred_region
        %s2235 = ssub.s32 %s17, 2
        // Predicated region
        $region73: #{tpu_custom_call.1} parent=71 // pred_check
          %p2236 = pneg %p240
        $region74: #{tpu_custom_call.1} parent=71 // pred_check_branch
          %2238 = sbr.rel (%p2236) target = $region76
        $region75: #{tpu_custom_call.1} parent=71 // pred_region
          %p2239 = scmp.lt.s32.totalorder %s23, 1
          %s2240 = scalar_select %p2239, %s23, 1
          %s2241 = smul.addr %s2240, 2
          %s2242 = smul.addr %s2241, 8
          %s2243 = scalar_lea.vmem %s9, %s2242
        $region76: #{tpu_custom_call.1} parent=71 // pred_fallthru
          _
      $region72: #{tpu_custom_call.1} parent=5 // pred_fallthru
        _
    $region6: #{tpu_custom_call.1} parent=1 // loop_footer
      %s21 = sadd.s32 1, %s17
    $region7: #{tpu_custom_call.1} parent=1 // loop_footer_branch
      %16 = sbr.rel target = $region3
    $region8: #{tpu_custom_call.1} parent=1 // loop_exit
      _
    %2244 = vsyncpa [#allocation4], 1
    %s2245 = scalar_lea.sflag [#allocation4], 1
    %2246 = vsyncpa %s2245, 1
    %2247 = vsyncpa [#allocation6], 1

</llo_original>
